<compile_context>
chip_gen: v7x
topology: tpu7x:2x2x1
jax: 0.10.0
libtpu: 0.0.40
codegen_flags: <defaults>
</compile_context>

<pallas_src>
import jax
import jax.numpy as jnp
import numpy as np
from jax.experimental import pallas as pl
from jax.experimental.pallas import tpu as pltpu

W_HIDDEN = 128
W_HALF = W_HIDDEN // 2
N_FEATURES = 16                      # n_features of NeRFDecoder(n_features)
POS_FREQS = 6
VIEW_FREQS = 4
POS_DIM = 3 + POS_FREQS * 6          # 39
VIEW_DIM = 3 + VIEW_FREQS * 6        # 27
C_IN = N_FEATURES + POS_DIM          # 55  (nerf_input_ch)
C_SKIP = C_IN + W_HIDDEN             # 183 skip-layer input width
C_VIEWS = W_HIDDEN + VIEW_DIM + N_FEATURES   # 171 views_linear input width
C_USED = POS_DIM + N_FEATURES + VIEW_DIM     # 82 live lanes of packed input
C_PACK = 128                         # lane-aligned packed-input width
MATMUL_DTYPE = jnp.bfloat16          # jnp.float32 for full-precision matmuls
DEFAULT_TILE_N = 4096                # points per grid step (sweep 2048..4096)

# lane offsets inside the packed input [pos_enc | feats | dir_enc | 0]
_OFF_FEAT = POS_DIM                  # 39
_OFF_DIR = POS_DIM + N_FEATURES      # 55


def positional_encoding(x, num_freqs):
    """NeRF positional encoding; identical element layout to the torch module."""
    n = x.shape[0]
    freqs = jnp.repeat(2.0 ** jnp.arange(num_freqs, dtype=jnp.float32), 2)        # (2F,)
    phases = jnp.zeros((2 * num_freqs,), jnp.float32).at[1::2].set(jnp.pi * 0.5)  # (2F,)
    embed = jnp.sin(phases[None, :, None] + x[:, None, :] * freqs[None, :, None]) # (N,2F,3)
    embed = embed.reshape(n, -1)
    return jnp.concatenate([x, embed], axis=-1)


def init_params(key):
    """Deterministic (in,out) weights and (1,out) biases for the 12 linears
    (same layout as the torch module, W stored transposed so y = x @ W + b)."""
    dims = [(C_IN, W_HIDDEN)]
    for i in range(7):
        dims.append((C_SKIP, W_HIDDEN) if i == 4 else (W_HIDDEN, W_HIDDEN))
    dims += [(W_HIDDEN, 1),                # alpha_linear
             (W_HIDDEN, W_HIDDEN),         # feature_linear
             (C_VIEWS, W_HALF),            # views_linear
             (W_HALF, 3)]                  # rgb_linear
    params = []
    for d_in, d_out in dims:
        key, kw, kb = jax.random.split(key, 3)
        bound = 1.0 / np.sqrt(d_in)
        w = jax.random.uniform(kw, (d_in, d_out), jnp.float32, -bound, bound)
        b = jax.random.uniform(kb, (1, d_out), jnp.float32, -bound, bound)
        params.append((w, b))
    return params


def pack_params(params, dtype=MATMUL_DTYPE):
    """Re-pack the reference (in,out) weights into the kernel layout:
      * layer 0 zero-padded onto the 128 packed-input lanes,
      * skip layer fused to one (256,128) weight: [Wx_packed ; Wh],
      * feature_linear + alpha_linear fused and padded to (128,256),
      * views_linear fused to (256,128) (feature rows + packed-input rows,
        output columns zero-padded 64->128), bias padded to (1,128),
      * rgb_linear rows zero-padded 64->128.
    Matmul weights are cast to `dtype`; biases stay f32."""
    w_pts, b_pts = [], []
    for i in range(8):
        w, b = params[i]
        if i == 0:
            # layer 0 consumes [pos_enc | feats] = packed lanes [0, C_IN)
            w = jnp.zeros((C_PACK, W_HIDDEN), jnp.float32).at[:C_IN].set(w)
        elif i == 5:
            # skip layer: fuse x-part (zero-padded to packed lanes) and h-part
            w_x = jnp.zeros((C_PACK, W_HIDDEN), jnp.float32).at[:C_IN].set(w[:C_IN])
            w = jnp.concatenate([w_x, w[C_IN:]], axis=0)          # (256, 128)
        w_pts.append(w.astype(dtype))
        b_pts.append(b)                                           # f32 (1, 128)

    # feature_linear (128,128) fused with alpha_linear (128,1), padded to 256
    # columns: cols [0,128)=feature, col 128=sigma, cols [129,256)=zero.
    w_alpha, b_alpha = params[8]
    w_feat, b_feat = params[9]
    w_fa = (jnp.zeros((W_HIDDEN, 2 * W_HIDDEN), jnp.float32)
            .at[:, :W_HIDDEN].set(w_feat)
            .at[:, W_HIDDEN:W_HIDDEN + 1].set(w_alpha)).astype(dtype)   # (128,256)
    b_fa = (jnp.zeros((1, 2 * W_HIDDEN), jnp.float32)
            .at[:, :W_HIDDEN].set(b_feat)
            .at[:, W_HIDDEN:W_HIDDEN + 1].set(b_alpha))                 # f32 (1,256)

    # views_linear (171,64): fuse into one (256,128) weight.
    #   rows [0,128)   -> feature part
    #   rows [128,256) -> packed-input lanes (dir_enc at _OFF_DIR, feats at _OFF_FEAT)
    #   cols [64,128)  -> zero padding (relu(0)=0, zero rgb rows cancel it)
    w_v, b_v = params[10]
    w_v_x = jnp.zeros((C_PACK, W_HALF), jnp.float32)
    w_v_x = w_v_x.at[_OFF_DIR:_OFF_DIR + VIEW_DIM].set(
        w_v[W_HIDDEN:W_HIDDEN + VIEW_DIM])
    w_v_x = w_v_x.at[_OFF_FEAT:_OFF_FEAT + N_FEATURES].set(
        w_v[W_HIDDEN + VIEW_DIM:])
    w_views = jnp.concatenate([w_v[:W_HIDDEN], w_v_x], axis=0)          # (256, 64)
    w_views = jnp.pad(w_views, ((0, 0), (0, W_HIDDEN - W_HALF))).astype(dtype)  # (256,128)
    b_v_p = jnp.pad(b_v, ((0, 0), (0, W_HIDDEN - W_HALF)))              # f32 (1,128)

    w_rgb, b_rgb = params[11]
    w_rgb_p = jnp.pad(w_rgb, ((0, W_HIDDEN - W_HALF), (0, 0))).astype(dtype)   # (128,3)

    return (tuple(w_pts) + tuple(b_pts)
            + (w_fa, b_fa, w_views, b_v_p, w_rgb_p, b_rgb))


def nerf_mlp_kernel(*refs):
    in_ref = refs[0]                 # (TILE, 128) packed bf16 input
    w_pts = refs[1:9]                # 8 weights; index 5 is the fused (256,128) skip
    b_pts = refs[9:17]               # 8 x (1,128) f32
    w_fa, b_fa, w_views, b_v, w_rgb, b_rgb = refs[17:23]
    out_ref = refs[23]               # (TILE, 4): [rgb(3) | sigma(1)] f32

    def mm(a, w_ref):
        return jnp.dot(a, w_ref[...], preferred_element_type=jnp.float32)

    x = in_ref[...]                                            # (TILE,128) bf16

    # 8 pts_linears; skip layer = one K=256 matmul on concat([x, h]).
    h = jax.nn.relu(mm(x, w_pts[0]) + b_pts[0][...]).astype(MATMUL_DTYPE)
    for i in range(1, 8):
        lhs = jnp.concatenate([x, h], axis=-1) if i == 5 else h
        h = jax.nn.relu(mm(lhs, w_pts[i]) + b_pts[i][...]).astype(MATMUL_DTYPE)

    # fused feature_linear + alpha_linear: lanes [0,128)=feature, lane 128=sigma
    fa = mm(h, w_fa) + b_fa[...]                               # (TILE,256) f32
    feature = fa[:, :W_HIDDEN].astype(MATMUL_DTYPE)
    sigma = fa[:, W_HIDDEN:W_HIDDEN + 1]

    # views_linear: one K=256 matmul on concat([feature, x]); N padded to 128.
    hv = jax.nn.relu(mm(jnp.concatenate([feature, x], axis=-1), w_views)
                     + b_v[...]).astype(MATMUL_DTYPE)          # (TILE,128)
    rgb = jax.nn.sigmoid(mm(hv, w_rgb) + b_rgb[...])           # (TILE,3) f32

    out_ref[...] = jnp.concatenate([rgb, sigma], axis=-1)      # (TILE,4)


def nerf_decoder_pallas(ray_points, ray_directions, sampled_features, params,
                        tile_n=DEFAULT_TILE_N):
    bs, pt_num, _ = ray_points.shape
    n = bs * pt_num
    assert sampled_features.shape[-1] == N_FEATURES
    assert C_USED <= C_PACK

    # Positional encodings are elementwise glue; compute once in the wrapper
    # and pack everything into a single lane-dense (n, 128) bf16 input.
    # TODO(synk): on v5e consider computing the encodings in-kernel (EUP slot is
    # idle under the MXU-bound schedule) to avoid re-reading 256 B/point.
    x_enc = positional_encoding(ray_points.reshape(-1, 3), POS_FREQS)       # (n, 39)
    d_enc = positional_encoding(ray_directions.reshape(-1, 3), VIEW_FREQS)  # (n, 27)
    feats = sampled_features.reshape(n, -1)                                 # (n, 16)
    packed = jnp.concatenate(
        [x_enc, feats, d_enc, jnp.zeros((n, C_PACK - C_USED), jnp.float32)],
        axis=-1).astype(MATMUL_DTYPE)

    # Points tile: as large as possible (amortizes per-step overhead / MXU
    # weight loads), but guarantee >= 2 grid steps whenever the point count
    # allows, so the "parallel" axis can shard across v7x's 2 TensorCores.
    n_cap = pl.cdiv(n, 128) * 128
    tile_n = max(128, min((tile_n // 128) * 128, n_cap))
    if n_cap >= 2 * 128 and tile_n > n_cap // 2:
        tile_n = max(128, ((n_cap // 2) // 128) * 128)
    grid = pl.cdiv(n, tile_n)   # partial final block handled by Pallas masking

    kparams = pack_params(params)

    def const_spec(arr):
        # Constant block index across the grid -> weights DMA'd once.
        return pl.BlockSpec(arr.shape, lambda i: (0, 0))

    grid_spec = pltpu.PrefetchScalarGridSpec(
        num_scalar_prefetch=0,
        grid=(grid,),
        in_specs=[pl.BlockSpec((tile_n, C_PACK), lambda i: (i, 0))]
                 + [const_spec(a) for a in kparams],
        out_specs=pl.BlockSpec((tile_n, 4), lambda i: (i, 0)),
    )

    out = pl.pallas_call(
        nerf_mlp_kernel,
        out_shape=jax.ShapeDtypeStruct((n, 4), jnp.float32),
        grid_spec=grid_spec,
        compiler_params=pltpu.CompilerParams(
            dimension_semantics=("parallel",)),   # megacore split on v7x
    )(packed, *kparams)

    return {"rgb": out[:, :3].reshape(bs, pt_num, 3),
            "sigma": out[:, 3:4].reshape(bs, pt_num, 1)}


def nerf_decoder_ref(ray_points, ray_directions, sampled_features, params,
                     matmul_dtype=None):
    """Pure-JAX reference mirroring the torch forward (concat-based).
    matmul_dtype=None -> full f32 (HIGHEST precision);
    matmul_dtype=bf16 -> same numerical recipe as the kernel (bf16 operands,
    f32 accumulation), used to validate the weight split/fuse/pack exactly."""
    bs, pt_num, _ = ray_points.shape
    n = bs * pt_num
    x = positional_encoding(ray_points.reshape(-1, 3), POS_FREQS)
    d = positional_encoding(ray_directions.reshape(-1, 3), VIEW_FREQS)
    feats = sampled_features.reshape(n, -1)
    x = jnp.concatenate([x, feats], axis=-1)

    def lin(h, idx):
        w, b = params[idx]
        if matmul_dtype is None:
            return jnp.dot(h, w, precision=jax.lax.Precision.HIGHEST) + b
        return jnp.dot(h.astype(matmul_dtype), w.astype(matmul_dtype),
                       preferred_element_type=jnp.float32) + b

    h = x
    for i in range(8):
        h = jax.nn.relu(lin(h, i))
        if i == 4:
            h = jnp.concatenate([x, h], axis=-1)
    sigma = lin(h, 8)
    feature = lin(h, 9)
    hv = jnp.concatenate([feature, d, feats], axis=-1)
    hv = jax.nn.relu(lin(hv, 10))
    rgb = jax.nn.sigmoid(lin(hv, 11))
    return {"rgb": rgb.reshape(bs, pt_num, 3),
            "sigma": sigma.reshape(bs, pt_num, 1)}


if __name__ == "__main__":
    key = jax.random.PRNGKey(0)
    kp, kd, kf, kw = jax.random.split(key, 4)
    bs, pt_num = 2, 128
    ray_points = jax.random.normal(kp, (bs, pt_num, 3), jnp.float32)
    ray_directions = jax.random.normal(kd, (bs, pt_num, 3), jnp.float32)
    sampled_features = jax.random.normal(kf, (bs, pt_num, N_FEATURES), jnp.float32)
    params = init_params(kw)

    fwd = jax.jit(nerf_decoder_pallas)
    out = fwd(ray_points, ray_directions, sampled_features, params)
    jax.block_until_ready(out)

    assert out["rgb"].shape == (bs, pt_num, 3)
    assert out["sigma"].shape == (bs, pt_num, 1)

    # Tight check: reference with the same numerical recipe (bf16 matmul
    # operands, f32 accumulation) -- validates the weight splitting / fusion /
    # lane packing / bf16-activation storage done for the kernel.
    ref_lo = nerf_decoder_ref(ray_points, ray_directions, sampled_features,
                              params, matmul_dtype=MATMUL_DTYPE)
    np.testing.assert_allclose(np.asarray(out["rgb"]), np.asarray(ref_lo["rgb"]),
                               atol=5e-3, rtol=5e-3)
    np.testing.assert_allclose(np.asarray(out["sigma"]), np.asarray(ref_lo["sigma"]),
                               atol=5e-3, rtol=5e-3)

    # Loose check vs. the full-f32 reference (bf16 matmul operands trade a
    # little accuracy for MXU throughput; set MATMUL_DTYPE=float32 if needed).
    ref_hi = nerf_decoder_ref(ray_points, ray_directions, sampled_features, params)
    np.testing.assert_allclose(np.asarray(out["rgb"]), np.asarray(ref_hi["rgb"]),
                               atol=5e-2, rtol=5e-2)
    np.testing.assert_allclose(np.asarray(out["sigma"]), np.asarray(ref_hi["sigma"]),
                               atol=5e-2, rtol=5e-2)
    print("KERNEL_OK")
</pallas_src>

<mosaic_0001>
module attributes {stable_mosaic.version = 11 : i64} {
  func.func @nerf_mlp_kernel(%arg0: i32, %arg1: memref<128x128xbf16, #tpu.memory_space<vmem>>, %arg2: memref<128x128xbf16, #tpu.memory_space<vmem>>, %arg3: memref<128x128xbf16, #tpu.memory_space<vmem>>, %arg4: memref<128x128xbf16, #tpu.memory_space<vmem>>, %arg5: memref<128x128xbf16, #tpu.memory_space<vmem>>, %arg6: memref<128x128xbf16, #tpu.memory_space<vmem>>, %arg7: memref<256x128xbf16, #tpu.memory_space<vmem>>, %arg8: memref<128x128xbf16, #tpu.memory_space<vmem>>, %arg9: memref<128x128xbf16, #tpu.memory_space<vmem>>, %arg10: memref<1x128xf32, #tpu.memory_space<vmem>>, %arg11: memref<1x128xf32, #tpu.memory_space<vmem>>, %arg12: memref<1x128xf32, #tpu.memory_space<vmem>>, %arg13: memref<1x128xf32, #tpu.memory_space<vmem>>, %arg14: memref<1x128xf32, #tpu.memory_space<vmem>>, %arg15: memref<1x128xf32, #tpu.memory_space<vmem>>, %arg16: memref<1x128xf32, #tpu.memory_space<vmem>>, %arg17: memref<1x128xf32, #tpu.memory_space<vmem>>, %arg18: memref<128x256xbf16, #tpu.memory_space<vmem>>, %arg19: memref<1x256xf32, #tpu.memory_space<vmem>>, %arg20: memref<256x128xbf16, #tpu.memory_space<vmem>>, %arg21: memref<1x128xf32, #tpu.memory_space<vmem>>, %arg22: memref<128x3xbf16, #tpu.memory_space<vmem>>, %arg23: memref<1x3xf32, #tpu.memory_space<vmem>>, %arg24: memref<128x4xf32, #tpu.memory_space<vmem>>) attributes {dimension_semantics = [#tpu.dimension_semantics<parallel>], iteration_bounds = array<i64: 2>, scalar_prefetch = 0 : i64, scratch_operands = 0 : i64, tpu.core_type = #tpu.core_type<tc>, window_params = [{transform_indices = @transform_0, window_bounds = array<i64: 128, 128>}, {pipeline_mode = #tpu.pipeline_mode<synchronous>, transform_indices = @transform_1, window_bounds = array<i64: 128, 128>}, {pipeline_mode = #tpu.pipeline_mode<synchronous>, transform_indices = @transform_2, window_bounds = array<i64: 128, 128>}, {pipeline_mode = #tpu.pipeline_mode<synchronous>, transform_indices = @transform_3, window_bounds = array<i64: 128, 128>}, {pipeline_mode = #tpu.pipeline_mode<synchronous>, transform_indices = @transform_4, window_bounds = array<i64: 128, 128>}, {pipeline_mode = #tpu.pipeline_mode<synchronous>, transform_indices = @transform_5, window_bounds = array<i64: 128, 128>}, {pipeline_mode = #tpu.pipeline_mode<synchronous>, transform_indices = @transform_6, window_bounds = array<i64: 256, 128>}, {pipeline_mode = #tpu.pipeline_mode<synchronous>, transform_indices = @transform_7, window_bounds = array<i64: 128, 128>}, {pipeline_mode = #tpu.pipeline_mode<synchronous>, transform_indices = @transform_8, window_bounds = array<i64: 128, 128>}, {pipeline_mode = #tpu.pipeline_mode<synchronous>, transform_indices = @transform_9, window_bounds = array<i64: 1, 128>}, {pipeline_mode = #tpu.pipeline_mode<synchronous>, transform_indices = @transform_10, window_bounds = array<i64: 1, 128>}, {pipeline_mode = #tpu.pipeline_mode<synchronous>, transform_indices = @transform_11, window_bounds = array<i64: 1, 128>}, {pipeline_mode = #tpu.pipeline_mode<synchronous>, transform_indices = @transform_12, window_bounds = array<i64: 1, 128>}, {pipeline_mode = #tpu.pipeline_mode<synchronous>, transform_indices = @transform_13, window_bounds = array<i64: 1, 128>}, {pipeline_mode = #tpu.pipeline_mode<synchronous>, transform_indices = @transform_14, window_bounds = array<i64: 1, 128>}, {pipeline_mode = #tpu.pipeline_mode<synchronous>, transform_indices = @transform_15, window_bounds = array<i64: 1, 128>}, {pipeline_mode = #tpu.pipeline_mode<synchronous>, transform_indices = @transform_16, window_bounds = array<i64: 1, 128>}, {pipeline_mode = #tpu.pipeline_mode<synchronous>, transform_indices = @transform_17, window_bounds = array<i64: 128, 256>}, {pipeline_mode = #tpu.pipeline_mode<synchronous>, transform_indices = @transform_18, window_bounds = array<i64: 1, 256>}, {pipeline_mode = #tpu.pipeline_mode<synchronous>, transform_indices = @transform_19, window_bounds = array<i64: 256, 128>}, {pipeline_mode = #tpu.pipeline_mode<synchronous>, transform_indices = @transform_20, window_bounds = array<i64: 1, 128>}, {pipeline_mode = #tpu.pipeline_mode<synchronous>, transform_indices = @transform_21, window_bounds = array<i64: 128, 3>}, {pipeline_mode = #tpu.pipeline_mode<synchronous>, transform_indices = @transform_22, window_bounds = array<i64: 1, 3>}, {transform_indices = @transform_23, window_bounds = array<i64: 128, 4>}]} {
    %c0 = arith.constant 0 : index
    %c0_0 = arith.constant 0 : index
    %0 = vector.load %arg1[%c0, %c0_0] : memref<128x128xbf16, #tpu.memory_space<vmem>>, vector<128x128xbf16>
    %c0_1 = arith.constant 0 : index
    %c0_2 = arith.constant 0 : index
    %1 = vector.load %arg2[%c0_1, %c0_2] : memref<128x128xbf16, #tpu.memory_space<vmem>>, vector<128x128xbf16>
    %cst = arith.constant dense<0.000000e+00> : vector<128x128xf32>
    %2 = tpu.matmul %0, %1, %cst {dimension_numbers = #tpu.dot_dimension_numbers<[1], [0], [0], [1], [0, 0, 1, 1], [], []>} : vector<128x128xbf16>, vector<128x128xbf16>, vector<128x128xf32> -> vector<128x128xf32>
    %c0_3 = arith.constant 0 : index
    %c0_4 = arith.constant 0 : index
    %3 = vector.load %arg10[%c0_3, %c0_4] : memref<1x128xf32, #tpu.memory_space<vmem>>, vector<1x128xf32>
    %4 = vector.broadcast %3 : vector<1x128xf32> to vector<128x128xf32>
    %5 = arith.addf %2, %4 : vector<128x128xf32>
    %cst_5 = arith.constant 0.000000e+00 : f32
    %6 = vector.broadcast %cst_5 : f32 to vector<128x128xf32>
    %7 = arith.maximumf %5, %6 : vector<128x128xf32>
    %8 = arith.truncf %7 : vector<128x128xf32> to vector<128x128xbf16>
    %c0_6 = arith.constant 0 : index
    %c0_7 = arith.constant 0 : index
    %9 = vector.load %arg3[%c0_6, %c0_7] : memref<128x128xbf16, #tpu.memory_space<vmem>>, vector<128x128xbf16>
    %cst_8 = arith.constant dense<0.000000e+00> : vector<128x128xf32>
    %10 = tpu.matmul %8, %9, %cst_8 {dimension_numbers = #tpu.dot_dimension_numbers<[1], [0], [0], [1], [0, 0, 1, 1], [], []>} : vector<128x128xbf16>, vector<128x128xbf16>, vector<128x128xf32> -> vector<128x128xf32>
    %c0_9 = arith.constant 0 : index
    %c0_10 = arith.constant 0 : index
    %11 = vector.load %arg11[%c0_9, %c0_10] : memref<1x128xf32, #tpu.memory_space<vmem>>, vector<1x128xf32>
    %12 = vector.broadcast %11 : vector<1x128xf32> to vector<128x128xf32>
    %13 = arith.addf %10, %12 : vector<128x128xf32>
    %cst_11 = arith.constant 0.000000e+00 : f32
    %14 = vector.broadcast %cst_11 : f32 to vector<128x128xf32>
    %15 = arith.maximumf %13, %14 : vector<128x128xf32>
    %16 = arith.truncf %15 : vector<128x128xf32> to vector<128x128xbf16>
    %c0_12 = arith.constant 0 : index
    %c0_13 = arith.constant 0 : index
    %17 = vector.load %arg4[%c0_12, %c0_13] : memref<128x128xbf16, #tpu.memory_space<vmem>>, vector<128x128xbf16>
    %cst_14 = arith.constant dense<0.000000e+00> : vector<128x128xf32>
    %18 = tpu.matmul %16, %17, %cst_14 {dimension_numbers = #tpu.dot_dimension_numbers<[1], [0], [0], [1], [0, 0, 1, 1], [], []>} : vector<128x128xbf16>, vector<128x128xbf16>, vector<128x128xf32> -> vector<128x128xf32>
    %c0_15 = arith.constant 0 : index
    %c0_16 = arith.constant 0 : index
    %19 = vector.load %arg12[%c0_15, %c0_16] : memref<1x128xf32, #tpu.memory_space<vmem>>, vector<1x128xf32>
    %20 = vector.broadcast %19 : vector<1x128xf32> to vector<128x128xf32>
    %21 = arith.addf %18, %20 : vector<128x128xf32>
    %cst_17 = arith.constant 0.000000e+00 : f32
    %22 = vector.broadcast %cst_17 : f32 to vector<128x128xf32>
    %23 = arith.maximumf %21, %22 : vector<128x128xf32>
    %24 = arith.truncf %23 : vector<128x128xf32> to vector<128x128xbf16>
    %c0_18 = arith.constant 0 : index
    %c0_19 = arith.constant 0 : index
    %25 = vector.load %arg5[%c0_18, %c0_19] : memref<128x128xbf16, #tpu.memory_space<vmem>>, vector<128x128xbf16>
    %cst_20 = arith.constant dense<0.000000e+00> : vector<128x128xf32>
    %26 = tpu.matmul %24, %25, %cst_20 {dimension_numbers = #tpu.dot_dimension_numbers<[1], [0], [0], [1], [0, 0, 1, 1], [], []>} : vector<128x128xbf16>, vector<128x128xbf16>, vector<128x128xf32> -> vector<128x128xf32>
    %c0_21 = arith.constant 0 : index
    %c0_22 = arith.constant 0 : index
    %27 = vector.load %arg13[%c0_21, %c0_22] : memref<1x128xf32, #tpu.memory_space<vmem>>, vector<1x128xf32>
    %28 = vector.broadcast %27 : vector<1x128xf32> to vector<128x128xf32>
    %29 = arith.addf %26, %28 : vector<128x128xf32>
    %cst_23 = arith.constant 0.000000e+00 : f32
    %30 = vector.broadcast %cst_23 : f32 to vector<128x128xf32>
    %31 = arith.maximumf %29, %30 : vector<128x128xf32>
    %32 = arith.truncf %31 : vector<128x128xf32> to vector<128x128xbf16>
    %c0_24 = arith.constant 0 : index
    %c0_25 = arith.constant 0 : index
    %33 = vector.load %arg6[%c0_24, %c0_25] : memref<128x128xbf16, #tpu.memory_space<vmem>>, vector<128x128xbf16>
    %cst_26 = arith.constant dense<0.000000e+00> : vector<128x128xf32>
    %34 = tpu.matmul %32, %33, %cst_26 {dimension_numbers = #tpu.dot_dimension_numbers<[1], [0], [0], [1], [0, 0, 1, 1], [], []>} : vector<128x128xbf16>, vector<128x128xbf16>, vector<128x128xf32> -> vector<128x128xf32>
    %c0_27 = arith.constant 0 : index
    %c0_28 = arith.constant 0 : index
    %35 = vector.load %arg14[%c0_27, %c0_28] : memref<1x128xf32, #tpu.memory_space<vmem>>, vector<1x128xf32>
    %36 = vector.broadcast %35 : vector<1x128xf32> to vector<128x128xf32>
    %37 = arith.addf %34, %36 : vector<128x128xf32>
    %cst_29 = arith.constant 0.000000e+00 : f32
    %38 = vector.broadcast %cst_29 : f32 to vector<128x128xf32>
    %39 = arith.maximumf %37, %38 : vector<128x128xf32>
    %40 = arith.truncf %39 : vector<128x128xf32> to vector<128x128xbf16>
    %41 = tpu.concatenate %0, %40 in 1 : vector<128x128xbf16>, vector<128x128xbf16> -> vector<128x256xbf16>
    %c0_30 = arith.constant 0 : index
    %c0_31 = arith.constant 0 : index
    %42 = vector.load %arg7[%c0_30, %c0_31] : memref<256x128xbf16, #tpu.memory_space<vmem>>, vector<256x128xbf16>
    %cst_32 = arith.constant dense<0.000000e+00> : vector<128x128xf32>
    %43 = tpu.matmul %41, %42, %cst_32 {dimension_numbers = #tpu.dot_dimension_numbers<[1], [0], [0], [1], [0, 0, 1, 1], [], []>} : vector<128x256xbf16>, vector<256x128xbf16>, vector<128x128xf32> -> vector<128x128xf32>
    %c0_33 = arith.constant 0 : index
    %c0_34 = arith.constant 0 : index
    %44 = vector.load %arg15[%c0_33, %c0_34] : memref<1x128xf32, #tpu.memory_space<vmem>>, vector<1x128xf32>
    %45 = vector.broadcast %44 : vector<1x128xf32> to vector<128x128xf32>
    %46 = arith.addf %43, %45 : vector<128x128xf32>
    %cst_35 = arith.constant 0.000000e+00 : f32
    %47 = vector.broadcast %cst_35 : f32 to vector<128x128xf32>
    %48 = arith.maximumf %46, %47 : vector<128x128xf32>
    %49 = arith.truncf %48 : vector<128x128xf32> to vector<128x128xbf16>
    %c0_36 = arith.constant 0 : index
    %c0_37 = arith.constant 0 : index
    %50 = vector.load %arg8[%c0_36, %c0_37] : memref<128x128xbf16, #tpu.memory_space<vmem>>, vector<128x128xbf16>
    %cst_38 = arith.constant dense<0.000000e+00> : vector<128x128xf32>
    %51 = tpu.matmul %49, %50, %cst_38 {dimension_numbers = #tpu.dot_dimension_numbers<[1], [0], [0], [1], [0, 0, 1, 1], [], []>} : vector<128x128xbf16>, vector<128x128xbf16>, vector<128x128xf32> -> vector<128x128xf32>
    %c0_39 = arith.constant 0 : index
    %c0_40 = arith.constant 0 : index
    %52 = vector.load %arg16[%c0_39, %c0_40] : memref<1x128xf32, #tpu.memory_space<vmem>>, vector<1x128xf32>
    %53 = vector.broadcast %52 : vector<1x128xf32> to vector<128x128xf32>
    %54 = arith.addf %51, %53 : vector<128x128xf32>
    %cst_41 = arith.constant 0.000000e+00 : f32
    %55 = vector.broadcast %cst_41 : f32 to vector<128x128xf32>
    %56 = arith.maximumf %54, %55 : vector<128x128xf32>
    %57 = arith.truncf %56 : vector<128x128xf32> to vector<128x128xbf16>
    %c0_42 = arith.constant 0 : index
    %c0_43 = arith.constant 0 : index
    %58 = vector.load %arg9[%c0_42, %c0_43] : memref<128x128xbf16, #tpu.memory_space<vmem>>, vector<128x128xbf16>
    %cst_44 = arith.constant dense<0.000000e+00> : vector<128x128xf32>
    %59 = tpu.matmul %57, %58, %cst_44 {dimension_numbers = #tpu.dot_dimension_numbers<[1], [0], [0], [1], [0, 0, 1, 1], [], []>} : vector<128x128xbf16>, vector<128x128xbf16>, vector<128x128xf32> -> vector<128x128xf32>
    %c0_45 = arith.constant 0 : index
    %c0_46 = arith.constant 0 : index
    %60 = vector.load %arg17[%c0_45, %c0_46] : memref<1x128xf32, #tpu.memory_space<vmem>>, vector<1x128xf32>
    %61 = vector.broadcast %60 : vector<1x128xf32> to vector<128x128xf32>
    %62 = arith.addf %59, %61 : vector<128x128xf32>
    %cst_47 = arith.constant 0.000000e+00 : f32
    %63 = vector.broadcast %cst_47 : f32 to vector<128x128xf32>
    %64 = arith.maximumf %62, %63 : vector<128x128xf32>
    %65 = arith.truncf %64 : vector<128x128xf32> to vector<128x128xbf16>
    %c0_48 = arith.constant 0 : index
    %c0_49 = arith.constant 0 : index
    %66 = vector.load %arg18[%c0_48, %c0_49] : memref<128x256xbf16, #tpu.memory_space<vmem>>, vector<128x256xbf16>
    %cst_50 = arith.constant dense<0.000000e+00> : vector<128x256xf32>
    %67 = tpu.matmul %65, %66, %cst_50 {dimension_numbers = #tpu.dot_dimension_numbers<[1], [0], [0], [1], [0, 0, 1, 1], [], []>} : vector<128x128xbf16>, vector<128x256xbf16>, vector<128x256xf32> -> vector<128x256xf32>
    %c0_51 = arith.constant 0 : index
    %c0_52 = arith.constant 0 : index
    %68 = vector.load %arg19[%c0_51, %c0_52] : memref<1x256xf32, #tpu.memory_space<vmem>>, vector<1x256xf32>
    %69 = vector.broadcast %68 : vector<1x256xf32> to vector<128x256xf32>
    %70 = arith.addf %67, %69 : vector<128x256xf32>
    %71 = vector.extract_strided_slice %70 {offsets = [0, 0], sizes = [128, 128], strides = [1, 1]} : vector<128x256xf32> to vector<128x128xf32>
    %72 = arith.truncf %71 : vector<128x128xf32> to vector<128x128xbf16>
    %73 = vector.extract_strided_slice %70 {offsets = [0, 128], sizes = [128, 1], strides = [1, 1]} : vector<128x256xf32> to vector<128x1xf32>
    %74 = tpu.concatenate %72, %0 in 1 : vector<128x128xbf16>, vector<128x128xbf16> -> vector<128x256xbf16>
    %c0_53 = arith.constant 0 : index
    %c0_54 = arith.constant 0 : index
    %75 = vector.load %arg20[%c0_53, %c0_54] : memref<256x128xbf16, #tpu.memory_space<vmem>>, vector<256x128xbf16>
    %cst_55 = arith.constant dense<0.000000e+00> : vector<128x128xf32>
    %76 = tpu.matmul %74, %75, %cst_55 {dimension_numbers = #tpu.dot_dimension_numbers<[1], [0], [0], [1], [0, 0, 1, 1], [], []>} : vector<128x256xbf16>, vector<256x128xbf16>, vector<128x128xf32> -> vector<128x128xf32>
    %c0_56 = arith.constant 0 : index
    %c0_57 = arith.constant 0 : index
    %77 = vector.load %arg21[%c0_56, %c0_57] : memref<1x128xf32, #tpu.memory_space<vmem>>, vector<1x128xf32>
    %78 = vector.broadcast %77 : vector<1x128xf32> to vector<128x128xf32>
    %79 = arith.addf %76, %78 : vector<128x128xf32>
    %cst_58 = arith.constant 0.000000e+00 : f32
    %80 = vector.broadcast %cst_58 : f32 to vector<128x128xf32>
    %81 = arith.maximumf %79, %80 : vector<128x128xf32>
    %82 = arith.truncf %81 : vector<128x128xf32> to vector<128x128xbf16>
    %c0_59 = arith.constant 0 : index
    %c0_60 = arith.constant 0 : index
    %83 = vector.load %arg22[%c0_59, %c0_60] : memref<128x3xbf16, #tpu.memory_space<vmem>>, vector<128x3xbf16>
    %cst_61 = arith.constant dense<0.000000e+00> : vector<128x3xf32>
    %84 = tpu.matmul %82, %83, %cst_61 {dimension_numbers = #tpu.dot_dimension_numbers<[1], [0], [0], [1], [0, 0, 1, 1], [], []>} : vector<128x128xbf16>, vector<128x3xbf16>, vector<128x3xf32> -> vector<128x3xf32>
    %c0_62 = arith.constant 0 : index
    %c0_63 = arith.constant 0 : index
    %85 = vector.load %arg23[%c0_62, %c0_63] : memref<1x3xf32, #tpu.memory_space<vmem>>, vector<1x3xf32>
    %86 = vector.broadcast %85 : vector<1x3xf32> to vector<128x3xf32>
    %87 = arith.addf %84, %86 : vector<128x3xf32>
    %88 = arith.negf %87 : vector<128x3xf32>
    %89 = math.exp %88 : vector<128x3xf32>
    %cst_64 = arith.constant 1.000000e+00 : f32
    %90 = vector.broadcast %cst_64 : f32 to vector<128x3xf32>
    %91 = arith.addf %90, %89 : vector<128x3xf32>
    %92 = arith.divf %90, %91 : vector<128x3xf32>
    %93 = tpu.concatenate %92, %73 in 1 : vector<128x3xf32>, vector<128x1xf32> -> vector<128x4xf32>
    %c0_65 = arith.constant 0 : index
    %c0_66 = arith.constant 0 : index
    %94 = vector.load %arg24[%c0_65, %c0_66] : memref<128x4xf32, #tpu.memory_space<vmem>>, vector<128x4xf32>
    tpu.vector_store %arg24[%c0_65, %c0_66], %93 {strides = array<i32>} : memref<128x4xf32, #tpu.memory_space<vmem>>, vector<128x4xf32>,
    return
  }
  func.func @transform_0(%arg0: i32) -> (i32, i32) {
    %c0_i32 = arith.constant 0 : i32
    %c0_i32_0 = arith.constant 0 : i32
    return %arg0, %c0_i32 : i32, i32
  }
  func.func @transform_1(%arg0: i32) -> (i32, i32) {
    %c0_i32 = arith.constant 0 : i32
    %c0_i32_0 = arith.constant 0 : i32
    %c0_i32_1 = arith.constant 0 : i32
    return %c0_i32, %c0_i32_0 : i32, i32
  }
  func.func @transform_2(%arg0: i32) -> (i32, i32) {
    %c0_i32 = arith.constant 0 : i32
    %c0_i32_0 = arith.constant 0 : i32
    %c0_i32_1 = arith.constant 0 : i32
    return %c0_i32, %c0_i32_0 : i32, i32
  }
  func.func @transform_3(%arg0: i32) -> (i32, i32) {
    %c0_i32 = arith.constant 0 : i32
    %c0_i32_0 = arith.constant 0 : i32
    %c0_i32_1 = arith.constant 0 : i32
    return %c0_i32, %c0_i32_0 : i32, i32
  }
  func.func @transform_4(%arg0: i32) -> (i32, i32) {
    %c0_i32 = arith.constant 0 : i32
    %c0_i32_0 = arith.constant 0 : i32
    %c0_i32_1 = arith.constant 0 : i32
    return %c0_i32, %c0_i32_0 : i32, i32
  }
  func.func @transform_5(%arg0: i32) -> (i32, i32) {
    %c0_i32 = arith.constant 0 : i32
    %c0_i32_0 = arith.constant 0 : i32
    %c0_i32_1 = arith.constant 0 : i32
    return %c0_i32, %c0_i32_0 : i32, i32
  }
  func.func @transform_6(%arg0: i32) -> (i32, i32) {
    %c0_i32 = arith.constant 0 : i32
    %c0_i32_0 = arith.constant 0 : i32
    %c0_i32_1 = arith.constant 0 : i32
    return %c0_i32, %c0_i32_0 : i32, i32
  }
  func.func @transform_7(%arg0: i32) -> (i32, i32) {
    %c0_i32 = arith.constant 0 : i32
    %c0_i32_0 = arith.constant 0 : i32
    %c0_i32_1 = arith.constant 0 : i32
    return %c0_i32, %c0_i32_0 : i32, i32
  }
  func.func @transform_8(%arg0: i32) -> (i32, i32) {
    %c0_i32 = arith.constant 0 : i32
    %c0_i32_0 = arith.constant 0 : i32
    %c0_i32_1 = arith.constant 0 : i32
    return %c0_i32, %c0_i32_0 : i32, i32
  }
  func.func @transform_9(%arg0: i32) -> (i32, i32) {
    %c0_i32 = arith.constant 0 : i32
    %c0_i32_0 = arith.constant 0 : i32
    %c0_i32_1 = arith.constant 0 : i32
    return %c0_i32, %c0_i32_0 : i32, i32
  }
  func.func @transform_10(%arg0: i32) -> (i32, i32) {
    %c0_i32 = arith.constant 0 : i32
    %c0_i32_0 = arith.constant 0 : i32
    %c0_i32_1 = arith.constant 0 : i32
    return %c0_i32, %c0_i32_0 : i32, i32
  }
  func.func @transform_11(%arg0: i32) -> (i32, i32) {
    %c0_i32 = arith.constant 0 : i32
    %c0_i32_0 = arith.constant 0 : i32
    %c0_i32_1 = arith.constant 0 : i32
    return %c0_i32, %c0_i32_0 : i32, i32
  }
  func.func @transform_12(%arg0: i32) -> (i32, i32) {
    %c0_i32 = arith.constant 0 : i32
    %c0_i32_0 = arith.constant 0 : i32
    %c0_i32_1 = arith.constant 0 : i32
    return %c0_i32, %c0_i32_0 : i32, i32
  }
  func.func @transform_13(%arg0: i32) -> (i32, i32) {
    %c0_i32 = arith.constant 0 : i32
    %c0_i32_0 = arith.constant 0 : i32
    %c0_i32_1 = arith.constant 0 : i32
    return %c0_i32, %c0_i32_0 : i32, i32
  }
  func.func @transform_14(%arg0: i32) -> (i32, i32) {
    %c0_i32 = arith.constant 0 : i32
    %c0_i32_0 = arith.constant 0 : i32
    %c0_i32_1 = arith.constant 0 : i32
    return %c0_i32, %c0_i32_0 : i32, i32
  }
  func.func @transform_15(%arg0: i32) -> (i32, i32) {
    %c0_i32 = arith.constant 0 : i32
    %c0_i32_0 = arith.constant 0 : i32
    %c0_i32_1 = arith.constant 0 : i32
    return %c0_i32, %c0_i32_0 : i32, i32
  }
  func.func @transform_16(%arg0: i32) -> (i32, i32) {
    %c0_i32 = arith.constant 0 : i32
    %c0_i32_0 = arith.constant 0 : i32
    %c0_i32_1 = arith.constant 0 : i32
    return %c0_i32, %c0_i32_0 : i32, i32
  }
  func.func @transform_17(%arg0: i32) -> (i32, i32) {
    %c0_i32 = arith.constant 0 : i32
    %c0_i32_0 = arith.constant 0 : i32
    %c0_i32_1 = arith.constant 0 : i32
    return %c0_i32, %c0_i32_0 : i32, i32
  }
  func.func @transform_18(%arg0: i32) -> (i32, i32) {
    %c0_i32 = arith.constant 0 : i32
    %c0_i32_0 = arith.constant 0 : i32
    %c0_i32_1 = arith.constant 0 : i32
    return %c0_i32, %c0_i32_0 : i32, i32
  }
  func.func @transform_19(%arg0: i32) -> (i32, i32) {
    %c0_i32 = arith.constant 0 : i32
    %c0_i32_0 = arith.constant 0 : i32
    %c0_i32_1 = arith.constant 0 : i32
    return %c0_i32, %c0_i32_0 : i32, i32
  }
  func.func @transform_20(%arg0: i32) -> (i32, i32) {
    %c0_i32 = arith.constant 0 : i32
    %c0_i32_0 = arith.constant 0 : i32
    %c0_i32_1 = arith.constant 0 : i32
    return %c0_i32, %c0_i32_0 : i32, i32
  }
  func.func @transform_21(%arg0: i32) -> (i32, i32) {
    %c0_i32 = arith.constant 0 : i32
    %c0_i32_0 = arith.constant 0 : i32
    %c0_i32_1 = arith.constant 0 : i32
    return %c0_i32, %c0_i32_0 : i32, i32
  }
  func.func @transform_22(%arg0: i32) -> (i32, i32) {
    %c0_i32 = arith.constant 0 : i32
    %c0_i32_0 = arith.constant 0 : i32
    %c0_i32_1 = arith.constant 0 : i32
    return %c0_i32, %c0_i32_0 : i32, i32
  }
  func.func @transform_23(%arg0: i32) -> (i32, i32) {
    %c0_i32 = arith.constant 0 : i32
    %c0_i32_0 = arith.constant 0 : i32
    return %arg0, %c0_i32 : i32, i32
  }
}

</mosaic_0001>

<llo_original>
// kernel: mul.21
$region0: #{mul.21}
  %s0 = inlined_call_operand.vmem [shape: f32[6,2], index: 0, kind: input, shape index: {}]
  %s1 = inlined_call_operand.vmem [shape: f32[12], index: 1, kind: output, shape index: {}]
  $region1: #{mul.21} parent=0
    #allocation0 [shape = 'u8[4096]{0}', space=vmem, size = 0x1000, scoped, tag = 'scoped mem for output reshape']
    %v2 = vld [vmem:[%s0] sm:$0x1]
    %vm3 = vcmask 15360
    %4 = vst.msk [vmem:[#allocation0] sm:$0x1] %vm3, %v2
    %s5 = scalar_lea.vmem %s0, 5
    %v6 = vld [vmem:[%s5] sm:$0x1]
    %7 = vrot.lane.b32.xlu0 %v6, 10
    %v8 = vpop.permute.xlu0 %7
    %vm9 = vcmask 97360
    %10 = vst.msk [vmem:[#allocation0] sm:$0x1] %vm9, %v8
    %s11 = scalar_lea.vmem %s0, 4
    %v12 = vld [vmem:[%s11] sm:$0x1]
    %13 = vrot.lane.b32.xlu0 %v12, 8
    %v14 = vpop.permute.xlu0 %13
    %vm15 = vcmask 80960
    %16 = vst.msk [vmem:[#allocation0] sm:$0x1] %vm15, %v14
    %s17 = scalar_lea.vmem %s0, 3
    %v18 = vld [vmem:[%s17] sm:$0x1]
    %19 = vrot.lane.b32.xlu0 %v18, 6
    %v20 = vpop.permute.xlu0 %19
    %vm21 = vcmask 64560
    %22 = vst.msk [vmem:[#allocation0] sm:$0x1] %vm21, %v20
    %s23 = scalar_lea.vmem %s0, 2
    %v24 = vld [vmem:[%s23] sm:$0x1]
    %25 = vrot.lane.b32.xlu0 %v24, 4
    %v26 = vpop.permute.xlu0 %25
    %vm27 = vcmask 48160
    %28 = vst.msk [vmem:[#allocation0] sm:$0x1] %vm27, %v26
    %s29 = scalar_lea.vmem %s0, 1
    %v30 = vld [vmem:[%s29] sm:$0x1]
    %31 = vrot.lane.b32.xlu0 %v30, 2
    %v32 = vpop.permute.xlu0 %31
    %vm33 = vcmask 31760
    %34 = vst.msk [vmem:[#allocation0] sm:$0x1] %vm33, %v32
    %s36 = sshllo.u32 0, 1
    %v38 = vld [vmem:[#allocation0] sm:%s36]
    %s39 = sshllo.u32 0, 1
    %40 = vst [vmem:[%s1] sm:%s39] %v38

// kernel: mul.29
$region0: #{mul.29}
  %s0 = inlined_call_operand.vmem [shape: f32[4,2], index: 0, kind: input, shape index: {}]
  %s1 = inlined_call_operand.vmem [shape: f32[8], index: 1, kind: output, shape index: {}]
  $region1: #{mul.29} parent=0
    #allocation0 [shape = 'u8[4096]{0}', space=vmem, size = 0x1000, scoped, tag = 'scoped mem for output reshape']
    #allocation1 [shape = 'u8[4096]{0}', space=vmem, size = 0x1000, scoped, tag = 'scoped mem for input reshape']
    %s3 = sshllo.u32 0, 4
    %v4 = vld [vmem:[%s0] sm:%s3]
    %5 = vst [vmem:[#allocation1] sm:%s3] %v4
    %v6 = vld [vmem:[#allocation1] sm:$0x1]
    %vm7 = vcmask 15360
    %8 = vst.msk [vmem:[#allocation0] sm:$0x1] %vm7, %v6
    %s9 = scalar_lea.vmem [#allocation1], 3
    %v10 = vld [vmem:[%s9] sm:$0x1]
    %11 = vrot.lane.b32.xlu0 %v10, 6
    %v12 = vpop.permute.xlu0 %11
    %vm13 = vcmask 64560
    %14 = vst.msk [vmem:[#allocation0] sm:$0x1] %vm13, %v12
    %s15 = scalar_lea.vmem [#allocation1], 2
    %v16 = vld [vmem:[%s15] sm:$0x1]
    %17 = vrot.lane.b32.xlu0 %v16, 4
    %v18 = vpop.permute.xlu0 %17
    %vm19 = vcmask 48160
    %20 = vst.msk [vmem:[#allocation0] sm:$0x1] %vm19, %v18
    %s21 = scalar_lea.vmem [#allocation1], 1
    %v22 = vld [vmem:[%s21] sm:$0x1]
    %23 = vrot.lane.b32.xlu0 %v22, 2
    %v24 = vpop.permute.xlu0 %23
    %vm25 = vcmask 31760
    %26 = vst.msk [vmem:[#allocation0] sm:$0x1] %vm25, %v24
    %s28 = sshllo.u32 0, 1
    %v30 = vld [vmem:[#allocation0] sm:%s28]
    %s31 = sshllo.u32 0, 1
    %32 = vst [vmem:[%s1] sm:%s31] %v30

// kernel: nerf_decoder_pallas.1
$region0: #{nerf_decoder_pallas.1}
  #allocation0 [shape = 'u32[]', space=smem, size = 0x4, offset = 0x4, fixed_abs, tag = 'smem constant byte address 0x4 - core index']
  #allocation1 [shape = 'u32[144,128]{1,0:T(1,128)}', space=vmem, size = 0x12000, scoped, tag = 'internal scratch']
  %s0 = inlined_call_operand.vmem [shape: bf16[256,128], index: 0, kind: input, shape index: {}]
  %s1 = inlined_call_operand.vmem [shape: bf16[128,128], index: 1, kind: input, shape index: {}]
  %s2 = inlined_call_operand.vmem [shape: bf16[128,128], index: 2, kind: input, shape index: {}]
  %s3 = inlined_call_operand.vmem [shape: bf16[128,128], index: 3, kind: input, shape index: {}]
  %s4 = inlined_call_operand.vmem [shape: bf16[128,128], index: 4, kind: input, shape index: {}]
  %s5 = inlined_call_operand.vmem [shape: bf16[128,128], index: 5, kind: input, shape index: {}]
  %s6 = inlined_call_operand.vmem [shape: bf16[256,128], index: 6, kind: input, shape index: {}]
  %s7 = inlined_call_operand.vmem [shape: bf16[128,128], index: 7, kind: input, shape index: {}]
  %s8 = inlined_call_operand.vmem [shape: bf16[128,128], index: 8, kind: input, shape index: {}]
  %s9 = inlined_call_operand.vmem [shape: f32[1,128], index: 9, kind: input, shape index: {}]
  %s10 = inlined_call_operand.vmem [shape: f32[1,128], index: 10, kind: input, shape index: {}]
  %s11 = inlined_call_operand.vmem [shape: f32[1,128], index: 11, kind: input, shape index: {}]
  %s12 = inlined_call_operand.vmem [shape: f32[1,128], index: 12, kind: input, shape index: {}]
  %s13 = inlined_call_operand.vmem [shape: f32[1,128], index: 13, kind: input, shape index: {}]
  %s14 = inlined_call_operand.vmem [shape: f32[1,128], index: 14, kind: input, shape index: {}]
  %s15 = inlined_call_operand.vmem [shape: f32[1,128], index: 15, kind: input, shape index: {}]
  %s16 = inlined_call_operand.vmem [shape: f32[1,128], index: 16, kind: input, shape index: {}]
  %s17 = inlined_call_operand.vmem [shape: bf16[128,256], index: 17, kind: input, shape index: {}]
  %s18 = inlined_call_operand.vmem [shape: f32[1,256], index: 18, kind: input, shape index: {}]
  %s19 = inlined_call_operand.vmem [shape: bf16[256,128], index: 19, kind: input, shape index: {}]
  %s20 = inlined_call_operand.vmem [shape: f32[1,128], index: 20, kind: input, shape index: {}]
  %s21 = inlined_call_operand.vmem [shape: bf16[128,3], index: 21, kind: input, shape index: {}]
  %s22 = inlined_call_operand.vmem [shape: f32[1,3], index: 22, kind: input, shape index: {}]
  %s23 = inlined_call_operand.vmem [shape: f32[256,4], index: 23, kind: output, shape index: {}]
  %s24 = sld [smem:[#allocation0]]
  $region125: #{nerf_decoder_pallas.1} parent=0
    _
  %s26 = ssub.s32 1, %s24
  %s27 = scalar_select 0, %s26, %s24
  loop: start=0, step=1, limit=4
  $region2: #{nerf_decoder_pallas.1} parent=0 // loop_pre_header
    _
  $region3: #{nerf_decoder_pallas.1} parent=0 // loop_header
    %s29 = sphi 0, %s33
    %p30 = scmp.ge.s32.totalorder %s29, 4
    %s39 = sphi 0, %s41
    %s42 = sphi 0, %s39
    %s43 = sphi 0, %s42
    %s59 = sphi 0, %s43
    %s63 = sphi 0, %s63
    %s65 = sphi 0, %s63
    %s66 = sphi 0, %s65
    %s80 = sphi 0, %s66
    %s84 = sphi 0, %s84
    %s86 = sphi 0, %s84
    %s87 = sphi 0, %s86
    %s101 = sphi 0, %s87
    %s105 = sphi 0, %s105
    %s107 = sphi 0, %s105
    %s108 = sphi 0, %s107
    %s122 = sphi 0, %s108
    %s126 = sphi 0, %s126
    %s128 = sphi 0, %s126
    %s129 = sphi 0, %s128
    %s143 = sphi 0, %s129
    %s147 = sphi 0, %s147
    %s149 = sphi 0, %s147
    %s150 = sphi 0, %s149
    %s164 = sphi 0, %s150
    %s168 = sphi 0, %s168
    %s170 = sphi 0, %s168
    %s171 = sphi 0, %s170
    %s185 = sphi 0, %s171
    %s189 = sphi 0, %s189
    %s191 = sphi 0, %s189
    %s192 = sphi 0, %s191
    %s206 = sphi 0, %s192
    %s210 = sphi 0, %s210
    %s212 = sphi 0, %s210
    %s213 = sphi 0, %s212
    %s227 = sphi 0, %s213
    %s231 = sphi 0, %s231
    %s233 = sphi 0, %s231
    %s234 = sphi 0, %s233
    %s248 = sphi 0, %s234
    %s252 = sphi 0, %s252
    %s254 = sphi 0, %s252
    %s255 = sphi 0, %s254
    %s269 = sphi 0, %s255
    %s273 = sphi 0, %s273
    %s275 = sphi 0, %s273
    %s276 = sphi 0, %s275
    %s290 = sphi 0, %s276
    %s294 = sphi 0, %s294
    %s296 = sphi 0, %s294
    %s297 = sphi 0, %s296
    %s311 = sphi 0, %s297
    %s315 = sphi 0, %s315
    %s317 = sphi 0, %s315
    %s318 = sphi 0, %s317
    %s332 = sphi 0, %s318
    %s336 = sphi 0, %s336
    %s338 = sphi 0, %s336
    %s339 = sphi 0, %s338
    %s353 = sphi 0, %s339
    %s357 = sphi 0, %s357
    %s359 = sphi 0, %s357
    %s360 = sphi 0, %s359
    %s374 = sphi 0, %s360
    %s378 = sphi 0, %s378
    %s380 = sphi 0, %s378
    %s381 = sphi 0, %s380
    %s395 = sphi 0, %s381
    %s399 = sphi 0, %s399
    %s401 = sphi 0, %s399
    %s402 = sphi 0, %s401
    %s416 = sphi 0, %s402
    %s420 = sphi 0, %s420
    %s422 = sphi 0, %s420
    %s423 = sphi 0, %s422
    %s437 = sphi 0, %s423
    %s441 = sphi 0, %s441
    %s443 = sphi 0, %s441
    %s444 = sphi 0, %s443
    %s458 = sphi 0, %s444
    %s462 = sphi 0, %s462
    %s464 = sphi 0, %s462
    %s465 = sphi 0, %s464
    %s479 = sphi 0, %s465
    %s483 = sphi 0, %s483
    %s485 = sphi 0, %s483
    %s486 = sphi 0, %s485
    %s500 = sphi 0, %s486
    %s504 = sphi 0, %s504
    %s506 = sphi 0, %s504
    %s507 = sphi 0, %s506
    %s521 = sphi 0, %s507
    %s527 = sphi 0, %s529
    %s530 = sphi 0, %s527
    %s531 = sphi 0, %s530
    %s547 = sphi 0, %s531
  $region4: #{nerf_decoder_pallas.1} parent=0 // loop_header_branch
    %32 = sbr.rel (%p30) target = $region8
  $region5: #{nerf_decoder_pallas.1} parent=0 // loop_body
    %s34 = ssub.s32 %s29, 1
    %s35 = ssub.s32 %s29, 2
    %s36 = sadd.s32 %s29, 1
    %s37 = ssub.s32 %s29, %s36
    %p38 = scmp.eq.s32.totalorder %s37, 0
    %s40 = sadd.s32 %s39, 1
    %s41 = scalar_select %p38, %s39, %s40
    %p44 = pneg %p38
    %p45 = scmp.eq.s32.totalorder %s29, 1
    %p46 = por %p44, %p45
    %p47 = scmp.ne.s32.totalorder %s39, %s42
    %p48 = scmp.eq.s32.totalorder %s29, 0
    %p49 = por %p47, %p48
    %p50 = scmp.ne.s32.totalorder %s39, %s42
    %p51 = scmp.eq.s32.totalorder %s34, 1
    %p52 = por %p50, %p51
    %p53 = scmp.ne.s32.totalorder %s42, %s43
    %p54 = scmp.eq.s32.totalorder %s34, 0
    %p55 = por %p53, %p54
    %p56 = scmp.ne.s32.totalorder %s42, %s43
    %p57 = scmp.eq.s32.totalorder %s35, 1
    %p58 = por %p56, %p57
    %p60 = scmp.ne.s32.totalorder %s43, %s59
    %p61 = scmp.eq.s32.totalorder %s35, 0
    %p62 = por %p60, %p61
    %s64 = sadd.s32 %s63, 1
    %p67 = scmp.eq.s32.totalorder %s29, 1
    %p68 = scmp.ne.s32.totalorder %s63, %s65
    %p69 = scmp.eq.s32.totalorder %s29, 0
    %p70 = por %p68, %p69
    %p71 = scmp.ne.s32.totalorder %s63, %s65
    %p72 = scmp.eq.s32.totalorder %s34, 1
    %p73 = por %p71, %p72
    %p74 = scmp.ne.s32.totalorder %s65, %s66
    %p75 = scmp.eq.s32.totalorder %s34, 0
    %p76 = por %p74, %p75
    %p77 = scmp.ne.s32.totalorder %s65, %s66
    %p78 = scmp.eq.s32.totalorder %s35, 1
    %p79 = por %p77, %p78
    %p81 = scmp.ne.s32.totalorder %s66, %s80
    %p82 = scmp.eq.s32.totalorder %s35, 0
    %p83 = por %p81, %p82
    %s85 = sadd.s32 %s84, 1
    %p88 = scmp.eq.s32.totalorder %s29, 1
    %p89 = scmp.ne.s32.totalorder %s84, %s86
    %p90 = scmp.eq.s32.totalorder %s29, 0
    %p91 = por %p89, %p90
    %p92 = scmp.ne.s32.totalorder %s84, %s86
    %p93 = scmp.eq.s32.totalorder %s34, 1
    %p94 = por %p92, %p93
    %p95 = scmp.ne.s32.totalorder %s86, %s87
    %p96 = scmp.eq.s32.totalorder %s34, 0
    %p97 = por %p95, %p96
    %p98 = scmp.ne.s32.totalorder %s86, %s87
    %p99 = scmp.eq.s32.totalorder %s35, 1
    %p100 = por %p98, %p99
    %p102 = scmp.ne.s32.totalorder %s87, %s101
    %p103 = scmp.eq.s32.totalorder %s35, 0
    %p104 = por %p102, %p103
    %s106 = sadd.s32 %s105, 1
    %p109 = scmp.eq.s32.totalorder %s29, 1
    %p110 = scmp.ne.s32.totalorder %s105, %s107
    %p111 = scmp.eq.s32.totalorder %s29, 0
    %p112 = por %p110, %p111
    %p113 = scmp.ne.s32.totalorder %s105, %s107
    %p114 = scmp.eq.s32.totalorder %s34, 1
    %p115 = por %p113, %p114
    %p116 = scmp.ne.s32.totalorder %s107, %s108
    %p117 = scmp.eq.s32.totalorder %s34, 0
    %p118 = por %p116, %p117
    %p119 = scmp.ne.s32.totalorder %s107, %s108
    %p120 = scmp.eq.s32.totalorder %s35, 1
    %p121 = por %p119, %p120
    %p123 = scmp.ne.s32.totalorder %s108, %s122
    %p124 = scmp.eq.s32.totalorder %s35, 0
    %p125 = por %p123, %p124
    %s127 = sadd.s32 %s126, 1
    %p130 = scmp.eq.s32.totalorder %s29, 1
    %p131 = scmp.ne.s32.totalorder %s126, %s128
    %p132 = scmp.eq.s32.totalorder %s29, 0
    %p133 = por %p131, %p132
    %p134 = scmp.ne.s32.totalorder %s126, %s128
    %p135 = scmp.eq.s32.totalorder %s34, 1
    %p136 = por %p134, %p135
    %p137 = scmp.ne.s32.totalorder %s128, %s129
    %p138 = scmp.eq.s32.totalorder %s34, 0
    %p139 = por %p137, %p138
    %p140 = scmp.ne.s32.totalorder %s128, %s129
    %p141 = scmp.eq.s32.totalorder %s35, 1
    %p142 = por %p140, %p141
    %p144 = scmp.ne.s32.totalorder %s129, %s143
    %p145 = scmp.eq.s32.totalorder %s35, 0
    %p146 = por %p144, %p145
    %s148 = sadd.s32 %s147, 1
    %p151 = scmp.eq.s32.totalorder %s29, 1
    %p152 = scmp.ne.s32.totalorder %s147, %s149
    %p153 = scmp.eq.s32.totalorder %s29, 0
    %p154 = por %p152, %p153
    %p155 = scmp.ne.s32.totalorder %s147, %s149
    %p156 = scmp.eq.s32.totalorder %s34, 1
    %p157 = por %p155, %p156
    %p158 = scmp.ne.s32.totalorder %s149, %s150
    %p159 = scmp.eq.s32.totalorder %s34, 0
    %p160 = por %p158, %p159
    %p161 = scmp.ne.s32.totalorder %s149, %s150
    %p162 = scmp.eq.s32.totalorder %s35, 1
    %p163 = por %p161, %p162
    %p165 = scmp.ne.s32.totalorder %s150, %s164
    %p166 = scmp.eq.s32.totalorder %s35, 0
    %p167 = por %p165, %p166
    %s169 = sadd.s32 %s168, 1
    %p172 = scmp.eq.s32.totalorder %s29, 1
    %p173 = scmp.ne.s32.totalorder %s168, %s170
    %p174 = scmp.eq.s32.totalorder %s29, 0
    %p175 = por %p173, %p174
    %p176 = scmp.ne.s32.totalorder %s168, %s170
    %p177 = scmp.eq.s32.totalorder %s34, 1
    %p178 = por %p176, %p177
    %p179 = scmp.ne.s32.totalorder %s170, %s171
    %p180 = scmp.eq.s32.totalorder %s34, 0
    %p181 = por %p179, %p180
    %p182 = scmp.ne.s32.totalorder %s170, %s171
    %p183 = scmp.eq.s32.totalorder %s35, 1
    %p184 = por %p182, %p183
    %p186 = scmp.ne.s32.totalorder %s171, %s185
    %p187 = scmp.eq.s32.totalorder %s35, 0
    %p188 = por %p186, %p187
    %s190 = sadd.s32 %s189, 1
    %p193 = scmp.eq.s32.totalorder %s29, 1
    %p194 = scmp.ne.s32.totalorder %s189, %s191
    %p195 = scmp.eq.s32.totalorder %s29, 0
    %p196 = por %p194, %p195
    %p197 = scmp.ne.s32.totalorder %s189, %s191
    %p198 = scmp.eq.s32.totalorder %s34, 1
    %p199 = por %p197, %p198
    %p200 = scmp.ne.s32.totalorder %s191, %s192
    %p201 = scmp.eq.s32.totalorder %s34, 0
    %p202 = por %p200, %p201
    %p203 = scmp.ne.s32.totalorder %s191, %s192
    %p204 = scmp.eq.s32.totalorder %s35, 1
    %p205 = por %p203, %p204
    %p207 = scmp.ne.s32.totalorder %s192, %s206
    %p208 = scmp.eq.s32.totalorder %s35, 0
    %p209 = por %p207, %p208
    %s211 = sadd.s32 %s210, 1
    %p214 = scmp.eq.s32.totalorder %s29, 1
    %p215 = scmp.ne.s32.totalorder %s210, %s212
    %p216 = scmp.eq.s32.totalorder %s29, 0
    %p217 = por %p215, %p216
    %p218 = scmp.ne.s32.totalorder %s210, %s212
    %p219 = scmp.eq.s32.totalorder %s34, 1
    %p220 = por %p218, %p219
    %p221 = scmp.ne.s32.totalorder %s212, %s213
    %p222 = scmp.eq.s32.totalorder %s34, 0
    %p223 = por %p221, %p222
    %p224 = scmp.ne.s32.totalorder %s212, %s213
    %p225 = scmp.eq.s32.totalorder %s35, 1
    %p226 = por %p224, %p225
    %p228 = scmp.ne.s32.totalorder %s213, %s227
    %p229 = scmp.eq.s32.totalorder %s35, 0
    %p230 = por %p228, %p229
    %s232 = sadd.s32 %s231, 1
    %p235 = scmp.eq.s32.totalorder %s29, 1
    %p236 = scmp.ne.s32.totalorder %s231, %s233
    %p237 = scmp.eq.s32.totalorder %s29, 0
    %p238 = por %p236, %p237
    %p239 = scmp.ne.s32.totalorder %s231, %s233
    %p240 = scmp.eq.s32.totalorder %s34, 1
    %p241 = por %p239, %p240
    %p242 = scmp.ne.s32.totalorder %s233, %s234
    %p243 = scmp.eq.s32.totalorder %s34, 0
    %p244 = por %p242, %p243
    %p245 = scmp.ne.s32.totalorder %s233, %s234
    %p246 = scmp.eq.s32.totalorder %s35, 1
    %p247 = por %p245, %p246
    %p249 = scmp.ne.s32.totalorder %s234, %s248
    %p250 = scmp.eq.s32.totalorder %s35, 0
    %p251 = por %p249, %p250
    %s253 = sadd.s32 %s252, 1
    %p256 = scmp.eq.s32.totalorder %s29, 1
    %p257 = scmp.ne.s32.totalorder %s252, %s254
    %p258 = scmp.eq.s32.totalorder %s29, 0
    %p259 = por %p257, %p258
    %p260 = scmp.ne.s32.totalorder %s252, %s254
    %p261 = scmp.eq.s32.totalorder %s34, 1
    %p262 = por %p260, %p261
    %p263 = scmp.ne.s32.totalorder %s254, %s255
    %p264 = scmp.eq.s32.totalorder %s34, 0
    %p265 = por %p263, %p264
    %p266 = scmp.ne.s32.totalorder %s254, %s255
    %p267 = scmp.eq.s32.totalorder %s35, 1
    %p268 = por %p266, %p267
    %p270 = scmp.ne.s32.totalorder %s255, %s269
    %p271 = scmp.eq.s32.totalorder %s35, 0
    %p272 = por %p270, %p271
    %s274 = sadd.s32 %s273, 1
    %p277 = scmp.eq.s32.totalorder %s29, 1
    %p278 = scmp.ne.s32.totalorder %s273, %s275
    %p279 = scmp.eq.s32.totalorder %s29, 0
    %p280 = por %p278, %p279
    %p281 = scmp.ne.s32.totalorder %s273, %s275
    %p282 = scmp.eq.s32.totalorder %s34, 1
    %p283 = por %p281, %p282
    %p284 = scmp.ne.s32.totalorder %s275, %s276
    %p285 = scmp.eq.s32.totalorder %s34, 0
    %p286 = por %p284, %p285
    %p287 = scmp.ne.s32.totalorder %s275, %s276
    %p288 = scmp.eq.s32.totalorder %s35, 1
    %p289 = por %p287, %p288
    %p291 = scmp.ne.s32.totalorder %s276, %s290
    %p292 = scmp.eq.s32.totalorder %s35, 0
    %p293 = por %p291, %p292
    %s295 = sadd.s32 %s294, 1
    %p298 = scmp.eq.s32.totalorder %s29, 1
    %p299 = scmp.ne.s32.totalorder %s294, %s296
    %p300 = scmp.eq.s32.totalorder %s29, 0
    %p301 = por %p299, %p300
    %p302 = scmp.ne.s32.totalorder %s294, %s296
    %p303 = scmp.eq.s32.totalorder %s34, 1
    %p304 = por %p302, %p303
    %p305 = scmp.ne.s32.totalorder %s296, %s297
    %p306 = scmp.eq.s32.totalorder %s34, 0
    %p307 = por %p305, %p306
    %p308 = scmp.ne.s32.totalorder %s296, %s297
    %p309 = scmp.eq.s32.totalorder %s35, 1
    %p310 = por %p308, %p309
    %p312 = scmp.ne.s32.totalorder %s297, %s311
    %p313 = scmp.eq.s32.totalorder %s35, 0
    %p314 = por %p312, %p313
    %s316 = sadd.s32 %s315, 1
    %p319 = scmp.eq.s32.totalorder %s29, 1
    %p320 = scmp.ne.s32.totalorder %s315, %s317
    %p321 = scmp.eq.s32.totalorder %s29, 0
    %p322 = por %p320, %p321
    %p323 = scmp.ne.s32.totalorder %s315, %s317
    %p324 = scmp.eq.s32.totalorder %s34, 1
    %p325 = por %p323, %p324
    %p326 = scmp.ne.s32.totalorder %s317, %s318
    %p327 = scmp.eq.s32.totalorder %s34, 0
    %p328 = por %p326, %p327
    %p329 = scmp.ne.s32.totalorder %s317, %s318
    %p330 = scmp.eq.s32.totalorder %s35, 1
    %p331 = por %p329, %p330
    %p333 = scmp.ne.s32.totalorder %s318, %s332
    %p334 = scmp.eq.s32.totalorder %s35, 0
    %p335 = por %p333, %p334
    %s337 = sadd.s32 %s336, 1
    %p340 = scmp.eq.s32.totalorder %s29, 1
    %p341 = scmp.ne.s32.totalorder %s336, %s338
    %p342 = scmp.eq.s32.totalorder %s29, 0
    %p343 = por %p341, %p342
    %p344 = scmp.ne.s32.totalorder %s336, %s338
    %p345 = scmp.eq.s32.totalorder %s34, 1
    %p346 = por %p344, %p345
    %p347 = scmp.ne.s32.totalorder %s338, %s339
    %p348 = scmp.eq.s32.totalorder %s34, 0
    %p349 = por %p347, %p348
    %p350 = scmp.ne.s32.totalorder %s338, %s339
    %p351 = scmp.eq.s32.totalorder %s35, 1
    %p352 = por %p350, %p351
    %p354 = scmp.ne.s32.totalorder %s339, %s353
    %p355 = scmp.eq.s32.totalorder %s35, 0
    %p356 = por %p354, %p355
    %s358 = sadd.s32 %s357, 1
    %p361 = scmp.eq.s32.totalorder %s29, 1
    %p362 = scmp.ne.s32.totalorder %s357, %s359
    %p363 = scmp.eq.s32.totalorder %s29, 0
    %p364 = por %p362, %p363
    %p365 = scmp.ne.s32.totalorder %s357, %s359
    %p366 = scmp.eq.s32.totalorder %s34, 1
    %p367 = por %p365, %p366
    %p368 = scmp.ne.s32.totalorder %s359, %s360
    %p369 = scmp.eq.s32.totalorder %s34, 0
    %p370 = por %p368, %p369
    %p371 = scmp.ne.s32.totalorder %s359, %s360
    %p372 = scmp.eq.s32.totalorder %s35, 1
    %p373 = por %p371, %p372
    %p375 = scmp.ne.s32.totalorder %s360, %s374
    %p376 = scmp.eq.s32.totalorder %s35, 0
    %p377 = por %p375, %p376
    %s379 = sadd.s32 %s378, 1
    %p382 = scmp.eq.s32.totalorder %s29, 1
    %p383 = scmp.ne.s32.totalorder %s378, %s380
    %p384 = scmp.eq.s32.totalorder %s29, 0
    %p385 = por %p383, %p384
    %p386 = scmp.ne.s32.totalorder %s378, %s380
    %p387 = scmp.eq.s32.totalorder %s34, 1
    %p388 = por %p386, %p387
    %p389 = scmp.ne.s32.totalorder %s380, %s381
    %p390 = scmp.eq.s32.totalorder %s34, 0
    %p391 = por %p389, %p390
    %p392 = scmp.ne.s32.totalorder %s380, %s381
    %p393 = scmp.eq.s32.totalorder %s35, 1
    %p394 = por %p392, %p393
    %p396 = scmp.ne.s32.totalorder %s381, %s395
    %p397 = scmp.eq.s32.totalorder %s35, 0
    %p398 = por %p396, %p397
    %s400 = sadd.s32 %s399, 1
    %p403 = scmp.eq.s32.totalorder %s29, 1
    %p404 = scmp.ne.s32.totalorder %s399, %s401
    %p405 = scmp.eq.s32.totalorder %s29, 0
    %p406 = por %p404, %p405
    %p407 = scmp.ne.s32.totalorder %s399, %s401
    %p408 = scmp.eq.s32.totalorder %s34, 1
    %p409 = por %p407, %p408
    %p410 = scmp.ne.s32.totalorder %s401, %s402
    %p411 = scmp.eq.s32.totalorder %s34, 0
    %p412 = por %p410, %p411
    %p413 = scmp.ne.s32.totalorder %s401, %s402
    %p414 = scmp.eq.s32.totalorder %s35, 1
    %p415 = por %p413, %p414
    %p417 = scmp.ne.s32.totalorder %s402, %s416
    %p418 = scmp.eq.s32.totalorder %s35, 0
    %p419 = por %p417, %p418
    %s421 = sadd.s32 %s420, 1
    %p424 = scmp.eq.s32.totalorder %s29, 1
    %p425 = scmp.ne.s32.totalorder %s420, %s422
    %p426 = scmp.eq.s32.totalorder %s29, 0
    %p427 = por %p425, %p426
    %p428 = scmp.ne.s32.totalorder %s420, %s422
    %p429 = scmp.eq.s32.totalorder %s34, 1
    %p430 = por %p428, %p429
    %p431 = scmp.ne.s32.totalorder %s422, %s423
    %p432 = scmp.eq.s32.totalorder %s34, 0
    %p433 = por %p431, %p432
    %p434 = scmp.ne.s32.totalorder %s422, %s423
    %p435 = scmp.eq.s32.totalorder %s35, 1
    %p436 = por %p434, %p435
    %p438 = scmp.ne.s32.totalorder %s423, %s437
    %p439 = scmp.eq.s32.totalorder %s35, 0
    %p440 = por %p438, %p439
    %s442 = sadd.s32 %s441, 1
    %p445 = scmp.eq.s32.totalorder %s29, 1
    %p446 = scmp.ne.s32.totalorder %s441, %s443
    %p447 = scmp.eq.s32.totalorder %s29, 0
    %p448 = por %p446, %p447
    %p449 = scmp.ne.s32.totalorder %s441, %s443
    %p450 = scmp.eq.s32.totalorder %s34, 1
    %p451 = por %p449, %p450
    %p452 = scmp.ne.s32.totalorder %s443, %s444
    %p453 = scmp.eq.s32.totalorder %s34, 0
    %p454 = por %p452, %p453
    %p455 = scmp.ne.s32.totalorder %s443, %s444
    %p456 = scmp.eq.s32.totalorder %s35, 1
    %p457 = por %p455, %p456
    %p459 = scmp.ne.s32.totalorder %s444, %s458
    %p460 = scmp.eq.s32.totalorder %s35, 0
    %p461 = por %p459, %p460
    %s463 = sadd.s32 %s462, 1
    %p466 = scmp.eq.s32.totalorder %s29, 1
    %p467 = scmp.ne.s32.totalorder %s462, %s464
    %p468 = scmp.eq.s32.totalorder %s29, 0
    %p469 = por %p467, %p468
    %p470 = scmp.ne.s32.totalorder %s462, %s464
    %p471 = scmp.eq.s32.totalorder %s34, 1
    %p472 = por %p470, %p471
    %p473 = scmp.ne.s32.totalorder %s464, %s465
    %p474 = scmp.eq.s32.totalorder %s34, 0
    %p475 = por %p473, %p474
    %p476 = scmp.ne.s32.totalorder %s464, %s465
    %p477 = scmp.eq.s32.totalorder %s35, 1
    %p478 = por %p476, %p477
    %p480 = scmp.ne.s32.totalorder %s465, %s479
    %p481 = scmp.eq.s32.totalorder %s35, 0
    %p482 = por %p480, %p481
    %s484 = sadd.s32 %s483, 1
    %p487 = scmp.eq.s32.totalorder %s29, 1
    %p488 = scmp.ne.s32.totalorder %s483, %s485
    %p489 = scmp.eq.s32.totalorder %s29, 0
    %p490 = por %p488, %p489
    %p491 = scmp.ne.s32.totalorder %s483, %s485
    %p492 = scmp.eq.s32.totalorder %s34, 1
    %p493 = por %p491, %p492
    %p494 = scmp.ne.s32.totalorder %s485, %s486
    %p495 = scmp.eq.s32.totalorder %s34, 0
    %p496 = por %p494, %p495
    %p497 = scmp.ne.s32.totalorder %s485, %s486
    %p498 = scmp.eq.s32.totalorder %s35, 1
    %p499 = por %p497, %p498
    %p501 = scmp.ne.s32.totalorder %s486, %s500
    %p502 = scmp.eq.s32.totalorder %s35, 0
    %p503 = por %p501, %p502
    %s505 = sadd.s32 %s504, 1
    %p508 = scmp.eq.s32.totalorder %s29, 1
    %p509 = scmp.ne.s32.totalorder %s504, %s506
    %p510 = scmp.eq.s32.totalorder %s29, 0
    %p511 = por %p509, %p510
    %p512 = scmp.ne.s32.totalorder %s504, %s506
    %p513 = scmp.eq.s32.totalorder %s34, 1
    %p514 = por %p512, %p513
    %p515 = scmp.ne.s32.totalorder %s506, %s507
    %p516 = scmp.eq.s32.totalorder %s34, 0
    %p517 = por %p515, %p516
    %p518 = scmp.ne.s32.totalorder %s506, %s507
    %p519 = scmp.eq.s32.totalorder %s35, 1
    %p520 = por %p518, %p519
    %p522 = scmp.ne.s32.totalorder %s507, %s521
    %p523 = scmp.eq.s32.totalorder %s35, 0
    %p524 = por %p522, %p523
    %s525 = ssub.s32 %s29, %s36
    %p526 = scmp.eq.s32.totalorder %s525, 0
    %s528 = sadd.s32 %s527, 1
    %s529 = scalar_select %p526, %s527, %s528
    %p532 = pneg %p526
    %p533 = scmp.eq.s32.totalorder %s29, 1
    %p534 = por %p532, %p533
    %p535 = scmp.ne.s32.totalorder %s527, %s530
    %p536 = scmp.eq.s32.totalorder %s29, 0
    %p537 = por %p535, %p536
    %p538 = scmp.ne.s32.totalorder %s527, %s530
    %p539 = scmp.eq.s32.totalorder %s34, 1
    %p540 = por %p538, %p539
    %p541 = scmp.ne.s32.totalorder %s530, %s531
    %p542 = scmp.eq.s32.totalorder %s34, 0
    %p543 = por %p541, %p542
    %p544 = scmp.ne.s32.totalorder %s530, %s531
    %p545 = scmp.eq.s32.totalorder %s35, 1
    %p546 = por %p544, %p545
    %p548 = scmp.ne.s32.totalorder %s531, %s547
    %p549 = scmp.eq.s32.totalorder %s35, 0
    %p550 = por %p548, %p549
    %p551 = scmp.le.s32.totalorder 1, %s29
    %p552 = scmp.lt.s32.totalorder %s29, 3
    %p553 = pnand %p551, %p552
    %p554 = pneg %p553
    // Predicated region
    $region9: #{nerf_decoder_pallas.1} parent=5 // pred_check
      _
    $region10: #{nerf_decoder_pallas.1} parent=5 // pred_check_branch
      %556 = sbr.rel (%p553) target = $region12
    $region11: #{nerf_decoder_pallas.1} parent=5 // pred_region
      %s557 = ssub.s32 %s29, 1
      // Predicated region
      $region13: #{nerf_decoder_pallas.1} parent=11 // pred_check
        %p558 = pneg %p76
      $region14: #{nerf_decoder_pallas.1} parent=11 // pred_check_branch
        %560 = sbr.rel (%p558) target = $region16
      $region15: #{nerf_decoder_pallas.1} parent=11 // pred_region
        _
      $region16: #{nerf_decoder_pallas.1} parent=11 // pred_fallthru
        _
      // Predicated region
      $region17: #{nerf_decoder_pallas.1} parent=11 // pred_check
        %p561 = pneg %p97
      $region18: #{nerf_decoder_pallas.1} parent=11 // pred_check_branch
        %563 = sbr.rel (%p561) target = $region20
      $region19: #{nerf_decoder_pallas.1} parent=11 // pred_region
        _
      $region20: #{nerf_decoder_pallas.1} parent=11 // pred_fallthru
        _
      // Predicated region
      $region21: #{nerf_decoder_pallas.1} parent=11 // pred_check
        %p564 = pneg %p118
      $region22: #{nerf_decoder_pallas.1} parent=11 // pred_check_branch
        %566 = sbr.rel (%p564) target = $region24
      $region23: #{nerf_decoder_pallas.1} parent=11 // pred_region
        _
      $region24: #{nerf_decoder_pallas.1} parent=11 // pred_fallthru
        _
      // Predicated region
      $region25: #{nerf_decoder_pallas.1} parent=11 // pred_check
        %p567 = pneg %p139
      $region26: #{nerf_decoder_pallas.1} parent=11 // pred_check_branch
        %569 = sbr.rel (%p567) target = $region28
      $region27: #{nerf_decoder_pallas.1} parent=11 // pred_region
        _
      $region28: #{nerf_decoder_pallas.1} parent=11 // pred_fallthru
        _
      // Predicated region
      $region29: #{nerf_decoder_pallas.1} parent=11 // pred_check
        %p570 = pneg %p160
      $region30: #{nerf_decoder_pallas.1} parent=11 // pred_check_branch
        %572 = sbr.rel (%p570) target = $region32
      $region31: #{nerf_decoder_pallas.1} parent=11 // pred_region
        _
      $region32: #{nerf_decoder_pallas.1} parent=11 // pred_fallthru
        _
      // Predicated region
      $region33: #{nerf_decoder_pallas.1} parent=11 // pred_check
        %p573 = pneg %p181
      $region34: #{nerf_decoder_pallas.1} parent=11 // pred_check_branch
        %575 = sbr.rel (%p573) target = $region36
      $region35: #{nerf_decoder_pallas.1} parent=11 // pred_region
        _
      $region36: #{nerf_decoder_pallas.1} parent=11 // pred_fallthru
        _
      // Predicated region
      $region37: #{nerf_decoder_pallas.1} parent=11 // pred_check
        %p576 = pneg %p202
      $region38: #{nerf_decoder_pallas.1} parent=11 // pred_check_branch
        %578 = sbr.rel (%p576) target = $region40
      $region39: #{nerf_decoder_pallas.1} parent=11 // pred_region
        _
      $region40: #{nerf_decoder_pallas.1} parent=11 // pred_fallthru
        _
      // Predicated region
      $region41: #{nerf_decoder_pallas.1} parent=11 // pred_check
        %p579 = pneg %p223
      $region42: #{nerf_decoder_pallas.1} parent=11 // pred_check_branch
        %581 = sbr.rel (%p579) target = $region44
      $region43: #{nerf_decoder_pallas.1} parent=11 // pred_region
        _
      $region44: #{nerf_decoder_pallas.1} parent=11 // pred_fallthru
        _
      // Predicated region
      $region45: #{nerf_decoder_pallas.1} parent=11 // pred_check
        %p582 = pneg %p244
      $region46: #{nerf_decoder_pallas.1} parent=11 // pred_check_branch
        %584 = sbr.rel (%p582) target = $region48
      $region47: #{nerf_decoder_pallas.1} parent=11 // pred_region
        _
      $region48: #{nerf_decoder_pallas.1} parent=11 // pred_fallthru
        _
      // Predicated region
      $region49: #{nerf_decoder_pallas.1} parent=11 // pred_check
        %p585 = pneg %p265
      $region50: #{nerf_decoder_pallas.1} parent=11 // pred_check_branch
        %587 = sbr.rel (%p585) target = $region52
      $region51: #{nerf_decoder_pallas.1} parent=11 // pred_region
        _
      $region52: #{nerf_decoder_pallas.1} parent=11 // pred_fallthru
        _
      // Predicated region
      $region53: #{nerf_decoder_pallas.1} parent=11 // pred_check
        %p588 = pneg %p286
      $region54: #{nerf_decoder_pallas.1} parent=11 // pred_check_branch
        %590 = sbr.rel (%p588) target = $region56
      $region55: #{nerf_decoder_pallas.1} parent=11 // pred_region
        _
      $region56: #{nerf_decoder_pallas.1} parent=11 // pred_fallthru
        _
      // Predicated region
      $region57: #{nerf_decoder_pallas.1} parent=11 // pred_check
        %p591 = pneg %p307
      $region58: #{nerf_decoder_pallas.1} parent=11 // pred_check_branch
        %593 = sbr.rel (%p591) target = $region60
      $region59: #{nerf_decoder_pallas.1} parent=11 // pred_region
        _
      $region60: #{nerf_decoder_pallas.1} parent=11 // pred_fallthru
        _
      // Predicated region
      $region61: #{nerf_decoder_pallas.1} parent=11 // pred_check
        %p594 = pneg %p328
      $region62: #{nerf_decoder_pallas.1} parent=11 // pred_check_branch
        %596 = sbr.rel (%p594) target = $region64
      $region63: #{nerf_decoder_pallas.1} parent=11 // pred_region
        _
      $region64: #{nerf_decoder_pallas.1} parent=11 // pred_fallthru
        _
      // Predicated region
      $region65: #{nerf_decoder_pallas.1} parent=11 // pred_check
        %p597 = pneg %p349
      $region66: #{nerf_decoder_pallas.1} parent=11 // pred_check_branch
        %599 = sbr.rel (%p597) target = $region68
      $region67: #{nerf_decoder_pallas.1} parent=11 // pred_region
        _
      $region68: #{nerf_decoder_pallas.1} parent=11 // pred_fallthru
        _
      // Predicated region
      $region69: #{nerf_decoder_pallas.1} parent=11 // pred_check
        %p600 = pneg %p370
      $region70: #{nerf_decoder_pallas.1} parent=11 // pred_check_branch
        %602 = sbr.rel (%p600) target = $region72
      $region71: #{nerf_decoder_pallas.1} parent=11 // pred_region
        _
      $region72: #{nerf_decoder_pallas.1} parent=11 // pred_fallthru
        _
      // Predicated region
      $region73: #{nerf_decoder_pallas.1} parent=11 // pred_check
        %p603 = pneg %p391
      $region74: #{nerf_decoder_pallas.1} parent=11 // pred_check_branch
        %605 = sbr.rel (%p603) target = $region76
      $region75: #{nerf_decoder_pallas.1} parent=11 // pred_region
        _
      $region76: #{nerf_decoder_pallas.1} parent=11 // pred_fallthru
        _
      // Predicated region
      $region77: #{nerf_decoder_pallas.1} parent=11 // pred_check
        %p606 = pneg %p412
      $region78: #{nerf_decoder_pallas.1} parent=11 // pred_check_branch
        %608 = sbr.rel (%p606) target = $region80
      $region79: #{nerf_decoder_pallas.1} parent=11 // pred_region
        _
      $region80: #{nerf_decoder_pallas.1} parent=11 // pred_fallthru
        _
      // Predicated region
      $region81: #{nerf_decoder_pallas.1} parent=11 // pred_check
        %p609 = pneg %p433
      $region82: #{nerf_decoder_pallas.1} parent=11 // pred_check_branch
        %611 = sbr.rel (%p609) target = $region84
      $region83: #{nerf_decoder_pallas.1} parent=11 // pred_region
        _
      $region84: #{nerf_decoder_pallas.1} parent=11 // pred_fallthru
        _
      // Predicated region
      $region85: #{nerf_decoder_pallas.1} parent=11 // pred_check
        %p612 = pneg %p454
      $region86: #{nerf_decoder_pallas.1} parent=11 // pred_check_branch
        %614 = sbr.rel (%p612) target = $region88
      $region87: #{nerf_decoder_pallas.1} parent=11 // pred_region
        _
      $region88: #{nerf_decoder_pallas.1} parent=11 // pred_fallthru
        _
      // Predicated region
      $region89: #{nerf_decoder_pallas.1} parent=11 // pred_check
        %p615 = pneg %p475
      $region90: #{nerf_decoder_pallas.1} parent=11 // pred_check_branch
        %617 = sbr.rel (%p615) target = $region92
      $region91: #{nerf_decoder_pallas.1} parent=11 // pred_region
        _
      $region92: #{nerf_decoder_pallas.1} parent=11 // pred_fallthru
        _
      // Predicated region
      $region93: #{nerf_decoder_pallas.1} parent=11 // pred_check
        %p618 = pneg %p496
      $region94: #{nerf_decoder_pallas.1} parent=11 // pred_check_branch
        %620 = sbr.rel (%p618) target = $region96
      $region95: #{nerf_decoder_pallas.1} parent=11 // pred_region
        _
      $region96: #{nerf_decoder_pallas.1} parent=11 // pred_fallthru
        _
      // Predicated region
      $region97: #{nerf_decoder_pallas.1} parent=11 // pred_check
        %p621 = pneg %p517
      $region98: #{nerf_decoder_pallas.1} parent=11 // pred_check_branch
        %623 = sbr.rel (%p621) target = $region100
      $region99: #{nerf_decoder_pallas.1} parent=11 // pred_region
        _
      $region100: #{nerf_decoder_pallas.1} parent=11 // pred_fallthru
        _
    $region12: #{nerf_decoder_pallas.1} parent=5 // pred_fallthru
      _
    %p624 = scmp.lt.s32.totalorder %s29, 2
    // Predicated region
    $region101: #{nerf_decoder_pallas.1} parent=5 // pred_check
      %p625 = pneg %p624
    $region102: #{nerf_decoder_pallas.1} parent=5 // pred_check_branch
      %627 = sbr.rel (%p625) target = $region104
    $region103: #{nerf_decoder_pallas.1} parent=5 // pred_region
      // Predicated region
      $region105: #{nerf_decoder_pallas.1} parent=103 // pred_check
        %p628 = pneg %p49
      $region106: #{nerf_decoder_pallas.1} parent=103 // pred_check_branch
        %630 = sbr.rel (%p628) target = $region108
      $region107: #{nerf_decoder_pallas.1} parent=103 // pred_region
        %s631 = smul.u32 16, %s29
        %p632 = scmp.lt.s32.totalorder %s631, 31
        %s633 = scalar_select %p632, %s631, 31
        %s634 = smul.addr %s633, 4
        %s635 = scalar_lea.vmem %s0, %s634
        %s636 = smul.u32 16, %s29
      $region108: #{nerf_decoder_pallas.1} parent=103 // pred_fallthru
        _
    $region104: #{nerf_decoder_pallas.1} parent=5 // pred_fallthru
      _
    %p637 = scmp.le.s32.totalorder 1, %s29
    %p638 = scmp.lt.s32.totalorder %s29, 3
    %p639 = pnand %p637, %p638
    %p640 = pneg %p639
    // Predicated region
    $region109: #{nerf_decoder_pallas.1} parent=5 // pred_check
      _
    $region110: #{nerf_decoder_pallas.1} parent=5 // pred_check_branch
      %642 = sbr.rel (%p639) target = $region112
    $region111: #{nerf_decoder_pallas.1} parent=5 // pred_region
      %s643 = ssub.s32 %s29, 1
      %s644 = smul.u32 16, %s34
      %p645 = scmp.lt.s32.totalorder %s644, 31
      %s646 = scalar_select %p645, %s644, 31
      %s647 = smul.addr %s646, 4
      %s648 = scalar_lea.vmem %s0, %s647
      %p649 = pneg %p55
      %p650 = pneg %p52
      %p651 = pneg %p76
      %p652 = pneg %p73
      %p653 = pneg %p97
      %p654 = pneg %p94
      %p655 = pneg %p118
      %p656 = pneg %p115
      %p657 = pneg %p139
      %p658 = pneg %p136
      %p659 = pneg %p160
      %p660 = pneg %p157
      %p661 = pneg %p181
      %p662 = pneg %p178
      %p663 = pneg %p202
      %p664 = pneg %p199
      %p665 = pneg %p223
      %p666 = pneg %p220
      %p667 = pneg %p244
      %p668 = pneg %p241
      %p669 = pneg %p265
      %p670 = pneg %p262
      %p671 = pneg %p286
      %p672 = pneg %p283
      %p673 = pneg %p307
      %p674 = pneg %p304
      %p675 = pneg %p328
      %p676 = pneg %p325
      %p677 = pneg %p349
      %p678 = pneg %p346
      %p679 = pneg %p370
      %p680 = pneg %p367
      %p681 = pneg %p391
      %p682 = pneg %p388
      %p683 = pneg %p412
      %p684 = pneg %p409
      %p685 = pneg %p433
      %p686 = pneg %p430
      %p687 = pneg %p454
      %p688 = pneg %p451
      %p689 = pneg %p475
      %p690 = pneg %p472
      %p691 = pneg %p496
      %p692 = pneg %p493
      %p693 = pneg %p517
      %p694 = pneg %p514
      %p695 = pneg %p543
      %p696 = pneg %p540
      %s697 = smul.u32 16, %s34
      %p698 = scmp.lt.s32.totalorder %s697, 31
      %s699 = scalar_select %p698, %s697, 31
      %s700 = smul.addr %s699, 8
      %s701 = scalar_lea.vmem %s23, %s700
      %s702 = smul.u32 16, %s34
      %p703 = scmp.lt.s32.totalorder %s702, 31
      %s704 = scalar_select %p703, %s702, 31
      %s705 = smul.addr %s704, 4
      %s706 = scalar_lea.vmem %s0, %s705
      %s707 = smul.u32 16, %s34
      %s708 = smul.u32 16, %s34
      %p709 = scmp.lt.s32.totalorder %s708, 31
      %s710 = scalar_select %p709, %s708, 31
      %s711 = smul.addr %s710, 8
      %s712 = scalar_lea.vmem %s23, %s711
      %s713 = smul.u32 16, %s34
      %v715 = vld [vmem:[%s706] sm:$0xf]
      %v716 = vld [vmem:[%s706 + $0x4] sm:$0xf]
      %v717 = vld [vmem:[%s706 + $0x8] sm:$0xf]
      %v718 = vld [vmem:[%s706 + $0xc] sm:$0xf]
      %v719 = vld [vmem:[%s706 + $0x10] sm:$0xf]
      %v720 = vld [vmem:[%s706 + $0x14] sm:$0xf]
      %v721 = vld [vmem:[%s706 + $0x18] sm:$0xf]
      %v722 = vld [vmem:[%s706 + $0x1c] sm:$0xf]
      %v723 = vld [vmem:[%s706 + $0x20] sm:$0xf]
      %v724 = vld [vmem:[%s706 + $0x24] sm:$0xf]
      %v725 = vld [vmem:[%s706 + $0x28] sm:$0xf]
      %v726 = vld [vmem:[%s706 + $0x2c] sm:$0xf]
      %v727 = vld [vmem:[%s706 + $0x30] sm:$0xf]
      %v728 = vld [vmem:[%s706 + $0x34] sm:$0xf]
      %v729 = vld [vmem:[%s706 + $0x38] sm:$0xf]
      %v730 = vld [vmem:[%s706 + $0x3c] sm:$0xf]
      %v731 = vld [vmem:[%s1] sm:$0xf]
      %v732 = vld [vmem:[%s1 + $0x4] sm:$0xf]
      %v733 = vld [vmem:[%s1 + $0x8] sm:$0xf]
      %v734 = vld [vmem:[%s1 + $0xc] sm:$0xf]
      %v735 = vld [vmem:[%s1 + $0x10] sm:$0xf]
      %v736 = vld [vmem:[%s1 + $0x14] sm:$0xf]
      %v737 = vld [vmem:[%s1 + $0x18] sm:$0xf]
      %v738 = vld [vmem:[%s1 + $0x1c] sm:$0xf]
      %v739 = vld [vmem:[%s1 + $0x20] sm:$0xf]
      %v740 = vld [vmem:[%s1 + $0x24] sm:$0xf]
      %v741 = vld [vmem:[%s1 + $0x28] sm:$0xf]
      %v742 = vld [vmem:[%s1 + $0x2c] sm:$0xf]
      %v743 = vld [vmem:[%s1 + $0x30] sm:$0xf]
      %v744 = vld [vmem:[%s1 + $0x34] sm:$0xf]
      %v745 = vld [vmem:[%s1 + $0x38] sm:$0xf]
      %v746 = vld [vmem:[%s1 + $0x3c] sm:$0xf]
      %v747 = vld [vmem:[%s9] sm:$0x1]
      %v749 = vlaneseq
      %v750 = vshrl.u32 %v749, 7
      %v751 = vsub.s32 0, %v750
      %v752 = vrot.slane %v747, %v751
      %v770 = vunpack.c.l.b16 %v715
      %v771 = vunpack.c.l.b16 %v716
      %v772 = vunpack.c.l.b16 %v717
      %v773 = vunpack.c.l.b16 %v718
      %v774 = vunpack.c.l.b16 %v719
      %v775 = vunpack.c.l.b16 %v720
      %v776 = vunpack.c.l.b16 %v721
      %v777 = vunpack.c.l.b16 %v722
      %v778 = vunpack.c.l.b16 %v723
      %v779 = vunpack.c.l.b16 %v724
      %v780 = vunpack.c.l.b16 %v725
      %v781 = vunpack.c.l.b16 %v726
      %v782 = vunpack.c.l.b16 %v727
      %v783 = vunpack.c.l.b16 %v728
      %v784 = vunpack.c.l.b16 %v729
      %v785 = vunpack.c.l.b16 %v730
      %v786 = vpack.c.b16 %v771, %v770
      %v787 = vpack.c.b16 %v773, %v772
      %v788 = vpack.c.b16 %v775, %v774
      %v789 = vpack.c.b16 %v777, %v776
      %v790 = vpack.c.b16 %v779, %v778
      %v791 = vpack.c.b16 %v781, %v780
      %v792 = vpack.c.b16 %v783, %v782
      %v793 = vpack.c.b16 %v785, %v784
      %v818 = vunpack.c.l.b16 %v731
      %v819 = vunpack.c.l.b16 %v732
      %v820 = vunpack.c.l.b16 %v733
      %v821 = vunpack.c.l.b16 %v734
      %v822 = vunpack.c.l.b16 %v735
      %v823 = vunpack.c.l.b16 %v736
      %v824 = vunpack.c.l.b16 %v737
      %v825 = vunpack.c.l.b16 %v738
      %v826 = vunpack.c.l.b16 %v739
      %v827 = vunpack.c.l.b16 %v740
      %v828 = vunpack.c.l.b16 %v741
      %v829 = vunpack.c.l.b16 %v742
      %v830 = vunpack.c.l.b16 %v743
      %v831 = vunpack.c.l.b16 %v744
      %v832 = vunpack.c.l.b16 %v745
      %v833 = vunpack.c.l.b16 %v746
      %v834 = vpack.c.b16 %v819, %v818
      %v835 = vpack.c.b16 %v821, %v820
      %v836 = vpack.c.b16 %v823, %v822
      %v837 = vpack.c.b16 %v825, %v824
      %v838 = vpack.c.b16 %v827, %v826
      %v839 = vpack.c.b16 %v829, %v828
      %v840 = vpack.c.b16 %v831, %v830
      %v841 = vpack.c.b16 %v833, %v832
      %850 = vmatprep.subr.bf16.mxu0 0
      %851 = vmatpush1.bf16.msra.mxu0 %v834
      %852 = vmatprep.subr.bf16.mxu0 0
      %853 = vmatpush1.bf16.msra.mxu0 %v835
      %854 = vmatprep.subr.bf16.mxu0 0
      %855 = vmatpush1.bf16.msra.mxu0 %v836
      %856 = vmatprep.subr.bf16.mxu0 0
      %857 = vmatpush1.bf16.msra.mxu0 %v837
      %858 = vmatprep.subr.bf16.mxu0 0
      %859 = vmatpush1.bf16.msra.mxu0 %v838
      %860 = vmatprep.subr.bf16.mxu0 0
      %861 = vmatpush1.bf16.msra.mxu0 %v839
      %862 = vmatprep.subr.bf16.mxu0 0
      %863 = vmatpush1.bf16.msra.mxu0 %v840
      %864 = vmatprep.subr.bf16.mxu0 0
      %865 = vmatpush1.bf16.msra.mxu0 %v841
      %866 = vmatprep.subr.bf16.mxu0 0
      %867 = vmatpush1.bf16.msra.mxu0 0
      %868 = vmatprep.subr.bf16.mxu0 0
      %869 = vmatpush1.bf16.msra.mxu0 0
      %870 = vmatprep.subr.bf16.mxu0 0
      %871 = vmatpush1.bf16.msra.mxu0 0
      %872 = vmatprep.subr.bf16.mxu0 0
      %873 = vmatpush1.bf16.msra.mxu0 0
      %874 = vmatprep.subr.bf16.mxu0 0
      %875 = vmatpush1.bf16.msra.mxu0 0
      %876 = vmatprep.subr.bf16.mxu0 0
      %877 = vmatpush1.bf16.msra.mxu0 0
      %878 = vmatprep.subr.bf16.mxu0 0
      %879 = vmatpush1.bf16.msra.mxu0 0
      %880 = vmatprep.subr.bf16.mxu0 0
      %881 = vmatpush1.bf16.msra.mxu0 0
      %882 = vmatprep.mubr.bf16.mxu0 0
      %883 = vmatmul.mubr.bf16.gmra.mrb[0].mxu0 %v786
      %v884 = vpop.f32.mrb[0].mxu0
      %v885 = vadd.f32 %v752, %v884
      %v886 = vpop.f32.mrb[0].mxu0
      %v887 = vpop.f32.mrb[0].mxu0
      %v888 = vadd.f32 %v752, %v887
      %v889 = vpop.f32.mrb[0].mxu0
      %890 = vmatprep.mubr.bf16.mxu0 0
      %891 = vmatmul.mubr.bf16.gmra.mrb[0].mxu0 %v787
      %v892 = vpop.f32.mrb[0].mxu0
      %v893 = vadd.f32 %v752, %v892
      %v894 = vpop.f32.mrb[0].mxu0
      %v895 = vpop.f32.mrb[0].mxu0
      %v896 = vadd.f32 %v752, %v895
      %v897 = vpop.f32.mrb[0].mxu0
      %898 = vmatprep.mubr.bf16.mxu0 0
      %899 = vmatmul.mubr.bf16.gmra.mrb[0].mxu0 %v788
      %v900 = vpop.f32.mrb[0].mxu0
      %v901 = vadd.f32 %v752, %v900
      %v902 = vpop.f32.mrb[0].mxu0
      %v903 = vpop.f32.mrb[0].mxu0
      %v904 = vadd.f32 %v752, %v903
      %v905 = vpop.f32.mrb[0].mxu0
      %906 = vmatprep.mubr.bf16.mxu0 0
      %907 = vmatmul.mubr.bf16.gmra.mrb[0].mxu0 %v789
      %v908 = vpop.f32.mrb[0].mxu0
      %v909 = vadd.f32 %v752, %v908
      %v910 = vpop.f32.mrb[0].mxu0
      %v911 = vpop.f32.mrb[0].mxu0
      %v912 = vadd.f32 %v752, %v911
      %v913 = vpop.f32.mrb[0].mxu0
      %914 = vmatprep.mubr.bf16.mxu0 0
      %915 = vmatmul.mubr.bf16.gmra.mrb[0].mxu0 %v790
      %v916 = vpop.f32.mrb[0].mxu0
      %v917 = vadd.f32 %v752, %v916
      %v918 = vpop.f32.mrb[0].mxu0
      %v919 = vpop.f32.mrb[0].mxu0
      %v920 = vadd.f32 %v752, %v919
      %v921 = vpop.f32.mrb[0].mxu0
      %922 = vmatprep.mubr.bf16.mxu0 0
      %923 = vmatmul.mubr.bf16.gmra.mrb[0].mxu0 %v791
      %v924 = vpop.f32.mrb[0].mxu0
      %v925 = vadd.f32 %v752, %v924
      %v926 = vpop.f32.mrb[0].mxu0
      %v927 = vpop.f32.mrb[0].mxu0
      %v928 = vadd.f32 %v752, %v927
      %v929 = vpop.f32.mrb[0].mxu0
      %930 = vmatprep.mubr.bf16.mxu0 0
      %931 = vmatmul.mubr.bf16.gmra.mrb[0].mxu0 %v792
      %v932 = vpop.f32.mrb[0].mxu0
      %v933 = vadd.f32 %v752, %v932
      %v934 = vpop.f32.mrb[0].mxu0
      %v935 = vpop.f32.mrb[0].mxu0
      %v936 = vadd.f32 %v752, %v935
      %v937 = vpop.f32.mrb[0].mxu0
      %938 = vmatprep.mubr.bf16.mxu0 0
      %939 = vmatmul.mubr.bf16.gmra.mrb[0].mxu0 %v793
      %v940 = vpop.f32.mrb[0].mxu0
      %v941 = vadd.f32 %v752, %v940
      %v942 = vpop.f32.mrb[0].mxu0
      %v943 = vpop.f32.mrb[0].mxu0
      %v944 = vadd.f32 %v752, %v943
      %v945 = vpop.f32.mrb[0].mxu0
      %946 = vdwg.mxu0
      %v947 = vmax.f32 %v885, 0.0
      %v948 = vmax.f32 %v888, 0.0
      %v949 = vmax.f32 %v893, 0.0
      %v950 = vmax.f32 %v896, 0.0
      %v951 = vmax.f32 %v901, 0.0
      %v952 = vmax.f32 %v904, 0.0
      %v953 = vmax.f32 %v909, 0.0
      %v954 = vmax.f32 %v912, 0.0
      %v955 = vmax.f32 %v917, 0.0
      %v956 = vmax.f32 %v920, 0.0
      %v957 = vmax.f32 %v925, 0.0
      %v958 = vmax.f32 %v928, 0.0
      %v959 = vmax.f32 %v933, 0.0
      %v960 = vmax.f32 %v936, 0.0
      %v961 = vmax.f32 %v941, 0.0
      %v962 = vmax.f32 %v944, 0.0
      %v963 = vpack.c.bf16 %v948, %v947
      %v964 = vpack.c.bf16 %v950, %v949
      %v965 = vpack.c.bf16 %v952, %v951
      %v966 = vpack.c.bf16 %v954, %v953
      %v967 = vpack.c.bf16 %v956, %v955
      %v968 = vpack.c.bf16 %v958, %v957
      %v969 = vpack.c.bf16 %v960, %v959
      %v970 = vpack.c.bf16 %v962, %v961
      %v971 = vld [vmem:[%s2] sm:$0xf]
      %v972 = vld [vmem:[%s2 + $0x4] sm:$0xf]
      %v973 = vld [vmem:[%s2 + $0x8] sm:$0xf]
      %v974 = vld [vmem:[%s2 + $0xc] sm:$0xf]
      %v975 = vld [vmem:[%s2 + $0x10] sm:$0xf]
      %v976 = vld [vmem:[%s2 + $0x14] sm:$0xf]
      %v977 = vld [vmem:[%s2 + $0x18] sm:$0xf]
      %v978 = vld [vmem:[%s2 + $0x1c] sm:$0xf]
      %v979 = vld [vmem:[%s2 + $0x20] sm:$0xf]
      %v980 = vld [vmem:[%s2 + $0x24] sm:$0xf]
      %v981 = vld [vmem:[%s2 + $0x28] sm:$0xf]
      %v982 = vld [vmem:[%s2 + $0x2c] sm:$0xf]
      %v983 = vld [vmem:[%s2 + $0x30] sm:$0xf]
      %v984 = vld [vmem:[%s2 + $0x34] sm:$0xf]
      %v985 = vld [vmem:[%s2 + $0x38] sm:$0xf]
      %v986 = vld [vmem:[%s2 + $0x3c] sm:$0xf]
      %v987 = vld [vmem:[%s10] sm:$0x1]
      %v989 = vlaneseq
      %v990 = vshrl.u32 %v989, 7
      %v991 = vsub.s32 0, %v990
      %v992 = vrot.slane %v987, %v991
      %v1010 = vunpack.c.l.b16 %v971
      %v1011 = vunpack.c.l.b16 %v972
      %v1012 = vunpack.c.l.b16 %v973
      %v1013 = vunpack.c.l.b16 %v974
      %v1014 = vunpack.c.l.b16 %v975
      %v1015 = vunpack.c.l.b16 %v976
      %v1016 = vunpack.c.l.b16 %v977
      %v1017 = vunpack.c.l.b16 %v978
      %v1018 = vunpack.c.l.b16 %v979
      %v1019 = vunpack.c.l.b16 %v980
      %v1020 = vunpack.c.l.b16 %v981
      %v1021 = vunpack.c.l.b16 %v982
      %v1022 = vunpack.c.l.b16 %v983
      %v1023 = vunpack.c.l.b16 %v984
      %v1024 = vunpack.c.l.b16 %v985
      %v1025 = vunpack.c.l.b16 %v986
      %v1026 = vpack.c.b16 %v1011, %v1010
      %v1027 = vpack.c.b16 %v1013, %v1012
      %v1028 = vpack.c.b16 %v1015, %v1014
      %v1029 = vpack.c.b16 %v1017, %v1016
      %v1030 = vpack.c.b16 %v1019, %v1018
      %v1031 = vpack.c.b16 %v1021, %v1020
      %v1032 = vpack.c.b16 %v1023, %v1022
      %v1033 = vpack.c.b16 %v1025, %v1024
      %1042 = vmatprep.subr.bf16.mxu0 0
      %1043 = vmatpush1.bf16.msra.mxu0 %v1026
      %1044 = vmatprep.subr.bf16.mxu0 0
      %1045 = vmatpush1.bf16.msra.mxu0 %v1027
      %1046 = vmatprep.subr.bf16.mxu0 0
      %1047 = vmatpush1.bf16.msra.mxu0 %v1028
      %1048 = vmatprep.subr.bf16.mxu0 0
      %1049 = vmatpush1.bf16.msra.mxu0 %v1029
      %1050 = vmatprep.subr.bf16.mxu0 0
      %1051 = vmatpush1.bf16.msra.mxu0 %v1030
      %1052 = vmatprep.subr.bf16.mxu0 0
      %1053 = vmatpush1.bf16.msra.mxu0 %v1031
      %1054 = vmatprep.subr.bf16.mxu0 0
      %1055 = vmatpush1.bf16.msra.mxu0 %v1032
      %1056 = vmatprep.subr.bf16.mxu0 0
      %1057 = vmatpush1.bf16.msra.mxu0 %v1033
      %1058 = vmatprep.subr.bf16.mxu0 0
      %1059 = vmatpush1.bf16.msra.mxu0 0
      %1060 = vmatprep.subr.bf16.mxu0 0
      %1061 = vmatpush1.bf16.msra.mxu0 0
      %1062 = vmatprep.subr.bf16.mxu0 0
      %1063 = vmatpush1.bf16.msra.mxu0 0
      %1064 = vmatprep.subr.bf16.mxu0 0
      %1065 = vmatpush1.bf16.msra.mxu0 0
      %1066 = vmatprep.subr.bf16.mxu0 0
      %1067 = vmatpush1.bf16.msra.mxu0 0
      %1068 = vmatprep.subr.bf16.mxu0 0
      %1069 = vmatpush1.bf16.msra.mxu0 0
      %1070 = vmatprep.subr.bf16.mxu0 0
      %1071 = vmatpush1.bf16.msra.mxu0 0
      %1072 = vmatprep.subr.bf16.mxu0 0
      %1073 = vmatpush1.bf16.msra.mxu0 0
      %1074 = vmatprep.mubr.bf16.mxu0 0
      %1075 = vmatmul.mubr.bf16.gmra.mrb[0].mxu0 %v963
      %v1076 = vpop.f32.mrb[0].mxu0
      %v1077 = vadd.f32 %v992, %v1076
      %v1078 = vpop.f32.mrb[0].mxu0
      %v1079 = vpop.f32.mrb[0].mxu0
      %v1080 = vadd.f32 %v992, %v1079
      %v1081 = vpop.f32.mrb[0].mxu0
      %1082 = vmatprep.mubr.bf16.mxu0 0
      %1083 = vmatmul.mubr.bf16.gmra.mrb[0].mxu0 %v964
      %v1084 = vpop.f32.mrb[0].mxu0
      %v1085 = vadd.f32 %v992, %v1084
      %v1086 = vpop.f32.mrb[0].mxu0
      %v1087 = vpop.f32.mrb[0].mxu0
      %v1088 = vadd.f32 %v992, %v1087
      %v1089 = vpop.f32.mrb[0].mxu0
      %1090 = vmatprep.mubr.bf16.mxu0 0
      %1091 = vmatmul.mubr.bf16.gmra.mrb[0].mxu0 %v965
      %v1092 = vpop.f32.mrb[0].mxu0
      %v1093 = vadd.f32 %v992, %v1092
      %v1094 = vpop.f32.mrb[0].mxu0
      %v1095 = vpop.f32.mrb[0].mxu0
      %v1096 = vadd.f32 %v992, %v1095
      %v1097 = vpop.f32.mrb[0].mxu0
      %1098 = vmatprep.mubr.bf16.mxu0 0
      %1099 = vmatmul.mubr.bf16.gmra.mrb[0].mxu0 %v966
      %v1100 = vpop.f32.mrb[0].mxu0
      %v1101 = vadd.f32 %v992, %v1100
      %v1102 = vpop.f32.mrb[0].mxu0
      %v1103 = vpop.f32.mrb[0].mxu0
      %v1104 = vadd.f32 %v992, %v1103
      %v1105 = vpop.f32.mrb[0].mxu0
      %1106 = vmatprep.mubr.bf16.mxu0 0
      %1107 = vmatmul.mubr.bf16.gmra.mrb[0].mxu0 %v967
      %v1108 = vpop.f32.mrb[0].mxu0
      %v1109 = vadd.f32 %v992, %v1108
      %v1110 = vpop.f32.mrb[0].mxu0
      %v1111 = vpop.f32.mrb[0].mxu0
      %v1112 = vadd.f32 %v992, %v1111
      %v1113 = vpop.f32.mrb[0].mxu0
      %1114 = vmatprep.mubr.bf16.mxu0 0
      %1115 = vmatmul.mubr.bf16.gmra.mrb[0].mxu0 %v968
      %v1116 = vpop.f32.mrb[0].mxu0
      %v1117 = vadd.f32 %v992, %v1116
      %v1118 = vpop.f32.mrb[0].mxu0
      %v1119 = vpop.f32.mrb[0].mxu0
      %v1120 = vadd.f32 %v992, %v1119
      %v1121 = vpop.f32.mrb[0].mxu0
      %1122 = vmatprep.mubr.bf16.mxu0 0
      %1123 = vmatmul.mubr.bf16.gmra.mrb[0].mxu0 %v969
      %v1124 = vpop.f32.mrb[0].mxu0
      %v1125 = vadd.f32 %v992, %v1124
      %v1126 = vpop.f32.mrb[0].mxu0
      %v1127 = vpop.f32.mrb[0].mxu0
      %v1128 = vadd.f32 %v992, %v1127
      %v1129 = vpop.f32.mrb[0].mxu0
      %1130 = vmatprep.mubr.bf16.mxu0 0
      %1131 = vmatmul.mubr.bf16.gmra.mrb[0].mxu0 %v970
      %v1132 = vpop.f32.mrb[0].mxu0
      %v1133 = vadd.f32 %v992, %v1132
      %v1134 = vpop.f32.mrb[0].mxu0
      %v1135 = vpop.f32.mrb[0].mxu0
      %v1136 = vadd.f32 %v992, %v1135
      %v1137 = vpop.f32.mrb[0].mxu0
      %1138 = vdwg.mxu0
      %v1139 = vmax.f32 %v1077, 0.0
      %v1140 = vmax.f32 %v1080, 0.0
      %v1141 = vmax.f32 %v1085, 0.0
      %v1142 = vmax.f32 %v1088, 0.0
      %v1143 = vmax.f32 %v1093, 0.0
      %v1144 = vmax.f32 %v1096, 0.0
      %v1145 = vmax.f32 %v1101, 0.0
      %v1146 = vmax.f32 %v1104, 0.0
      %v1147 = vmax.f32 %v1109, 0.0
      %v1148 = vmax.f32 %v1112, 0.0
      %v1149 = vmax.f32 %v1117, 0.0
      %v1150 = vmax.f32 %v1120, 0.0
      %v1151 = vmax.f32 %v1125, 0.0
      %v1152 = vmax.f32 %v1128, 0.0
      %v1153 = vmax.f32 %v1133, 0.0
      %v1154 = vmax.f32 %v1136, 0.0
      %v1155 = vpack.c.bf16 %v1140, %v1139
      %v1156 = vpack.c.bf16 %v1142, %v1141
      %v1157 = vpack.c.bf16 %v1144, %v1143
      %v1158 = vpack.c.bf16 %v1146, %v1145
      %v1159 = vpack.c.bf16 %v1148, %v1147
      %v1160 = vpack.c.bf16 %v1150, %v1149
      %v1161 = vpack.c.bf16 %v1152, %v1151
      %v1162 = vpack.c.bf16 %v1154, %v1153
      %v1163 = vld [vmem:[%s3] sm:$0xf]
      %v1164 = vld [vmem:[%s3 + $0x4] sm:$0xf]
      %v1165 = vld [vmem:[%s3 + $0x8] sm:$0xf]
      %v1166 = vld [vmem:[%s3 + $0xc] sm:$0xf]
      %v1167 = vld [vmem:[%s3 + $0x10] sm:$0xf]
      %v1168 = vld [vmem:[%s3 + $0x14] sm:$0xf]
      %v1169 = vld [vmem:[%s3 + $0x18] sm:$0xf]
      %v1170 = vld [vmem:[%s3 + $0x1c] sm:$0xf]
      %v1171 = vld [vmem:[%s3 + $0x20] sm:$0xf]
      %v1172 = vld [vmem:[%s3 + $0x24] sm:$0xf]
      %v1173 = vld [vmem:[%s3 + $0x28] sm:$0xf]
      %v1174 = vld [vmem:[%s3 + $0x2c] sm:$0xf]
      %v1175 = vld [vmem:[%s3 + $0x30] sm:$0xf]
      %v1176 = vld [vmem:[%s3 + $0x34] sm:$0xf]
      %v1177 = vld [vmem:[%s3 + $0x38] sm:$0xf]
      %v1178 = vld [vmem:[%s3 + $0x3c] sm:$0xf]
      %v1179 = vld [vmem:[%s11] sm:$0x1]
      %v1181 = vlaneseq
      %v1182 = vshrl.u32 %v1181, 7
      %v1183 = vsub.s32 0, %v1182
      %v1184 = vrot.slane %v1179, %v1183
      %v1202 = vunpack.c.l.b16 %v1163
      %v1203 = vunpack.c.l.b16 %v1164
      %v1204 = vunpack.c.l.b16 %v1165
      %v1205 = vunpack.c.l.b16 %v1166
      %v1206 = vunpack.c.l.b16 %v1167
      %v1207 = vunpack.c.l.b16 %v1168
      %v1208 = vunpack.c.l.b16 %v1169
      %v1209 = vunpack.c.l.b16 %v1170
      %v1210 = vunpack.c.l.b16 %v1171
      %v1211 = vunpack.c.l.b16 %v1172
      %v1212 = vunpack.c.l.b16 %v1173
      %v1213 = vunpack.c.l.b16 %v1174
      %v1214 = vunpack.c.l.b16 %v1175
      %v1215 = vunpack.c.l.b16 %v1176
      %v1216 = vunpack.c.l.b16 %v1177
      %v1217 = vunpack.c.l.b16 %v1178
      %v1218 = vpack.c.b16 %v1203, %v1202
      %v1219 = vpack.c.b16 %v1205, %v1204
      %v1220 = vpack.c.b16 %v1207, %v1206
      %v1221 = vpack.c.b16 %v1209, %v1208
      %v1222 = vpack.c.b16 %v1211, %v1210
      %v1223 = vpack.c.b16 %v1213, %v1212
      %v1224 = vpack.c.b16 %v1215, %v1214
      %v1225 = vpack.c.b16 %v1217, %v1216
      %1234 = vmatprep.subr.bf16.mxu0 0
      %1235 = vmatpush1.bf16.msra.mxu0 %v1218
      %1236 = vmatprep.subr.bf16.mxu0 0
      %1237 = vmatpush1.bf16.msra.mxu0 %v1219
      %1238 = vmatprep.subr.bf16.mxu0 0
      %1239 = vmatpush1.bf16.msra.mxu0 %v1220
      %1240 = vmatprep.subr.bf16.mxu0 0
      %1241 = vmatpush1.bf16.msra.mxu0 %v1221
      %1242 = vmatprep.subr.bf16.mxu0 0
      %1243 = vmatpush1.bf16.msra.mxu0 %v1222
      %1244 = vmatprep.subr.bf16.mxu0 0
      %1245 = vmatpush1.bf16.msra.mxu0 %v1223
      %1246 = vmatprep.subr.bf16.mxu0 0
      %1247 = vmatpush1.bf16.msra.mxu0 %v1224
      %1248 = vmatprep.subr.bf16.mxu0 0
      %1249 = vmatpush1.bf16.msra.mxu0 %v1225
      %1250 = vmatprep.subr.bf16.mxu0 0
      %1251 = vmatpush1.bf16.msra.mxu0 0
      %1252 = vmatprep.subr.bf16.mxu0 0
      %1253 = vmatpush1.bf16.msra.mxu0 0
      %1254 = vmatprep.subr.bf16.mxu0 0
      %1255 = vmatpush1.bf16.msra.mxu0 0
      %1256 = vmatprep.subr.bf16.mxu0 0
      %1257 = vmatpush1.bf16.msra.mxu0 0
      %1258 = vmatprep.subr.bf16.mxu0 0
      %1259 = vmatpush1.bf16.msra.mxu0 0
      %1260 = vmatprep.subr.bf16.mxu0 0
      %1261 = vmatpush1.bf16.msra.mxu0 0
      %1262 = vmatprep.subr.bf16.mxu0 0
      %1263 = vmatpush1.bf16.msra.mxu0 0
      %1264 = vmatprep.subr.bf16.mxu0 0
      %1265 = vmatpush1.bf16.msra.mxu0 0
      %1266 = vmatprep.mubr.bf16.mxu0 0
      %1267 = vmatmul.mubr.bf16.gmra.mrb[0].mxu0 %v1155
      %v1268 = vpop.f32.mrb[0].mxu0
      %v1269 = vadd.f32 %v1184, %v1268
      %v1270 = vpop.f32.mrb[0].mxu0
      %v1271 = vpop.f32.mrb[0].mxu0
      %v1272 = vadd.f32 %v1184, %v1271
      %v1273 = vpop.f32.mrb[0].mxu0
      %1274 = vmatprep.mubr.bf16.mxu0 0
      %1275 = vmatmul.mubr.bf16.gmra.mrb[0].mxu0 %v1156
      %v1276 = vpop.f32.mrb[0].mxu0
      %v1277 = vadd.f32 %v1184, %v1276
      %v1278 = vpop.f32.mrb[0].mxu0
      %v1279 = vpop.f32.mrb[0].mxu0
      %v1280 = vadd.f32 %v1184, %v1279
      %v1281 = vpop.f32.mrb[0].mxu0
      %1282 = vmatprep.mubr.bf16.mxu0 0
      %1283 = vmatmul.mubr.bf16.gmra.mrb[0].mxu0 %v1157
      %v1284 = vpop.f32.mrb[0].mxu0
      %v1285 = vadd.f32 %v1184, %v1284
      %v1286 = vpop.f32.mrb[0].mxu0
      %v1287 = vpop.f32.mrb[0].mxu0
      %v1288 = vadd.f32 %v1184, %v1287
      %v1289 = vpop.f32.mrb[0].mxu0
      %1290 = vmatprep.mubr.bf16.mxu0 0
      %1291 = vmatmul.mubr.bf16.gmra.mrb[0].mxu0 %v1158
      %v1292 = vpop.f32.mrb[0].mxu0
      %v1293 = vadd.f32 %v1184, %v1292
      %v1294 = vpop.f32.mrb[0].mxu0
      %v1295 = vpop.f32.mrb[0].mxu0
      %v1296 = vadd.f32 %v1184, %v1295
      %v1297 = vpop.f32.mrb[0].mxu0
      %1298 = vmatprep.mubr.bf16.mxu0 0
      %1299 = vmatmul.mubr.bf16.gmra.mrb[0].mxu0 %v1159
      %v1300 = vpop.f32.mrb[0].mxu0
      %v1301 = vadd.f32 %v1184, %v1300
      %v1302 = vpop.f32.mrb[0].mxu0
      %v1303 = vpop.f32.mrb[0].mxu0
      %v1304 = vadd.f32 %v1184, %v1303
      %v1305 = vpop.f32.mrb[0].mxu0
      %1306 = vmatprep.mubr.bf16.mxu0 0
      %1307 = vmatmul.mubr.bf16.gmra.mrb[0].mxu0 %v1160
      %v1308 = vpop.f32.mrb[0].mxu0
      %v1309 = vadd.f32 %v1184, %v1308
      %v1310 = vpop.f32.mrb[0].mxu0
      %v1311 = vpop.f32.mrb[0].mxu0
      %v1312 = vadd.f32 %v1184, %v1311
      %v1313 = vpop.f32.mrb[0].mxu0
      %1314 = vmatprep.mubr.bf16.mxu0 0
      %1315 = vmatmul.mubr.bf16.gmra.mrb[0].mxu0 %v1161
      %v1316 = vpop.f32.mrb[0].mxu0
      %v1317 = vadd.f32 %v1184, %v1316
      %v1318 = vpop.f32.mrb[0].mxu0
      %v1319 = vpop.f32.mrb[0].mxu0
      %v1320 = vadd.f32 %v1184, %v1319
      %v1321 = vpop.f32.mrb[0].mxu0
      %1322 = vmatprep.mubr.bf16.mxu0 0
      %1323 = vmatmul.mubr.bf16.gmra.mrb[0].mxu0 %v1162
      %v1324 = vpop.f32.mrb[0].mxu0
      %v1325 = vadd.f32 %v1184, %v1324
      %v1326 = vpop.f32.mrb[0].mxu0
      %v1327 = vpop.f32.mrb[0].mxu0
      %v1328 = vadd.f32 %v1184, %v1327
      %v1329 = vpop.f32.mrb[0].mxu0
      %1330 = vdwg.mxu0
      %v1331 = vmax.f32 %v1269, 0.0
      %v1332 = vmax.f32 %v1272, 0.0
      %v1333 = vmax.f32 %v1277, 0.0
      %v1334 = vmax.f32 %v1280, 0.0
      %v1335 = vmax.f32 %v1285, 0.0
      %v1336 = vmax.f32 %v1288, 0.0
      %v1337 = vmax.f32 %v1293, 0.0
      %v1338 = vmax.f32 %v1296, 0.0
      %v1339 = vmax.f32 %v1301, 0.0
      %v1340 = vmax.f32 %v1304, 0.0
      %v1341 = vmax.f32 %v1309, 0.0
      %v1342 = vmax.f32 %v1312, 0.0
      %v1343 = vmax.f32 %v1317, 0.0
      %v1344 = vmax.f32 %v1320, 0.0
      %v1345 = vmax.f32 %v1325, 0.0
      %v1346 = vmax.f32 %v1328, 0.0
      %v1347 = vpack.c.bf16 %v1332, %v1331
      %v1348 = vpack.c.bf16 %v1334, %v1333
      %v1349 = vpack.c.bf16 %v1336, %v1335
      %v1350 = vpack.c.bf16 %v1338, %v1337
      %v1351 = vpack.c.bf16 %v1340, %v1339
      %v1352 = vpack.c.bf16 %v1342, %v1341
      %v1353 = vpack.c.bf16 %v1344, %v1343
      %v1354 = vpack.c.bf16 %v1346, %v1345
      %v1355 = vld [vmem:[%s4] sm:$0xf]
      %v1356 = vld [vmem:[%s4 + $0x4] sm:$0xf]
      %v1357 = vld [vmem:[%s4 + $0x8] sm:$0xf]
      %v1358 = vld [vmem:[%s4 + $0xc] sm:$0xf]
      %v1359 = vld [vmem:[%s4 + $0x10] sm:$0xf]
      %v1360 = vld [vmem:[%s4 + $0x14] sm:$0xf]
      %v1361 = vld [vmem:[%s4 + $0x18] sm:$0xf]
      %v1362 = vld [vmem:[%s4 + $0x1c] sm:$0xf]
      %v1363 = vld [vmem:[%s4 + $0x20] sm:$0xf]
      %v1364 = vld [vmem:[%s4 + $0x24] sm:$0xf]
      %v1365 = vld [vmem:[%s4 + $0x28] sm:$0xf]
      %v1366 = vld [vmem:[%s4 + $0x2c] sm:$0xf]
      %v1367 = vld [vmem:[%s4 + $0x30] sm:$0xf]
      %v1368 = vld [vmem:[%s4 + $0x34] sm:$0xf]
      %v1369 = vld [vmem:[%s4 + $0x38] sm:$0xf]
      %v1370 = vld [vmem:[%s4 + $0x3c] sm:$0xf]
      %v1371 = vld [vmem:[%s12] sm:$0x1]
      %v1373 = vlaneseq
      %v1374 = vshrl.u32 %v1373, 7
      %v1375 = vsub.s32 0, %v1374
      %v1376 = vrot.slane %v1371, %v1375
      %v1394 = vunpack.c.l.b16 %v1355
      %v1395 = vunpack.c.l.b16 %v1356
      %v1396 = vunpack.c.l.b16 %v1357
      %v1397 = vunpack.c.l.b16 %v1358
      %v1398 = vunpack.c.l.b16 %v1359
      %v1399 = vunpack.c.l.b16 %v1360
      %v1400 = vunpack.c.l.b16 %v1361
      %v1401 = vunpack.c.l.b16 %v1362
      %v1402 = vunpack.c.l.b16 %v1363
      %v1403 = vunpack.c.l.b16 %v1364
      %v1404 = vunpack.c.l.b16 %v1365
      %v1405 = vunpack.c.l.b16 %v1366
      %v1406 = vunpack.c.l.b16 %v1367
      %v1407 = vunpack.c.l.b16 %v1368
      %v1408 = vunpack.c.l.b16 %v1369
      %v1409 = vunpack.c.l.b16 %v1370
      %v1410 = vpack.c.b16 %v1395, %v1394
      %v1411 = vpack.c.b16 %v1397, %v1396
      %v1412 = vpack.c.b16 %v1399, %v1398
      %v1413 = vpack.c.b16 %v1401, %v1400
      %v1414 = vpack.c.b16 %v1403, %v1402
      %v1415 = vpack.c.b16 %v1405, %v1404
      %v1416 = vpack.c.b16 %v1407, %v1406
      %v1417 = vpack.c.b16 %v1409, %v1408
      %1426 = vmatprep.subr.bf16.mxu0 0
      %1427 = vmatpush1.bf16.msra.mxu0 %v1410
      %1428 = vmatprep.subr.bf16.mxu0 0
      %1429 = vmatpush1.bf16.msra.mxu0 %v1411
      %1430 = vmatprep.subr.bf16.mxu0 0
      %1431 = vmatpush1.bf16.msra.mxu0 %v1412
      %1432 = vmatprep.subr.bf16.mxu0 0
      %1433 = vmatpush1.bf16.msra.mxu0 %v1413
      %1434 = vmatprep.subr.bf16.mxu0 0
      %1435 = vmatpush1.bf16.msra.mxu0 %v1414
      %1436 = vmatprep.subr.bf16.mxu0 0
      %1437 = vmatpush1.bf16.msra.mxu0 %v1415
      %1438 = vmatprep.subr.bf16.mxu0 0
      %1439 = vmatpush1.bf16.msra.mxu0 %v1416
      %1440 = vmatprep.subr.bf16.mxu0 0
      %1441 = vmatpush1.bf16.msra.mxu0 %v1417
      %1442 = vmatprep.subr.bf16.mxu0 0
      %1443 = vmatpush1.bf16.msra.mxu0 0
      %1444 = vmatprep.subr.bf16.mxu0 0
      %1445 = vmatpush1.bf16.msra.mxu0 0
      %1446 = vmatprep.subr.bf16.mxu0 0
      %1447 = vmatpush1.bf16.msra.mxu0 0
      %1448 = vmatprep.subr.bf16.mxu0 0
      %1449 = vmatpush1.bf16.msra.mxu0 0
      %1450 = vmatprep.subr.bf16.mxu0 0
      %1451 = vmatpush1.bf16.msra.mxu0 0
      %1452 = vmatprep.subr.bf16.mxu0 0
      %1453 = vmatpush1.bf16.msra.mxu0 0
      %1454 = vmatprep.subr.bf16.mxu0 0
      %1455 = vmatpush1.bf16.msra.mxu0 0
      %1456 = vmatprep.subr.bf16.mxu0 0
      %1457 = vmatpush1.bf16.msra.mxu0 0
      %1458 = vmatprep.mubr.bf16.mxu0 0
      %1459 = vmatmul.mubr.bf16.gmra.mrb[0].mxu0 %v1347
      %v1460 = vpop.f32.mrb[0].mxu0
      %v1461 = vadd.f32 %v1376, %v1460
      %v1462 = vpop.f32.mrb[0].mxu0
      %v1463 = vpop.f32.mrb[0].mxu0
      %v1464 = vadd.f32 %v1376, %v1463
      %v1465 = vpop.f32.mrb[0].mxu0
      %1466 = vmatprep.mubr.bf16.mxu0 0
      %1467 = vmatmul.mubr.bf16.gmra.mrb[0].mxu0 %v1348
      %v1468 = vpop.f32.mrb[0].mxu0
      %v1469 = vadd.f32 %v1376, %v1468
      %v1470 = vpop.f32.mrb[0].mxu0
      %v1471 = vpop.f32.mrb[0].mxu0
      %v1472 = vadd.f32 %v1376, %v1471
      %v1473 = vpop.f32.mrb[0].mxu0
      %1474 = vmatprep.mubr.bf16.mxu0 0
      %1475 = vmatmul.mubr.bf16.gmra.mrb[0].mxu0 %v1349
      %v1476 = vpop.f32.mrb[0].mxu0
      %v1477 = vadd.f32 %v1376, %v1476
      %v1478 = vpop.f32.mrb[0].mxu0
      %v1479 = vpop.f32.mrb[0].mxu0
      %v1480 = vadd.f32 %v1376, %v1479
      %v1481 = vpop.f32.mrb[0].mxu0
      %1482 = vmatprep.mubr.bf16.mxu0 0
      %1483 = vmatmul.mubr.bf16.gmra.mrb[0].mxu0 %v1350
      %v1484 = vpop.f32.mrb[0].mxu0
      %v1485 = vadd.f32 %v1376, %v1484
      %v1486 = vpop.f32.mrb[0].mxu0
      %v1487 = vpop.f32.mrb[0].mxu0
      %v1488 = vadd.f32 %v1376, %v1487
      %v1489 = vpop.f32.mrb[0].mxu0
      %1490 = vmatprep.mubr.bf16.mxu0 0
      %1491 = vmatmul.mubr.bf16.gmra.mrb[0].mxu0 %v1351
      %v1492 = vpop.f32.mrb[0].mxu0
      %v1493 = vadd.f32 %v1376, %v1492
      %v1494 = vpop.f32.mrb[0].mxu0
      %v1495 = vpop.f32.mrb[0].mxu0
      %v1496 = vadd.f32 %v1376, %v1495
      %v1497 = vpop.f32.mrb[0].mxu0
      %1498 = vmatprep.mubr.bf16.mxu0 0
      %1499 = vmatmul.mubr.bf16.gmra.mrb[0].mxu0 %v1352
      %v1500 = vpop.f32.mrb[0].mxu0
      %v1501 = vadd.f32 %v1376, %v1500
      %v1502 = vpop.f32.mrb[0].mxu0
      %v1503 = vpop.f32.mrb[0].mxu0
      %v1504 = vadd.f32 %v1376, %v1503
      %v1505 = vpop.f32.mrb[0].mxu0
      %1506 = vmatprep.mubr.bf16.mxu0 0
      %1507 = vmatmul.mubr.bf16.gmra.mrb[0].mxu0 %v1353
      %v1508 = vpop.f32.mrb[0].mxu0
      %v1509 = vadd.f32 %v1376, %v1508
      %v1510 = vpop.f32.mrb[0].mxu0
      %v1511 = vpop.f32.mrb[0].mxu0
      %v1512 = vadd.f32 %v1376, %v1511
      %v1513 = vpop.f32.mrb[0].mxu0
      %1514 = vmatprep.mubr.bf16.mxu0 0
      %1515 = vmatmul.mubr.bf16.gmra.mrb[0].mxu0 %v1354
      %v1516 = vpop.f32.mrb[0].mxu0
      %v1517 = vadd.f32 %v1376, %v1516
      %v1518 = vpop.f32.mrb[0].mxu0
      %v1519 = vpop.f32.mrb[0].mxu0
      %v1520 = vadd.f32 %v1376, %v1519
      %v1521 = vpop.f32.mrb[0].mxu0
      %1522 = vdwg.mxu0
      %v1523 = vmax.f32 %v1461, 0.0
      %v1524 = vmax.f32 %v1464, 0.0
      %v1525 = vmax.f32 %v1469, 0.0
      %v1526 = vmax.f32 %v1472, 0.0
      %v1527 = vmax.f32 %v1477, 0.0
      %v1528 = vmax.f32 %v1480, 0.0
      %v1529 = vmax.f32 %v1485, 0.0
      %v1530 = vmax.f32 %v1488, 0.0
      %v1531 = vmax.f32 %v1493, 0.0
      %v1532 = vmax.f32 %v1496, 0.0
      %v1533 = vmax.f32 %v1501, 0.0
      %v1534 = vmax.f32 %v1504, 0.0
      %v1535 = vmax.f32 %v1509, 0.0
      %v1536 = vmax.f32 %v1512, 0.0
      %v1537 = vmax.f32 %v1517, 0.0
      %v1538 = vmax.f32 %v1520, 0.0
      %v1539 = vpack.c.bf16 %v1524, %v1523
      %v1540 = vpack.c.bf16 %v1526, %v1525
      %v1541 = vpack.c.bf16 %v1528, %v1527
      %v1542 = vpack.c.bf16 %v1530, %v1529
      %v1543 = vpack.c.bf16 %v1532, %v1531
      %v1544 = vpack.c.bf16 %v1534, %v1533
      %v1545 = vpack.c.bf16 %v1536, %v1535
      %v1546 = vpack.c.bf16 %v1538, %v1537
      %v1547 = vld [vmem:[%s5] sm:$0xf]
      %v1548 = vld [vmem:[%s5 + $0x4] sm:$0xf]
      %v1549 = vld [vmem:[%s5 + $0x8] sm:$0xf]
      %v1550 = vld [vmem:[%s5 + $0xc] sm:$0xf]
      %v1551 = vld [vmem:[%s5 + $0x10] sm:$0xf]
      %v1552 = vld [vmem:[%s5 + $0x14] sm:$0xf]
      %v1553 = vld [vmem:[%s5 + $0x18] sm:$0xf]
      %v1554 = vld [vmem:[%s5 + $0x1c] sm:$0xf]
      %v1555 = vld [vmem:[%s5 + $0x20] sm:$0xf]
      %v1556 = vld [vmem:[%s5 + $0x24] sm:$0xf]
      %v1557 = vld [vmem:[%s5 + $0x28] sm:$0xf]
      %v1558 = vld [vmem:[%s5 + $0x2c] sm:$0xf]
      %v1559 = vld [vmem:[%s5 + $0x30] sm:$0xf]
      %v1560 = vld [vmem:[%s5 + $0x34] sm:$0xf]
      %v1561 = vld [vmem:[%s5 + $0x38] sm:$0xf]
      %v1562 = vld [vmem:[%s5 + $0x3c] sm:$0xf]
      %v1563 = vld [vmem:[%s13] sm:$0x1]
      %v1565 = vlaneseq
      %v1566 = vshrl.u32 %v1565, 7
      %v1567 = vsub.s32 0, %v1566
      %v1568 = vrot.slane %v1563, %v1567
      %v1586 = vunpack.c.l.b16 %v1547
      %v1587 = vunpack.c.l.b16 %v1548
      %v1588 = vunpack.c.l.b16 %v1549
      %v1589 = vunpack.c.l.b16 %v1550
      %v1590 = vunpack.c.l.b16 %v1551
      %v1591 = vunpack.c.l.b16 %v1552
      %v1592 = vunpack.c.l.b16 %v1553
      %v1593 = vunpack.c.l.b16 %v1554
      %v1594 = vunpack.c.l.b16 %v1555
      %v1595 = vunpack.c.l.b16 %v1556
      %v1596 = vunpack.c.l.b16 %v1557
      %v1597 = vunpack.c.l.b16 %v1558
      %v1598 = vunpack.c.l.b16 %v1559
      %v1599 = vunpack.c.l.b16 %v1560
      %v1600 = vunpack.c.l.b16 %v1561
      %v1601 = vunpack.c.l.b16 %v1562
      %v1602 = vpack.c.b16 %v1587, %v1586
      %v1603 = vpack.c.b16 %v1589, %v1588
      %v1604 = vpack.c.b16 %v1591, %v1590
      %v1605 = vpack.c.b16 %v1593, %v1592
      %v1606 = vpack.c.b16 %v1595, %v1594
      %v1607 = vpack.c.b16 %v1597, %v1596
      %v1608 = vpack.c.b16 %v1599, %v1598
      %v1609 = vpack.c.b16 %v1601, %v1600
      %1618 = vmatprep.subr.bf16.mxu0 0
      %1619 = vmatpush1.bf16.msra.mxu0 %v1602
      %1620 = vmatprep.subr.bf16.mxu0 0
      %1621 = vmatpush1.bf16.msra.mxu0 %v1603
      %1622 = vmatprep.subr.bf16.mxu0 0
      %1623 = vmatpush1.bf16.msra.mxu0 %v1604
      %1624 = vmatprep.subr.bf16.mxu0 0
      %1625 = vmatpush1.bf16.msra.mxu0 %v1605
      %1626 = vmatprep.subr.bf16.mxu0 0
      %1627 = vmatpush1.bf16.msra.mxu0 %v1606
      %1628 = vmatprep.subr.bf16.mxu0 0
      %1629 = vmatpush1.bf16.msra.mxu0 %v1607
      %1630 = vmatprep.subr.bf16.mxu0 0
      %1631 = vmatpush1.bf16.msra.mxu0 %v1608
      %1632 = vmatprep.subr.bf16.mxu0 0
      %1633 = vmatpush1.bf16.msra.mxu0 %v1609
      %1634 = vmatprep.subr.bf16.mxu0 0
      %1635 = vmatpush1.bf16.msra.mxu0 0
      %1636 = vmatprep.subr.bf16.mxu0 0
      %1637 = vmatpush1.bf16.msra.mxu0 0
      %1638 = vmatprep.subr.bf16.mxu0 0
      %1639 = vmatpush1.bf16.msra.mxu0 0
      %1640 = vmatprep.subr.bf16.mxu0 0
      %1641 = vmatpush1.bf16.msra.mxu0 0
      %1642 = vmatprep.subr.bf16.mxu0 0
      %1643 = vmatpush1.bf16.msra.mxu0 0
      %1644 = vmatprep.subr.bf16.mxu0 0
      %1645 = vmatpush1.bf16.msra.mxu0 0
      %1646 = vmatprep.subr.bf16.mxu0 0
      %1647 = vmatpush1.bf16.msra.mxu0 0
      %1648 = vmatprep.subr.bf16.mxu0 0
      %1649 = vmatpush1.bf16.msra.mxu0 0
      %1650 = vmatprep.mubr.bf16.mxu0 0
      %1651 = vmatmul.mubr.bf16.gmra.mrb[0].mxu0 %v1539
      %v1652 = vpop.f32.mrb[0].mxu0
      %v1653 = vadd.f32 %v1568, %v1652
      %v1654 = vpop.f32.mrb[0].mxu0
      %v1655 = vpop.f32.mrb[0].mxu0
      %v1656 = vadd.f32 %v1568, %v1655
      %v1657 = vpop.f32.mrb[0].mxu0
      %1658 = vmatprep.mubr.bf16.mxu0 0
      %1659 = vmatmul.mubr.bf16.gmra.mrb[0].mxu0 %v1540
      %v1660 = vpop.f32.mrb[0].mxu0
      %v1661 = vadd.f32 %v1568, %v1660
      %v1662 = vpop.f32.mrb[0].mxu0
      %v1663 = vpop.f32.mrb[0].mxu0
      %v1664 = vadd.f32 %v1568, %v1663
      %v1665 = vpop.f32.mrb[0].mxu0
      %1666 = vmatprep.mubr.bf16.mxu0 0
      %1667 = vmatmul.mubr.bf16.gmra.mrb[0].mxu0 %v1541
      %v1668 = vpop.f32.mrb[0].mxu0
      %v1669 = vadd.f32 %v1568, %v1668
      %v1670 = vpop.f32.mrb[0].mxu0
      %v1671 = vpop.f32.mrb[0].mxu0
      %v1672 = vadd.f32 %v1568, %v1671
      %v1673 = vpop.f32.mrb[0].mxu0
      %1674 = vmatprep.mubr.bf16.mxu0 0
      %1675 = vmatmul.mubr.bf16.gmra.mrb[0].mxu0 %v1542
      %v1676 = vpop.f32.mrb[0].mxu0
      %v1677 = vadd.f32 %v1568, %v1676
      %v1678 = vpop.f32.mrb[0].mxu0
      %v1679 = vpop.f32.mrb[0].mxu0
      %v1680 = vadd.f32 %v1568, %v1679
      %v1681 = vpop.f32.mrb[0].mxu0
      %1682 = vmatprep.mubr.bf16.mxu0 0
      %1683 = vmatmul.mubr.bf16.gmra.mrb[0].mxu0 %v1543
      %v1684 = vpop.f32.mrb[0].mxu0
      %v1685 = vadd.f32 %v1568, %v1684
      %v1686 = vpop.f32.mrb[0].mxu0
      %v1687 = vpop.f32.mrb[0].mxu0
      %v1688 = vadd.f32 %v1568, %v1687
      %v1689 = vpop.f32.mrb[0].mxu0
      %1690 = vmatprep.mubr.bf16.mxu0 0
      %1691 = vmatmul.mubr.bf16.gmra.mrb[0].mxu0 %v1544
      %v1692 = vpop.f32.mrb[0].mxu0
      %v1693 = vadd.f32 %v1568, %v1692
      %v1694 = vpop.f32.mrb[0].mxu0
      %v1695 = vpop.f32.mrb[0].mxu0
      %v1696 = vadd.f32 %v1568, %v1695
      %v1697 = vpop.f32.mrb[0].mxu0
      %1698 = vmatprep.mubr.bf16.mxu0 0
      %1699 = vmatmul.mubr.bf16.gmra.mrb[0].mxu0 %v1545
      %v1700 = vpop.f32.mrb[0].mxu0
      %v1701 = vadd.f32 %v1568, %v1700
      %v1702 = vpop.f32.mrb[0].mxu0
      %v1703 = vpop.f32.mrb[0].mxu0
      %v1704 = vadd.f32 %v1568, %v1703
      %v1705 = vpop.f32.mrb[0].mxu0
      %1706 = vmatprep.mubr.bf16.mxu0 0
      %1707 = vmatmul.mubr.bf16.gmra.mrb[0].mxu0 %v1546
      %v1708 = vpop.f32.mrb[0].mxu0
      %v1709 = vadd.f32 %v1568, %v1708
      %v1710 = vpop.f32.mrb[0].mxu0
      %v1711 = vpop.f32.mrb[0].mxu0
      %v1712 = vadd.f32 %v1568, %v1711
      %v1713 = vpop.f32.mrb[0].mxu0
      %1714 = vdwg.mxu0
      %v1715 = vmax.f32 %v1653, 0.0
      %v1716 = vmax.f32 %v1656, 0.0
      %v1717 = vmax.f32 %v1661, 0.0
      %v1718 = vmax.f32 %v1664, 0.0
      %v1719 = vmax.f32 %v1669, 0.0
      %v1720 = vmax.f32 %v1672, 0.0
      %v1721 = vmax.f32 %v1677, 0.0
      %v1722 = vmax.f32 %v1680, 0.0
      %v1723 = vmax.f32 %v1685, 0.0
      %v1724 = vmax.f32 %v1688, 0.0
      %v1725 = vmax.f32 %v1693, 0.0
      %v1726 = vmax.f32 %v1696, 0.0
      %v1727 = vmax.f32 %v1701, 0.0
      %v1728 = vmax.f32 %v1704, 0.0
      %v1729 = vmax.f32 %v1709, 0.0
      %v1730 = vmax.f32 %v1712, 0.0
      %v1731 = vpack.c.bf16 %v1716, %v1715
      %v1732 = vpack.c.bf16 %v1718, %v1717
      %v1733 = vpack.c.bf16 %v1720, %v1719
      %v1734 = vpack.c.bf16 %v1722, %v1721
      %v1735 = vpack.c.bf16 %v1724, %v1723
      %v1736 = vpack.c.bf16 %v1726, %v1725
      %v1737 = vpack.c.bf16 %v1728, %v1727
      %v1738 = vpack.c.bf16 %v1730, %v1729
      %v1739 = vld [vmem:[%s6] sm:$0xf]
      %v1740 = vld [vmem:[%s6 + $0x4] sm:$0xf]
      %v1741 = vld [vmem:[%s6 + $0x8] sm:$0xf]
      %v1742 = vld [vmem:[%s6 + $0xc] sm:$0xf]
      %v1743 = vld [vmem:[%s6 + $0x10] sm:$0xf]
      %v1744 = vld [vmem:[%s6 + $0x14] sm:$0xf]
      %v1745 = vld [vmem:[%s6 + $0x18] sm:$0xf]
      %v1746 = vld [vmem:[%s6 + $0x1c] sm:$0xf]
      %v1747 = vld [vmem:[%s6 + $0x20] sm:$0xf]
      %v1748 = vld [vmem:[%s6 + $0x24] sm:$0xf]
      %v1749 = vld [vmem:[%s6 + $0x28] sm:$0xf]
      %v1750 = vld [vmem:[%s6 + $0x2c] sm:$0xf]
      %v1751 = vld [vmem:[%s6 + $0x30] sm:$0xf]
      %v1752 = vld [vmem:[%s6 + $0x34] sm:$0xf]
      %v1753 = vld [vmem:[%s6 + $0x38] sm:$0xf]
      %v1754 = vld [vmem:[%s6 + $0x3c] sm:$0xf]
      %v1755 = vld [vmem:[%s6 + $0x40] sm:$0xf]
      %v1756 = vld [vmem:[%s6 + $0x44] sm:$0xf]
      %v1757 = vld [vmem:[%s6 + $0x48] sm:$0xf]
      %v1758 = vld [vmem:[%s6 + $0x4c] sm:$0xf]
      %v1759 = vld [vmem:[%s6 + $0x50] sm:$0xf]
      %v1760 = vld [vmem:[%s6 + $0x54] sm:$0xf]
      %v1761 = vld [vmem:[%s6 + $0x58] sm:$0xf]
      %v1762 = vld [vmem:[%s6 + $0x5c] sm:$0xf]
      %v1763 = vld [vmem:[%s6 + $0x60] sm:$0xf]
      %v1764 = vld [vmem:[%s6 + $0x64] sm:$0xf]
      %v1765 = vld [vmem:[%s6 + $0x68] sm:$0xf]
      %v1766 = vld [vmem:[%s6 + $0x6c] sm:$0xf]
      %v1767 = vld [vmem:[%s6 + $0x70] sm:$0xf]
      %v1768 = vld [vmem:[%s6 + $0x74] sm:$0xf]
      %v1769 = vld [vmem:[%s6 + $0x78] sm:$0xf]
      %v1770 = vld [vmem:[%s6 + $0x7c] sm:$0xf]
      %v1771 = vld [vmem:[%s14] sm:$0x1]
      %v1773 = vlaneseq
      %v1774 = vshrl.u32 %v1773, 7
      %v1775 = vsub.s32 0, %v1774
      %v1776 = vrot.slane %v1771, %v1775
      %v1810 = vunpack.c.l.b16 %v1739
      %v1811 = vunpack.c.l.b16 %v1740
      %v1812 = vunpack.c.l.b16 %v1741
      %v1813 = vunpack.c.l.b16 %v1742
      %v1814 = vunpack.c.l.b16 %v1743
      %v1815 = vunpack.c.l.b16 %v1744
      %v1816 = vunpack.c.l.b16 %v1745
      %v1817 = vunpack.c.l.b16 %v1746
      %v1818 = vunpack.c.l.b16 %v1747
      %v1819 = vunpack.c.l.b16 %v1748
      %v1820 = vunpack.c.l.b16 %v1749
      %v1821 = vunpack.c.l.b16 %v1750
      %v1822 = vunpack.c.l.b16 %v1751
      %v1823 = vunpack.c.l.b16 %v1752
      %v1824 = vunpack.c.l.b16 %v1753
      %v1825 = vunpack.c.l.b16 %v1754
      %v1826 = vunpack.c.l.b16 %v1755
      %v1827 = vunpack.c.l.b16 %v1756
      %v1828 = vunpack.c.l.b16 %v1757
      %v1829 = vunpack.c.l.b16 %v1758
      %v1830 = vunpack.c.l.b16 %v1759
      %v1831 = vunpack.c.l.b16 %v1760
      %v1832 = vunpack.c.l.b16 %v1761
      %v1833 = vunpack.c.l.b16 %v1762
      %v1834 = vunpack.c.l.b16 %v1763
      %v1835 = vunpack.c.l.b16 %v1764
      %v1836 = vunpack.c.l.b16 %v1765
      %v1837 = vunpack.c.l.b16 %v1766
      %v1838 = vunpack.c.l.b16 %v1767
      %v1839 = vunpack.c.l.b16 %v1768
      %v1840 = vunpack.c.l.b16 %v1769
      %v1841 = vunpack.c.l.b16 %v1770
      %v1842 = vpack.c.b16 %v1811, %v1810
      %v1843 = vpack.c.b16 %v1813, %v1812
      %v1844 = vpack.c.b16 %v1815, %v1814
      %v1845 = vpack.c.b16 %v1817, %v1816
      %v1846 = vpack.c.b16 %v1819, %v1818
      %v1847 = vpack.c.b16 %v1821, %v1820
      %v1848 = vpack.c.b16 %v1823, %v1822
      %v1849 = vpack.c.b16 %v1825, %v1824
      %v1850 = vpack.c.b16 %v1827, %v1826
      %v1851 = vpack.c.b16 %v1829, %v1828
      %v1852 = vpack.c.b16 %v1831, %v1830
      %v1853 = vpack.c.b16 %v1833, %v1832
      %v1854 = vpack.c.b16 %v1835, %v1834
      %v1855 = vpack.c.b16 %v1837, %v1836
      %v1856 = vpack.c.b16 %v1839, %v1838
      %v1857 = vpack.c.b16 %v1841, %v1840
      %1874 = vmatprep.subr.bf16.mxu0 0
      %1875 = vmatpush1.bf16.msra.mxu0 %v1842
      %1876 = vmatprep.subr.bf16.mxu0 0
      %1877 = vmatpush1.bf16.msra.mxu0 %v1843
      %1878 = vmatprep.subr.bf16.mxu0 0
      %1879 = vmatpush1.bf16.msra.mxu0 %v1844
      %1880 = vmatprep.subr.bf16.mxu0 0
      %1881 = vmatpush1.bf16.msra.mxu0 %v1845
      %1882 = vmatprep.subr.bf16.mxu0 0
      %1883 = vmatpush1.bf16.msra.mxu0 %v1846
      %1884 = vmatprep.subr.bf16.mxu0 0
      %1885 = vmatpush1.bf16.msra.mxu0 %v1847
      %1886 = vmatprep.subr.bf16.mxu0 0
      %1887 = vmatpush1.bf16.msra.mxu0 %v1848
      %1888 = vmatprep.subr.bf16.mxu0 0
      %1889 = vmatpush1.bf16.msra.mxu0 %v1849
      %1890 = vmatprep.subr.bf16.mxu0 0
      %1891 = vmatpush1.bf16.msra.mxu0 %v1850
      %1892 = vmatprep.subr.bf16.mxu0 0
      %1893 = vmatpush1.bf16.msra.mxu0 %v1851
      %1894 = vmatprep.subr.bf16.mxu0 0
      %1895 = vmatpush1.bf16.msra.mxu0 %v1852
      %1896 = vmatprep.subr.bf16.mxu0 0
      %1897 = vmatpush1.bf16.msra.mxu0 %v1853
      %1898 = vmatprep.subr.bf16.mxu0 0
      %1899 = vmatpush1.bf16.msra.mxu0 %v1854
      %1900 = vmatprep.subr.bf16.mxu0 0
      %1901 = vmatpush1.bf16.msra.mxu0 %v1855
      %1902 = vmatprep.subr.bf16.mxu0 0
      %1903 = vmatpush1.bf16.msra.mxu0 %v1856
      %1904 = vmatprep.subr.bf16.mxu0 0
      %1905 = vmatpush1.bf16.msra.mxu0 %v1857
      %1906 = vmatprep.mubr.bf16.mxu0 %v1731
      %1907 = vmatmul.mubr.bf16.gmra.mrb[0].mxu0 %v786
      %v1908 = vpop.f32.mrb[0].mxu0
      %v1909 = vadd.f32 %v1776, %v1908
      %v1910 = vpop.f32.mrb[0].mxu0
      %v1911 = vpop.f32.mrb[0].mxu0
      %v1912 = vadd.f32 %v1776, %v1911
      %v1913 = vpop.f32.mrb[0].mxu0
      %1914 = vmatprep.mubr.bf16.mxu0 %v1732
      %1915 = vmatmul.mubr.bf16.gmra.mrb[0].mxu0 %v787
      %v1916 = vpop.f32.mrb[0].mxu0
      %v1917 = vadd.f32 %v1776, %v1916
      %v1918 = vpop.f32.mrb[0].mxu0
      %v1919 = vpop.f32.mrb[0].mxu0
      %v1920 = vadd.f32 %v1776, %v1919
      %v1921 = vpop.f32.mrb[0].mxu0
      %1922 = vmatprep.mubr.bf16.mxu0 %v1733
      %1923 = vmatmul.mubr.bf16.gmra.mrb[0].mxu0 %v788
      %v1924 = vpop.f32.mrb[0].mxu0
      %v1925 = vadd.f32 %v1776, %v1924
      %v1926 = vpop.f32.mrb[0].mxu0
      %v1927 = vpop.f32.mrb[0].mxu0
      %v1928 = vadd.f32 %v1776, %v1927
      %v1929 = vpop.f32.mrb[0].mxu0
      %1930 = vmatprep.mubr.bf16.mxu0 %v1734
      %1931 = vmatmul.mubr.bf16.gmra.mrb[0].mxu0 %v789
      %v1932 = vpop.f32.mrb[0].mxu0
      %v1933 = vadd.f32 %v1776, %v1932
      %v1934 = vpop.f32.mrb[0].mxu0
      %v1935 = vpop.f32.mrb[0].mxu0
      %v1936 = vadd.f32 %v1776, %v1935
      %v1937 = vpop.f32.mrb[0].mxu0
      %1938 = vmatprep.mubr.bf16.mxu0 %v1735
      %1939 = vmatmul.mubr.bf16.gmra.mrb[0].mxu0 %v790
      %v1940 = vpop.f32.mrb[0].mxu0
      %v1941 = vadd.f32 %v1776, %v1940
      %v1942 = vpop.f32.mrb[0].mxu0
      %v1943 = vpop.f32.mrb[0].mxu0
      %v1944 = vadd.f32 %v1776, %v1943
      %v1945 = vpop.f32.mrb[0].mxu0
      %1946 = vmatprep.mubr.bf16.mxu0 %v1736
      %1947 = vmatmul.mubr.bf16.gmra.mrb[0].mxu0 %v791
      %v1948 = vpop.f32.mrb[0].mxu0
      %v1949 = vadd.f32 %v1776, %v1948
      %v1950 = vpop.f32.mrb[0].mxu0
      %v1951 = vpop.f32.mrb[0].mxu0
      %v1952 = vadd.f32 %v1776, %v1951
      %v1953 = vpop.f32.mrb[0].mxu0
      %1954 = vmatprep.mubr.bf16.mxu0 %v1737
      %1955 = vmatmul.mubr.bf16.gmra.mrb[0].mxu0 %v792
      %v1956 = vpop.f32.mrb[0].mxu0
      %v1957 = vadd.f32 %v1776, %v1956
      %v1958 = vpop.f32.mrb[0].mxu0
      %v1959 = vpop.f32.mrb[0].mxu0
      %v1960 = vadd.f32 %v1776, %v1959
      %v1961 = vpop.f32.mrb[0].mxu0
      %1962 = vmatprep.mubr.bf16.mxu0 %v1738
      %1963 = vmatmul.mubr.bf16.gmra.mrb[0].mxu0 %v793
      %v1964 = vpop.f32.mrb[0].mxu0
      %v1965 = vadd.f32 %v1776, %v1964
      %v1966 = vpop.f32.mrb[0].mxu0
      %v1967 = vpop.f32.mrb[0].mxu0
      %v1968 = vadd.f32 %v1776, %v1967
      %v1969 = vpop.f32.mrb[0].mxu0
      %1970 = vdwg.mxu0
      %v1971 = vmax.f32 %v1909, 0.0
      %v1972 = vmax.f32 %v1912, 0.0
      %v1973 = vmax.f32 %v1917, 0.0
      %v1974 = vmax.f32 %v1920, 0.0
      %v1975 = vmax.f32 %v1925, 0.0
      %v1976 = vmax.f32 %v1928, 0.0
      %v1977 = vmax.f32 %v1933, 0.0
      %v1978 = vmax.f32 %v1936, 0.0
      %v1979 = vmax.f32 %v1941, 0.0
      %v1980 = vmax.f32 %v1944, 0.0
      %v1981 = vmax.f32 %v1949, 0.0
      %v1982 = vmax.f32 %v1952, 0.0
      %v1983 = vmax.f32 %v1957, 0.0
      %v1984 = vmax.f32 %v1960, 0.0
      %v1985 = vmax.f32 %v1965, 0.0
      %v1986 = vmax.f32 %v1968, 0.0
      %v1987 = vpack.c.bf16 %v1972, %v1971
      %v1988 = vpack.c.bf16 %v1974, %v1973
      %v1989 = vpack.c.bf16 %v1976, %v1975
      %v1990 = vpack.c.bf16 %v1978, %v1977
      %v1991 = vpack.c.bf16 %v1980, %v1979
      %v1992 = vpack.c.bf16 %v1982, %v1981
      %v1993 = vpack.c.bf16 %v1984, %v1983
      %v1994 = vpack.c.bf16 %v1986, %v1985
      %v1995 = vld [vmem:[%s7] sm:$0xf]
      %v1996 = vld [vmem:[%s7 + $0x4] sm:$0xf]
      %v1997 = vld [vmem:[%s7 + $0x8] sm:$0xf]
      %v1998 = vld [vmem:[%s7 + $0xc] sm:$0xf]
      %v1999 = vld [vmem:[%s7 + $0x10] sm:$0xf]
      %v2000 = vld [vmem:[%s7 + $0x14] sm:$0xf]
      %v2001 = vld [vmem:[%s7 + $0x18] sm:$0xf]
      %v2002 = vld [vmem:[%s7 + $0x1c] sm:$0xf]
      %v2003 = vld [vmem:[%s7 + $0x20] sm:$0xf]
      %v2004 = vld [vmem:[%s7 + $0x24] sm:$0xf]
      %v2005 = vld [vmem:[%s7 + $0x28] sm:$0xf]
      %v2006 = vld [vmem:[%s7 + $0x2c] sm:$0xf]
      %v2007 = vld [vmem:[%s7 + $0x30] sm:$0xf]
      %v2008 = vld [vmem:[%s7 + $0x34] sm:$0xf]
      %v2009 = vld [vmem:[%s7 + $0x38] sm:$0xf]
      %v2010 = vld [vmem:[%s7 + $0x3c] sm:$0xf]
      %v2011 = vld [vmem:[%s15] sm:$0x1]
      %v2013 = vlaneseq
      %v2014 = vshrl.u32 %v2013, 7
      %v2015 = vsub.s32 0, %v2014
      %v2016 = vrot.slane %v2011, %v2015
      %v2034 = vunpack.c.l.b16 %v1995
      %v2035 = vunpack.c.l.b16 %v1996
      %v2036 = vunpack.c.l.b16 %v1997
      %v2037 = vunpack.c.l.b16 %v1998
      %v2038 = vunpack.c.l.b16 %v1999
      %v2039 = vunpack.c.l.b16 %v2000
      %v2040 = vunpack.c.l.b16 %v2001
      %v2041 = vunpack.c.l.b16 %v2002
      %v2042 = vunpack.c.l.b16 %v2003
      %v2043 = vunpack.c.l.b16 %v2004
      %v2044 = vunpack.c.l.b16 %v2005
      %v2045 = vunpack.c.l.b16 %v2006
      %v2046 = vunpack.c.l.b16 %v2007
      %v2047 = vunpack.c.l.b16 %v2008
      %v2048 = vunpack.c.l.b16 %v2009
      %v2049 = vunpack.c.l.b16 %v2010
      %v2050 = vpack.c.b16 %v2035, %v2034
      %v2051 = vpack.c.b16 %v2037, %v2036
      %v2052 = vpack.c.b16 %v2039, %v2038
      %v2053 = vpack.c.b16 %v2041, %v2040
      %v2054 = vpack.c.b16 %v2043, %v2042
      %v2055 = vpack.c.b16 %v2045, %v2044
      %v2056 = vpack.c.b16 %v2047, %v2046
      %v2057 = vpack.c.b16 %v2049, %v2048
      %2066 = vmatprep.subr.bf16.mxu0 0
      %2067 = vmatpush1.bf16.msra.mxu0 %v2050
      %2068 = vmatprep.subr.bf16.mxu0 0
      %2069 = vmatpush1.bf16.msra.mxu0 %v2051
      %2070 = vmatprep.subr.bf16.mxu0 0
      %2071 = vmatpush1.bf16.msra.mxu0 %v2052
      %2072 = vmatprep.subr.bf16.mxu0 0
      %2073 = vmatpush1.bf16.msra.mxu0 %v2053
      %2074 = vmatprep.subr.bf16.mxu0 0
      %2075 = vmatpush1.bf16.msra.mxu0 %v2054
      %2076 = vmatprep.subr.bf16.mxu0 0
      %2077 = vmatpush1.bf16.msra.mxu0 %v2055
      %2078 = vmatprep.subr.bf16.mxu0 0
      %2079 = vmatpush1.bf16.msra.mxu0 %v2056
      %2080 = vmatprep.subr.bf16.mxu0 0
      %2081 = vmatpush1.bf16.msra.mxu0 %v2057
      %2082 = vmatprep.subr.bf16.mxu0 0
      %2083 = vmatpush1.bf16.msra.mxu0 0
      %2084 = vmatprep.subr.bf16.mxu0 0
      %2085 = vmatpush1.bf16.msra.mxu0 0
      %2086 = vmatprep.subr.bf16.mxu0 0
      %2087 = vmatpush1.bf16.msra.mxu0 0
      %2088 = vmatprep.subr.bf16.mxu0 0
      %2089 = vmatpush1.bf16.msra.mxu0 0
      %2090 = vmatprep.subr.bf16.mxu0 0
      %2091 = vmatpush1.bf16.msra.mxu0 0
      %2092 = vmatprep.subr.bf16.mxu0 0
      %2093 = vmatpush1.bf16.msra.mxu0 0
      %2094 = vmatprep.subr.bf16.mxu0 0
      %2095 = vmatpush1.bf16.msra.mxu0 0
      %2096 = vmatprep.subr.bf16.mxu0 0
      %2097 = vmatpush1.bf16.msra.mxu0 0
      %2098 = vmatprep.mubr.bf16.mxu0 0
      %2099 = vmatmul.mubr.bf16.gmra.mrb[0].mxu0 %v1987
      %v2100 = vpop.f32.mrb[0].mxu0
      %v2101 = vadd.f32 %v2016, %v2100
      %v2102 = vpop.f32.mrb[0].mxu0
      %v2103 = vpop.f32.mrb[0].mxu0
      %v2104 = vadd.f32 %v2016, %v2103
      %v2105 = vpop.f32.mrb[0].mxu0
      %2106 = vmatprep.mubr.bf16.mxu0 0
      %2107 = vmatmul.mubr.bf16.gmra.mrb[0].mxu0 %v1988
      %v2108 = vpop.f32.mrb[0].mxu0
      %v2109 = vadd.f32 %v2016, %v2108
      %v2110 = vpop.f32.mrb[0].mxu0
      %v2111 = vpop.f32.mrb[0].mxu0
      %v2112 = vadd.f32 %v2016, %v2111
      %v2113 = vpop.f32.mrb[0].mxu0
      %2114 = vmatprep.mubr.bf16.mxu0 0
      %2115 = vmatmul.mubr.bf16.gmra.mrb[0].mxu0 %v1989
      %v2116 = vpop.f32.mrb[0].mxu0
      %v2117 = vadd.f32 %v2016, %v2116
      %v2118 = vpop.f32.mrb[0].mxu0
      %v2119 = vpop.f32.mrb[0].mxu0
      %v2120 = vadd.f32 %v2016, %v2119
      %v2121 = vpop.f32.mrb[0].mxu0
      %2122 = vmatprep.mubr.bf16.mxu0 0
      %2123 = vmatmul.mubr.bf16.gmra.mrb[0].mxu0 %v1990
      %v2124 = vpop.f32.mrb[0].mxu0
      %v2125 = vadd.f32 %v2016, %v2124
      %v2126 = vpop.f32.mrb[0].mxu0
      %v2127 = vpop.f32.mrb[0].mxu0
      %v2128 = vadd.f32 %v2016, %v2127
      %v2129 = vpop.f32.mrb[0].mxu0
      %2130 = vmatprep.mubr.bf16.mxu0 0
      %2131 = vmatmul.mubr.bf16.gmra.mrb[0].mxu0 %v1991
      %v2132 = vpop.f32.mrb[0].mxu0
      %v2133 = vadd.f32 %v2016, %v2132
      %v2134 = vpop.f32.mrb[0].mxu0
      %v2135 = vpop.f32.mrb[0].mxu0
      %v2136 = vadd.f32 %v2016, %v2135
      %v2137 = vpop.f32.mrb[0].mxu0
      %2138 = vmatprep.mubr.bf16.mxu0 0
      %2139 = vmatmul.mubr.bf16.gmra.mrb[0].mxu0 %v1992
      %v2140 = vpop.f32.mrb[0].mxu0
      %v2141 = vadd.f32 %v2016, %v2140
      %v2142 = vpop.f32.mrb[0].mxu0
      %v2143 = vpop.f32.mrb[0].mxu0
      %v2144 = vadd.f32 %v2016, %v2143
      %v2145 = vpop.f32.mrb[0].mxu0
      %2146 = vmatprep.mubr.bf16.mxu0 0
      %2147 = vmatmul.mubr.bf16.gmra.mrb[0].mxu0 %v1993
      %v2148 = vpop.f32.mrb[0].mxu0
      %v2149 = vadd.f32 %v2016, %v2148
      %v2150 = vpop.f32.mrb[0].mxu0
      %v2151 = vpop.f32.mrb[0].mxu0
      %v2152 = vadd.f32 %v2016, %v2151
      %v2153 = vpop.f32.mrb[0].mxu0
      %2154 = vmatprep.mubr.bf16.mxu0 0
      %2155 = vmatmul.mubr.bf16.gmra.mrb[0].mxu0 %v1994
      %v2156 = vpop.f32.mrb[0].mxu0
      %v2157 = vadd.f32 %v2016, %v2156
      %v2158 = vpop.f32.mrb[0].mxu0
      %v2159 = vpop.f32.mrb[0].mxu0
      %v2160 = vadd.f32 %v2016, %v2159
      %v2161 = vpop.f32.mrb[0].mxu0
      %2162 = vdwg.mxu0
      %v2163 = vmax.f32 %v2101, 0.0
      %v2164 = vmax.f32 %v2104, 0.0
      %v2165 = vmax.f32 %v2109, 0.0
      %v2166 = vmax.f32 %v2112, 0.0
      %v2167 = vmax.f32 %v2117, 0.0
      %v2168 = vmax.f32 %v2120, 0.0
      %v2169 = vmax.f32 %v2125, 0.0
      %v2170 = vmax.f32 %v2128, 0.0
      %v2171 = vmax.f32 %v2133, 0.0
      %v2172 = vmax.f32 %v2136, 0.0
      %v2173 = vmax.f32 %v2141, 0.0
      %v2174 = vmax.f32 %v2144, 0.0
      %v2175 = vmax.f32 %v2149, 0.0
      %v2176 = vmax.f32 %v2152, 0.0
      %v2177 = vmax.f32 %v2157, 0.0
      %v2178 = vmax.f32 %v2160, 0.0
      %v2179 = vpack.c.bf16 %v2164, %v2163
      %v2180 = vpack.c.bf16 %v2166, %v2165
      %v2181 = vpack.c.bf16 %v2168, %v2167
      %v2182 = vpack.c.bf16 %v2170, %v2169
      %v2183 = vpack.c.bf16 %v2172, %v2171
      %v2184 = vpack.c.bf16 %v2174, %v2173
      %v2185 = vpack.c.bf16 %v2176, %v2175
      %v2186 = vpack.c.bf16 %v2178, %v2177
      %v2187 = vld [vmem:[%s8] sm:$0xf]
      %v2188 = vld [vmem:[%s8 + $0x4] sm:$0xf]
      %v2189 = vld [vmem:[%s8 + $0x8] sm:$0xf]
      %v2190 = vld [vmem:[%s8 + $0xc] sm:$0xf]
      %v2191 = vld [vmem:[%s8 + $0x10] sm:$0xf]
      %v2192 = vld [vmem:[%s8 + $0x14] sm:$0xf]
      %v2193 = vld [vmem:[%s8 + $0x18] sm:$0xf]
      %v2194 = vld [vmem:[%s8 + $0x1c] sm:$0xf]
      %v2195 = vld [vmem:[%s8 + $0x20] sm:$0xf]
      %v2196 = vld [vmem:[%s8 + $0x24] sm:$0xf]
      %v2197 = vld [vmem:[%s8 + $0x28] sm:$0xf]
      %v2198 = vld [vmem:[%s8 + $0x2c] sm:$0xf]
      %v2199 = vld [vmem:[%s8 + $0x30] sm:$0xf]
      %v2200 = vld [vmem:[%s8 + $0x34] sm:$0xf]
      %v2201 = vld [vmem:[%s8 + $0x38] sm:$0xf]
      %v2202 = vld [vmem:[%s8 + $0x3c] sm:$0xf]
      %v2203 = vld [vmem:[%s16] sm:$0x1]
      %v2205 = vlaneseq
      %v2206 = vshrl.u32 %v2205, 7
      %v2207 = vsub.s32 0, %v2206
      %v2208 = vrot.slane %v2203, %v2207
      %v2226 = vunpack.c.l.b16 %v2187
      %v2227 = vunpack.c.l.b16 %v2188
      %v2228 = vunpack.c.l.b16 %v2189
      %v2229 = vunpack.c.l.b16 %v2190
      %v2230 = vunpack.c.l.b16 %v2191
      %v2231 = vunpack.c.l.b16 %v2192
      %v2232 = vunpack.c.l.b16 %v2193
      %v2233 = vunpack.c.l.b16 %v2194
      %v2234 = vunpack.c.l.b16 %v2195
      %v2235 = vunpack.c.l.b16 %v2196
      %v2236 = vunpack.c.l.b16 %v2197
      %v2237 = vunpack.c.l.b16 %v2198
      %v2238 = vunpack.c.l.b16 %v2199
      %v2239 = vunpack.c.l.b16 %v2200
      %v2240 = vunpack.c.l.b16 %v2201
      %v2241 = vunpack.c.l.b16 %v2202
      %v2242 = vpack.c.b16 %v2227, %v2226
      %v2243 = vpack.c.b16 %v2229, %v2228
      %v2244 = vpack.c.b16 %v2231, %v2230
      %v2245 = vpack.c.b16 %v2233, %v2232
      %v2246 = vpack.c.b16 %v2235, %v2234
      %v2247 = vpack.c.b16 %v2237, %v2236
      %v2248 = vpack.c.b16 %v2239, %v2238
      %v2249 = vpack.c.b16 %v2241, %v2240
      %2258 = vmatprep.subr.bf16.mxu0 0
      %2259 = vmatpush1.bf16.msra.mxu0 %v2242
      %2260 = vmatprep.subr.bf16.mxu0 0
      %2261 = vmatpush1.bf16.msra.mxu0 %v2243
      %2262 = vmatprep.subr.bf16.mxu0 0
      %2263 = vmatpush1.bf16.msra.mxu0 %v2244
      %2264 = vmatprep.subr.bf16.mxu0 0
      %2265 = vmatpush1.bf16.msra.mxu0 %v2245
      %2266 = vmatprep.subr.bf16.mxu0 0
      %2267 = vmatpush1.bf16.msra.mxu0 %v2246
      %2268 = vmatprep.subr.bf16.mxu0 0
      %2269 = vmatpush1.bf16.msra.mxu0 %v2247
      %2270 = vmatprep.subr.bf16.mxu0 0
      %2271 = vmatpush1.bf16.msra.mxu0 %v2248
      %2272 = vmatprep.subr.bf16.mxu0 0
      %2273 = vmatpush1.bf16.msra.mxu0 %v2249
      %2274 = vmatprep.subr.bf16.mxu0 0
      %2275 = vmatpush1.bf16.msra.mxu0 0
      %2276 = vmatprep.subr.bf16.mxu0 0
      %2277 = vmatpush1.bf16.msra.mxu0 0
      %2278 = vmatprep.subr.bf16.mxu0 0
      %2279 = vmatpush1.bf16.msra.mxu0 0
      %2280 = vmatprep.subr.bf16.mxu0 0
      %2281 = vmatpush1.bf16.msra.mxu0 0
      %2282 = vmatprep.subr.bf16.mxu0 0
      %2283 = vmatpush1.bf16.msra.mxu0 0
      %2284 = vmatprep.subr.bf16.mxu0 0
      %2285 = vmatpush1.bf16.msra.mxu0 0
      %2286 = vmatprep.subr.bf16.mxu0 0
      %2287 = vmatpush1.bf16.msra.mxu0 0
      %2288 = vmatprep.subr.bf16.mxu0 0
      %2289 = vmatpush1.bf16.msra.mxu0 0
      %2290 = vmatprep.mubr.bf16.mxu0 0
      %2291 = vmatmul.mubr.bf16.gmra.mrb[0].mxu0 %v2179
      %v2292 = vpop.f32.mrb[0].mxu0
      %v2293 = vadd.f32 %v2208, %v2292
      %v2294 = vpop.f32.mrb[0].mxu0
      %v2295 = vpop.f32.mrb[0].mxu0
      %v2296 = vadd.f32 %v2208, %v2295
      %v2297 = vpop.f32.mrb[0].mxu0
      %2298 = vmatprep.mubr.bf16.mxu0 0
      %2299 = vmatmul.mubr.bf16.gmra.mrb[0].mxu0 %v2180
      %v2300 = vpop.f32.mrb[0].mxu0
      %v2301 = vadd.f32 %v2208, %v2300
      %v2302 = vpop.f32.mrb[0].mxu0
      %v2303 = vpop.f32.mrb[0].mxu0
      %v2304 = vadd.f32 %v2208, %v2303
      %v2305 = vpop.f32.mrb[0].mxu0
      %2306 = vmatprep.mubr.bf16.mxu0 0
      %2307 = vmatmul.mubr.bf16.gmra.mrb[0].mxu0 %v2181
      %v2308 = vpop.f32.mrb[0].mxu0
      %v2309 = vadd.f32 %v2208, %v2308
      %v2310 = vpop.f32.mrb[0].mxu0
      %v2311 = vpop.f32.mrb[0].mxu0
      %v2312 = vadd.f32 %v2208, %v2311
      %v2313 = vpop.f32.mrb[0].mxu0
      %2314 = vmatprep.mubr.bf16.mxu0 0
      %2315 = vmatmul.mubr.bf16.gmra.mrb[0].mxu0 %v2182
      %v2316 = vpop.f32.mrb[0].mxu0
      %v2317 = vadd.f32 %v2208, %v2316
      %v2318 = vpop.f32.mrb[0].mxu0
      %v2319 = vpop.f32.mrb[0].mxu0
      %v2320 = vadd.f32 %v2208, %v2319
      %v2321 = vpop.f32.mrb[0].mxu0
      %2322 = vmatprep.mubr.bf16.mxu0 0
      %2323 = vmatmul.mubr.bf16.gmra.mrb[0].mxu0 %v2183
      %v2324 = vpop.f32.mrb[0].mxu0
      %v2325 = vadd.f32 %v2208, %v2324
      %v2326 = vpop.f32.mrb[0].mxu0
      %v2327 = vpop.f32.mrb[0].mxu0
      %v2328 = vadd.f32 %v2208, %v2327
      %v2329 = vpop.f32.mrb[0].mxu0
      %2330 = vmatprep.mubr.bf16.mxu0 0
      %2331 = vmatmul.mubr.bf16.gmra.mrb[0].mxu0 %v2184
      %v2332 = vpop.f32.mrb[0].mxu0
      %v2333 = vadd.f32 %v2208, %v2332
      %v2334 = vpop.f32.mrb[0].mxu0
      %v2335 = vpop.f32.mrb[0].mxu0
      %v2336 = vadd.f32 %v2208, %v2335
      %v2337 = vpop.f32.mrb[0].mxu0
      %2338 = vmatprep.mubr.bf16.mxu0 0
      %2339 = vmatmul.mubr.bf16.gmra.mrb[0].mxu0 %v2185
      %v2340 = vpop.f32.mrb[0].mxu0
      %v2341 = vadd.f32 %v2208, %v2340
      %v2342 = vpop.f32.mrb[0].mxu0
      %v2343 = vpop.f32.mrb[0].mxu0
      %v2344 = vadd.f32 %v2208, %v2343
      %v2345 = vpop.f32.mrb[0].mxu0
      %2346 = vmatprep.mubr.bf16.mxu0 0
      %2347 = vmatmul.mubr.bf16.gmra.mrb[0].mxu0 %v2186
      %v2348 = vpop.f32.mrb[0].mxu0
      %v2349 = vadd.f32 %v2208, %v2348
      %v2350 = vpop.f32.mrb[0].mxu0
      %v2351 = vpop.f32.mrb[0].mxu0
      %v2352 = vadd.f32 %v2208, %v2351
      %v2353 = vpop.f32.mrb[0].mxu0
      %2354 = vdwg.mxu0
      %v2355 = vmax.f32 %v2293, 0.0
      %v2356 = vmax.f32 %v2296, 0.0
      %v2357 = vmax.f32 %v2301, 0.0
      %v2358 = vmax.f32 %v2304, 0.0
      %v2359 = vmax.f32 %v2309, 0.0
      %v2360 = vmax.f32 %v2312, 0.0
      %v2361 = vmax.f32 %v2317, 0.0
      %v2362 = vmax.f32 %v2320, 0.0
      %v2363 = vmax.f32 %v2325, 0.0
      %v2364 = vmax.f32 %v2328, 0.0
      %v2365 = vmax.f32 %v2333, 0.0
      %v2366 = vmax.f32 %v2336, 0.0
      %v2367 = vmax.f32 %v2341, 0.0
      %v2368 = vmax.f32 %v2344, 0.0
      %v2369 = vmax.f32 %v2349, 0.0
      %v2370 = vmax.f32 %v2352, 0.0
      %v2371 = vpack.c.bf16 %v2356, %v2355
      %v2372 = vpack.c.bf16 %v2358, %v2357
      %v2373 = vpack.c.bf16 %v2360, %v2359
      %v2374 = vpack.c.bf16 %v2362, %v2361
      %v2375 = vpack.c.bf16 %v2364, %v2363
      %v2376 = vpack.c.bf16 %v2366, %v2365
      %v2377 = vpack.c.bf16 %v2368, %v2367
      %v2378 = vpack.c.bf16 %v2370, %v2369
      %v2379 = vld [vmem:[%s17] sm:$0xff]
      %v2380 = vld [vmem:[%s17 + $0x8] sm:$0xff]
      %v2381 = vld [vmem:[%s17 + $0x10] sm:$0xff]
      %v2382 = vld [vmem:[%s17 + $0x18] sm:$0xff]
      %v2383 = vld [vmem:[%s17 + $0x20] sm:$0xff]
      %v2384 = vld [vmem:[%s17 + $0x28] sm:$0xff]
      %v2385 = vld [vmem:[%s17 + $0x30] sm:$0xff]
      %v2386 = vld [vmem:[%s17 + $0x38] sm:$0xff]
      %v2387 = vld [vmem:[%s17 + $0x40] sm:$0xff]
      %v2388 = vld [vmem:[%s17 + $0x48] sm:$0xff]
      %v2389 = vld [vmem:[%s17 + $0x50] sm:$0xff]
      %v2390 = vld [vmem:[%s17 + $0x58] sm:$0xff]
      %v2391 = vld [vmem:[%s17 + $0x60] sm:$0xff]
      %v2392 = vld [vmem:[%s17 + $0x68] sm:$0xff]
      %v2393 = vld [vmem:[%s17 + $0x70] sm:$0xff]
      %v2394 = vld [vmem:[%s17 + $0x78] sm:$0xff]
      %v2395 = vld [vmem:[%s18] sm:$0x3]
      %v2397 = vlaneseq
      %v2398 = vshrl.u32 %v2397, 7
      %v2399 = vsub.s32 0, %v2398
      %v2400 = vrot.slane %v2395, %v2399
      %v2401 = vlaneseq
      %v2402 = vshrl.u32 %v2401, 7
      %v2403 = vsub.s32 1, %v2402
      %v2404 = vrot.slane %v2395, %v2403
      %v2423 = vunpack.c.l.b16 %v2379
      %v2424 = vunpack.c.h.b16 %v2379
      %v2425 = vunpack.c.l.b16 %v2380
      %v2426 = vunpack.c.h.b16 %v2380
      %v2427 = vunpack.c.l.b16 %v2381
      %v2428 = vunpack.c.h.b16 %v2381
      %v2429 = vunpack.c.l.b16 %v2382
      %v2430 = vunpack.c.h.b16 %v2382
      %v2431 = vunpack.c.l.b16 %v2383
      %v2432 = vunpack.c.h.b16 %v2383
      %v2433 = vunpack.c.l.b16 %v2384
      %v2434 = vunpack.c.h.b16 %v2384
      %v2435 = vunpack.c.l.b16 %v2385
      %v2436 = vunpack.c.h.b16 %v2385
      %v2437 = vunpack.c.l.b16 %v2386
      %v2438 = vunpack.c.h.b16 %v2386
      %v2439 = vunpack.c.l.b16 %v2387
      %v2440 = vunpack.c.h.b16 %v2387
      %v2441 = vunpack.c.l.b16 %v2388
      %v2442 = vunpack.c.h.b16 %v2388
      %v2443 = vunpack.c.l.b16 %v2389
      %v2444 = vunpack.c.h.b16 %v2389
      %v2445 = vunpack.c.l.b16 %v2390
      %v2446 = vunpack.c.h.b16 %v2390
      %v2447 = vunpack.c.l.b16 %v2391
      %v2448 = vunpack.c.h.b16 %v2391
      %v2449 = vunpack.c.l.b16 %v2392
      %v2450 = vunpack.c.h.b16 %v2392
      %v2451 = vunpack.c.l.b16 %v2393
      %v2452 = vunpack.c.h.b16 %v2393
      %v2453 = vunpack.c.l.b16 %v2394
      %v2454 = vunpack.c.h.b16 %v2394
      %v2455 = vpack.c.b16 %v2425, %v2423
      %v2456 = vpack.c.b16 %v2426, %v2424
      %v2457 = vpack.c.b16 %v2429, %v2427
      %v2458 = vpack.c.b16 %v2430, %v2428
      %v2459 = vpack.c.b16 %v2433, %v2431
      %v2460 = vpack.c.b16 %v2434, %v2432
      %v2461 = vpack.c.b16 %v2437, %v2435
      %v2462 = vpack.c.b16 %v2438, %v2436
      %v2463 = vpack.c.b16 %v2441, %v2439
      %v2464 = vpack.c.b16 %v2442, %v2440
      %v2465 = vpack.c.b16 %v2445, %v2443
      %v2466 = vpack.c.b16 %v2446, %v2444
      %v2467 = vpack.c.b16 %v2449, %v2447
      %v2468 = vpack.c.b16 %v2450, %v2448
      %v2469 = vpack.c.b16 %v2453, %v2451
      %v2470 = vpack.c.b16 %v2454, %v2452
      %2487 = vmatprep.subr.bf16.mxu0 %v2456
      %2488 = vmatpush1.bf16.msra.mxu0 %v2455
      %2489 = vmatprep.subr.bf16.mxu0 %v2458
      %2490 = vmatpush1.bf16.msra.mxu0 %v2457
      %2491 = vmatprep.subr.bf16.mxu0 %v2460
      %2492 = vmatpush1.bf16.msra.mxu0 %v2459
      %2493 = vmatprep.subr.bf16.mxu0 %v2462
      %2494 = vmatpush1.bf16.msra.mxu0 %v2461
      %2495 = vmatprep.subr.bf16.mxu0 %v2464
      %2496 = vmatpush1.bf16.msra.mxu0 %v2463
      %2497 = vmatprep.subr.bf16.mxu0 %v2466
      %2498 = vmatpush1.bf16.msra.mxu0 %v2465
      %2499 = vmatprep.subr.bf16.mxu0 %v2468
      %2500 = vmatpush1.bf16.msra.mxu0 %v2467
      %2501 = vmatprep.subr.bf16.mxu0 %v2470
      %2502 = vmatpush1.bf16.msra.mxu0 %v2469
      %2503 = vmatprep.subr.bf16.mxu0 0
      %2504 = vmatpush1.bf16.msra.mxu0 0
      %2505 = vmatprep.subr.bf16.mxu0 0
      %2506 = vmatpush1.bf16.msra.mxu0 0
      %2507 = vmatprep.subr.bf16.mxu0 0
      %2508 = vmatpush1.bf16.msra.mxu0 0
      %2509 = vmatprep.subr.bf16.mxu0 0
      %2510 = vmatpush1.bf16.msra.mxu0 0
      %2511 = vmatprep.subr.bf16.mxu0 0
      %2512 = vmatpush1.bf16.msra.mxu0 0
      %2513 = vmatprep.subr.bf16.mxu0 0
      %2514 = vmatpush1.bf16.msra.mxu0 0
      %2515 = vmatprep.subr.bf16.mxu0 0
      %2516 = vmatpush1.bf16.msra.mxu0 0
      %2517 = vmatprep.subr.bf16.mxu0 0
      %2518 = vmatpush1.bf16.msra.mxu0 0
      %2519 = vmatprep.mubr.bf16.mxu0 0
      %2520 = vmatmul.mubr.bf16.gmra.mrb[0].mxu0 %v2371
      %v2521 = vpop.f32.mrb[0].mxu0
      %v2522 = vadd.f32 %v2400, %v2521
      %v2523 = vpop.f32.mrb[0].mxu0
      %v2524 = vadd.f32 %v2404, %v2523
      %v2525 = vpop.f32.mrb[0].mxu0
      %v2526 = vadd.f32 %v2400, %v2525
      %v2527 = vpop.f32.mrb[0].mxu0
      %v2528 = vadd.f32 %v2404, %v2527
      %2529 = vmatprep.mubr.bf16.mxu0 0
      %2530 = vmatmul.mubr.bf16.gmra.mrb[0].mxu0 %v2372
      %v2531 = vpop.f32.mrb[0].mxu0
      %v2532 = vadd.f32 %v2400, %v2531
      %v2533 = vpop.f32.mrb[0].mxu0
      %v2534 = vadd.f32 %v2404, %v2533
      %v2535 = vpop.f32.mrb[0].mxu0
      %v2536 = vadd.f32 %v2400, %v2535
      %v2537 = vpop.f32.mrb[0].mxu0
      %v2538 = vadd.f32 %v2404, %v2537
      %2539 = vmatprep.mubr.bf16.mxu0 0
      %2540 = vmatmul.mubr.bf16.gmra.mrb[0].mxu0 %v2373
      %v2541 = vpop.f32.mrb[0].mxu0
      %v2542 = vadd.f32 %v2400, %v2541
      %v2543 = vpop.f32.mrb[0].mxu0
      %v2544 = vadd.f32 %v2404, %v2543
      %v2545 = vpop.f32.mrb[0].mxu0
      %v2546 = vadd.f32 %v2400, %v2545
      %v2547 = vpop.f32.mrb[0].mxu0
      %v2548 = vadd.f32 %v2404, %v2547
      %2549 = vmatprep.mubr.bf16.mxu0 0
      %2550 = vmatmul.mubr.bf16.gmra.mrb[0].mxu0 %v2374
      %v2551 = vpop.f32.mrb[0].mxu0
      %v2552 = vadd.f32 %v2400, %v2551
      %v2553 = vpop.f32.mrb[0].mxu0
      %v2554 = vadd.f32 %v2404, %v2553
      %v2555 = vpop.f32.mrb[0].mxu0
      %v2556 = vadd.f32 %v2400, %v2555
      %v2557 = vpop.f32.mrb[0].mxu0
      %v2558 = vadd.f32 %v2404, %v2557
      %2559 = vmatprep.mubr.bf16.mxu0 0
      %2560 = vmatmul.mubr.bf16.gmra.mrb[0].mxu0 %v2375
      %v2561 = vpop.f32.mrb[0].mxu0
      %v2562 = vadd.f32 %v2400, %v2561
      %v2563 = vpop.f32.mrb[0].mxu0
      %v2564 = vadd.f32 %v2404, %v2563
      %v2565 = vpop.f32.mrb[0].mxu0
      %v2566 = vadd.f32 %v2400, %v2565
      %v2567 = vpop.f32.mrb[0].mxu0
      %v2568 = vadd.f32 %v2404, %v2567
      %2569 = vmatprep.mubr.bf16.mxu0 0
      %2570 = vmatmul.mubr.bf16.gmra.mrb[0].mxu0 %v2376
      %v2571 = vpop.f32.mrb[0].mxu0
      %v2572 = vadd.f32 %v2400, %v2571
      %v2573 = vpop.f32.mrb[0].mxu0
      %v2574 = vadd.f32 %v2404, %v2573
      %v2575 = vpop.f32.mrb[0].mxu0
      %v2576 = vadd.f32 %v2400, %v2575
      %v2577 = vpop.f32.mrb[0].mxu0
      %v2578 = vadd.f32 %v2404, %v2577
      %2579 = vmatprep.mubr.bf16.mxu0 0
      %2580 = vmatmul.mubr.bf16.gmra.mrb[0].mxu0 %v2377
      %v2581 = vpop.f32.mrb[0].mxu0
      %v2582 = vadd.f32 %v2400, %v2581
      %v2583 = vpop.f32.mrb[0].mxu0
      %v2584 = vadd.f32 %v2404, %v2583
      %v2585 = vpop.f32.mrb[0].mxu0
      %v2586 = vadd.f32 %v2400, %v2585
      %v2587 = vpop.f32.mrb[0].mxu0
      %v2588 = vadd.f32 %v2404, %v2587
      %2589 = vmatprep.mubr.bf16.mxu0 0
      %2590 = vmatmul.mubr.bf16.gmra.mrb[0].mxu0 %v2378
      %v2591 = vpop.f32.mrb[0].mxu0
      %v2592 = vadd.f32 %v2400, %v2591
      %v2593 = vpop.f32.mrb[0].mxu0
      %v2594 = vadd.f32 %v2404, %v2593
      %v2595 = vpop.f32.mrb[0].mxu0
      %v2596 = vadd.f32 %v2400, %v2595
      %v2597 = vpop.f32.mrb[0].mxu0
      %v2598 = vadd.f32 %v2404, %v2597
      %2599 = vdwg.mxu0
      %v2600 = vpack.c.bf16 %v2526, %v2522
      %v2601 = vpack.c.bf16 %v2536, %v2532
      %v2602 = vpack.c.bf16 %v2546, %v2542
      %v2603 = vpack.c.bf16 %v2556, %v2552
      %v2604 = vpack.c.bf16 %v2566, %v2562
      %v2605 = vpack.c.bf16 %v2576, %v2572
      %v2606 = vpack.c.bf16 %v2586, %v2582
      %v2607 = vpack.c.bf16 %v2596, %v2592
      %v2608 = vld [vmem:[%s19] sm:$0xf]
      %v2609 = vld [vmem:[%s19 + $0x4] sm:$0xf]
      %v2610 = vld [vmem:[%s19 + $0x8] sm:$0xf]
      %v2611 = vld [vmem:[%s19 + $0xc] sm:$0xf]
      %v2612 = vld [vmem:[%s19 + $0x10] sm:$0xf]
      %v2613 = vld [vmem:[%s19 + $0x14] sm:$0xf]
      %v2614 = vld [vmem:[%s19 + $0x18] sm:$0xf]
      %v2615 = vld [vmem:[%s19 + $0x1c] sm:$0xf]
      %v2616 = vld [vmem:[%s19 + $0x20] sm:$0xf]
      %v2617 = vld [vmem:[%s19 + $0x24] sm:$0xf]
      %v2618 = vld [vmem:[%s19 + $0x28] sm:$0xf]
      %v2619 = vld [vmem:[%s19 + $0x2c] sm:$0xf]
      %v2620 = vld [vmem:[%s19 + $0x30] sm:$0xf]
      %v2621 = vld [vmem:[%s19 + $0x34] sm:$0xf]
      %v2622 = vld [vmem:[%s19 + $0x38] sm:$0xf]
      %v2623 = vld [vmem:[%s19 + $0x3c] sm:$0xf]
      %v2624 = vld [vmem:[%s19 + $0x40] sm:$0xf]
      %v2625 = vld [vmem:[%s19 + $0x44] sm:$0xf]
      %v2626 = vld [vmem:[%s19 + $0x48] sm:$0xf]
      %v2627 = vld [vmem:[%s19 + $0x4c] sm:$0xf]
      %v2628 = vld [vmem:[%s19 + $0x50] sm:$0xf]
      %v2629 = vld [vmem:[%s19 + $0x54] sm:$0xf]
      %v2630 = vld [vmem:[%s19 + $0x58] sm:$0xf]
      %v2631 = vld [vmem:[%s19 + $0x5c] sm:$0xf]
      %v2632 = vld [vmem:[%s19 + $0x60] sm:$0xf]
      %v2633 = vld [vmem:[%s19 + $0x64] sm:$0xf]
      %v2634 = vld [vmem:[%s19 + $0x68] sm:$0xf]
      %v2635 = vld [vmem:[%s19 + $0x6c] sm:$0xf]
      %v2636 = vld [vmem:[%s19 + $0x70] sm:$0xf]
      %v2637 = vld [vmem:[%s19 + $0x74] sm:$0xf]
      %v2638 = vld [vmem:[%s19 + $0x78] sm:$0xf]
      %v2639 = vld [vmem:[%s19 + $0x7c] sm:$0xf]
      %v2640 = vld [vmem:[%s20] sm:$0x1]
      %v2642 = vlaneseq
      %v2643 = vshrl.u32 %v2642, 7
      %v2644 = vsub.s32 0, %v2643
      %v2645 = vrot.slane %v2640, %v2644
      %v2679 = vunpack.c.l.b16 %v2608
      %v2680 = vunpack.c.l.b16 %v2609
      %v2681 = vunpack.c.l.b16 %v2610
      %v2682 = vunpack.c.l.b16 %v2611
      %v2683 = vunpack.c.l.b16 %v2612
      %v2684 = vunpack.c.l.b16 %v2613
      %v2685 = vunpack.c.l.b16 %v2614
      %v2686 = vunpack.c.l.b16 %v2615
      %v2687 = vunpack.c.l.b16 %v2616
      %v2688 = vunpack.c.l.b16 %v2617
      %v2689 = vunpack.c.l.b16 %v2618
      %v2690 = vunpack.c.l.b16 %v2619
      %v2691 = vunpack.c.l.b16 %v2620
      %v2692 = vunpack.c.l.b16 %v2621
      %v2693 = vunpack.c.l.b16 %v2622
      %v2694 = vunpack.c.l.b16 %v2623
      %v2695 = vunpack.c.l.b16 %v2624
      %v2696 = vunpack.c.l.b16 %v2625
      %v2697 = vunpack.c.l.b16 %v2626
      %v2698 = vunpack.c.l.b16 %v2627
      %v2699 = vunpack.c.l.b16 %v2628
      %v2700 = vunpack.c.l.b16 %v2629
      %v2701 = vunpack.c.l.b16 %v2630
      %v2702 = vunpack.c.l.b16 %v2631
      %v2703 = vunpack.c.l.b16 %v2632
      %v2704 = vunpack.c.l.b16 %v2633
      %v2705 = vunpack.c.l.b16 %v2634
      %v2706 = vunpack.c.l.b16 %v2635
      %v2707 = vunpack.c.l.b16 %v2636
      %v2708 = vunpack.c.l.b16 %v2637
      %v2709 = vunpack.c.l.b16 %v2638
      %v2710 = vunpack.c.l.b16 %v2639
      %v2711 = vpack.c.b16 %v2680, %v2679
      %v2712 = vpack.c.b16 %v2682, %v2681
      %v2713 = vpack.c.b16 %v2684, %v2683
      %v2714 = vpack.c.b16 %v2686, %v2685
      %v2715 = vpack.c.b16 %v2688, %v2687
      %v2716 = vpack.c.b16 %v2690, %v2689
      %v2717 = vpack.c.b16 %v2692, %v2691
      %v2718 = vpack.c.b16 %v2694, %v2693
      %v2719 = vpack.c.b16 %v2696, %v2695
      %v2720 = vpack.c.b16 %v2698, %v2697
      %v2721 = vpack.c.b16 %v2700, %v2699
      %v2722 = vpack.c.b16 %v2702, %v2701
      %v2723 = vpack.c.b16 %v2704, %v2703
      %v2724 = vpack.c.b16 %v2706, %v2705
      %v2725 = vpack.c.b16 %v2708, %v2707
      %v2726 = vpack.c.b16 %v2710, %v2709
      %2743 = vmatprep.subr.bf16.mxu0 0
      %2744 = vmatpush1.bf16.msra.mxu0 %v2711
      %2745 = vmatprep.subr.bf16.mxu0 0
      %2746 = vmatpush1.bf16.msra.mxu0 %v2712
      %2747 = vmatprep.subr.bf16.mxu0 0
      %2748 = vmatpush1.bf16.msra.mxu0 %v2713
      %2749 = vmatprep.subr.bf16.mxu0 0
      %2750 = vmatpush1.bf16.msra.mxu0 %v2714
      %2751 = vmatprep.subr.bf16.mxu0 0
      %2752 = vmatpush1.bf16.msra.mxu0 %v2715
      %2753 = vmatprep.subr.bf16.mxu0 0
      %2754 = vmatpush1.bf16.msra.mxu0 %v2716
      %2755 = vmatprep.subr.bf16.mxu0 0
      %2756 = vmatpush1.bf16.msra.mxu0 %v2717
      %2757 = vmatprep.subr.bf16.mxu0 0
      %2758 = vmatpush1.bf16.msra.mxu0 %v2718
      %2759 = vmatprep.subr.bf16.mxu0 0
      %2760 = vmatpush1.bf16.msra.mxu0 %v2719
      %2761 = vmatprep.subr.bf16.mxu0 0
      %2762 = vmatpush1.bf16.msra.mxu0 %v2720
      %2763 = vmatprep.subr.bf16.mxu0 0
      %2764 = vmatpush1.bf16.msra.mxu0 %v2721
      %2765 = vmatprep.subr.bf16.mxu0 0
      %2766 = vmatpush1.bf16.msra.mxu0 %v2722
      %2767 = vmatprep.subr.bf16.mxu0 0
      %2768 = vmatpush1.bf16.msra.mxu0 %v2723
      %2769 = vmatprep.subr.bf16.mxu0 0
      %2770 = vmatpush1.bf16.msra.mxu0 %v2724
      %2771 = vmatprep.subr.bf16.mxu0 0
      %2772 = vmatpush1.bf16.msra.mxu0 %v2725
      %2773 = vmatprep.subr.bf16.mxu0 0
      %2774 = vmatpush1.bf16.msra.mxu0 %v2726
      %2775 = vmatprep.mubr.bf16.mxu0 %v786
      %2776 = vmatmul.mubr.bf16.gmra.mrb[0].mxu0 %v2600
      %v2777 = vpop.f32.mrb[0].mxu0
      %v2778 = vadd.f32 %v2645, %v2777
      %v2779 = vpop.f32.mrb[0].mxu0
      %v2780 = vpop.f32.mrb[0].mxu0
      %v2781 = vadd.f32 %v2645, %v2780
      %v2782 = vpop.f32.mrb[0].mxu0
      %2783 = vmatprep.mubr.bf16.mxu0 %v787
      %2784 = vmatmul.mubr.bf16.gmra.mrb[0].mxu0 %v2601
      %v2785 = vpop.f32.mrb[0].mxu0
      %v2786 = vadd.f32 %v2645, %v2785
      %v2787 = vpop.f32.mrb[0].mxu0
      %v2788 = vpop.f32.mrb[0].mxu0
      %v2789 = vadd.f32 %v2645, %v2788
      %v2790 = vpop.f32.mrb[0].mxu0
      %2791 = vmatprep.mubr.bf16.mxu0 %v788
      %2792 = vmatmul.mubr.bf16.gmra.mrb[0].mxu0 %v2602
      %v2793 = vpop.f32.mrb[0].mxu0
      %v2794 = vadd.f32 %v2645, %v2793
      %v2795 = vpop.f32.mrb[0].mxu0
      %v2796 = vpop.f32.mrb[0].mxu0
      %v2797 = vadd.f32 %v2645, %v2796
      %v2798 = vpop.f32.mrb[0].mxu0
      %2799 = vmatprep.mubr.bf16.mxu0 %v789
      %2800 = vmatmul.mubr.bf16.gmra.mrb[0].mxu0 %v2603
      %v2801 = vpop.f32.mrb[0].mxu0
      %v2802 = vadd.f32 %v2645, %v2801
      %v2803 = vpop.f32.mrb[0].mxu0
      %v2804 = vpop.f32.mrb[0].mxu0
      %v2805 = vadd.f32 %v2645, %v2804
      %v2806 = vpop.f32.mrb[0].mxu0
      %2807 = vmatprep.mubr.bf16.mxu0 %v790
      %2808 = vmatmul.mubr.bf16.gmra.mrb[0].mxu0 %v2604
      %v2809 = vpop.f32.mrb[0].mxu0
      %v2810 = vadd.f32 %v2645, %v2809
      %v2811 = vpop.f32.mrb[0].mxu0
      %v2812 = vpop.f32.mrb[0].mxu0
      %v2813 = vadd.f32 %v2645, %v2812
      %v2814 = vpop.f32.mrb[0].mxu0
      %2815 = vmatprep.mubr.bf16.mxu0 %v791
      %2816 = vmatmul.mubr.bf16.gmra.mrb[0].mxu0 %v2605
      %v2817 = vpop.f32.mrb[0].mxu0
      %v2818 = vadd.f32 %v2645, %v2817
      %v2819 = vpop.f32.mrb[0].mxu0
      %v2820 = vpop.f32.mrb[0].mxu0
      %v2821 = vadd.f32 %v2645, %v2820
      %v2822 = vpop.f32.mrb[0].mxu0
      %2823 = vmatprep.mubr.bf16.mxu0 %v792
      %2824 = vmatmul.mubr.bf16.gmra.mrb[0].mxu0 %v2606
      %v2825 = vpop.f32.mrb[0].mxu0
      %v2826 = vadd.f32 %v2645, %v2825
      %v2827 = vpop.f32.mrb[0].mxu0
      %v2828 = vpop.f32.mrb[0].mxu0
      %v2829 = vadd.f32 %v2645, %v2828
      %v2830 = vpop.f32.mrb[0].mxu0
      %2831 = vmatprep.mubr.bf16.mxu0 %v793
      %2832 = vmatmul.mubr.bf16.gmra.mrb[0].mxu0 %v2607
      %v2833 = vpop.f32.mrb[0].mxu0
      %v2834 = vadd.f32 %v2645, %v2833
      %v2835 = vpop.f32.mrb[0].mxu0
      %v2836 = vpop.f32.mrb[0].mxu0
      %v2837 = vadd.f32 %v2645, %v2836
      %v2838 = vpop.f32.mrb[0].mxu0
      %2839 = vdwg.mxu0
      %v2840 = vmax.f32 %v2778, 0.0
      %v2841 = vmax.f32 %v2781, 0.0
      %v2842 = vmax.f32 %v2786, 0.0
      %v2843 = vmax.f32 %v2789, 0.0
      %v2844 = vmax.f32 %v2794, 0.0
      %v2845 = vmax.f32 %v2797, 0.0
      %v2846 = vmax.f32 %v2802, 0.0
      %v2847 = vmax.f32 %v2805, 0.0
      %v2848 = vmax.f32 %v2810, 0.0
      %v2849 = vmax.f32 %v2813, 0.0
      %v2850 = vmax.f32 %v2818, 0.0
      %v2851 = vmax.f32 %v2821, 0.0
      %v2852 = vmax.f32 %v2826, 0.0
      %v2853 = vmax.f32 %v2829, 0.0
      %v2854 = vmax.f32 %v2834, 0.0
      %v2855 = vmax.f32 %v2837, 0.0
      %v2856 = vpack.c.bf16 %v2841, %v2840
      %v2857 = vpack.c.bf16 %v2843, %v2842
      %v2858 = vpack.c.bf16 %v2845, %v2844
      %v2859 = vpack.c.bf16 %v2847, %v2846
      %v2860 = vpack.c.bf16 %v2849, %v2848
      %v2861 = vpack.c.bf16 %v2851, %v2850
      %v2862 = vpack.c.bf16 %v2853, %v2852
      %v2863 = vpack.c.bf16 %v2855, %v2854
      %v2864 = vld [vmem:[%s21] sm:$0xf]
      %v2865 = vld [vmem:[%s21 + $0x4] sm:$0xf]
      %v2866 = vld [vmem:[%s21 + $0x8] sm:$0xf]
      %v2867 = vld [vmem:[%s21 + $0xc] sm:$0xf]
      %v2868 = vld [vmem:[%s21 + $0x10] sm:$0xf]
      %v2869 = vld [vmem:[%s21 + $0x14] sm:$0xf]
      %v2870 = vld [vmem:[%s21 + $0x18] sm:$0xf]
      %v2871 = vld [vmem:[%s21 + $0x1c] sm:$0xf]
      %v2872 = vld [vmem:[%s21 + $0x20] sm:$0xf]
      %v2873 = vld [vmem:[%s21 + $0x24] sm:$0xf]
      %v2874 = vld [vmem:[%s21 + $0x28] sm:$0xf]
      %v2875 = vld [vmem:[%s21 + $0x2c] sm:$0xf]
      %v2876 = vld [vmem:[%s21 + $0x30] sm:$0xf]
      %v2877 = vld [vmem:[%s21 + $0x34] sm:$0xf]
      %v2878 = vld [vmem:[%s21 + $0x38] sm:$0xf]
      %v2879 = vld [vmem:[%s21 + $0x3c] sm:$0xf]
      %v2880 = vld [vmem:[%s22] sm:$0x1]
      %v2882 = vlaneseq
      %v2883 = vshrl.u32 %v2882, 7
      %v2884 = vsub.s32 0, %v2883
      %v2885 = vrot.slane %v2880, %v2884
      %v2903 = vunpack.c.l.b16 %v2864
      %v2904 = vunpack.c.l.b16 %v2865
      %v2905 = vunpack.c.l.b16 %v2866
      %v2906 = vunpack.c.l.b16 %v2867
      %v2907 = vunpack.c.l.b16 %v2868
      %v2908 = vunpack.c.l.b16 %v2869
      %v2909 = vunpack.c.l.b16 %v2870
      %v2910 = vunpack.c.l.b16 %v2871
      %v2911 = vunpack.c.l.b16 %v2872
      %v2912 = vunpack.c.l.b16 %v2873
      %v2913 = vunpack.c.l.b16 %v2874
      %v2914 = vunpack.c.l.b16 %v2875
      %v2915 = vunpack.c.l.b16 %v2876
      %v2916 = vunpack.c.l.b16 %v2877
      %v2917 = vunpack.c.l.b16 %v2878
      %v2918 = vunpack.c.l.b16 %v2879
      %v2919 = vpack.c.b16 %v2904, %v2903
      %v2920 = vpack.c.b16 %v2906, %v2905
      %v2921 = vpack.c.b16 %v2908, %v2907
      %v2922 = vpack.c.b16 %v2910, %v2909
      %v2923 = vpack.c.b16 %v2912, %v2911
      %v2924 = vpack.c.b16 %v2914, %v2913
      %v2925 = vpack.c.b16 %v2916, %v2915
      %v2926 = vpack.c.b16 %v2918, %v2917
      %2935 = vmatprep.subr.bf16.mxu0 0
      %2936 = vmatpush1.bf16.msra.mxu0 %v2919
      %2937 = vmatprep.subr.bf16.mxu0 0
      %2938 = vmatpush1.bf16.msra.mxu0 %v2920
      %2939 = vmatprep.subr.bf16.mxu0 0
      %2940 = vmatpush1.bf16.msra.mxu0 %v2921
      %2941 = vmatprep.subr.bf16.mxu0 0
      %2942 = vmatpush1.bf16.msra.mxu0 %v2922
      %2943 = vmatprep.subr.bf16.mxu0 0
      %2944 = vmatpush1.bf16.msra.mxu0 %v2923
      %2945 = vmatprep.subr.bf16.mxu0 0
      %2946 = vmatpush1.bf16.msra.mxu0 %v2924
      %2947 = vmatprep.subr.bf16.mxu0 0
      %2948 = vmatpush1.bf16.msra.mxu0 %v2925
      %2949 = vmatprep.subr.bf16.mxu0 0
      %2950 = vmatpush1.bf16.msra.mxu0 %v2926
      %2951 = vmatprep.subr.bf16.mxu0 0
      %2952 = vmatpush1.bf16.msra.mxu0 0
      %2953 = vmatprep.subr.bf16.mxu0 0
      %2954 = vmatpush1.bf16.msra.mxu0 0
      %2955 = vmatprep.subr.bf16.mxu0 0
      %2956 = vmatpush1.bf16.msra.mxu0 0
      %2957 = vmatprep.subr.bf16.mxu0 0
      %2958 = vmatpush1.bf16.msra.mxu0 0
      %2959 = vmatprep.subr.bf16.mxu0 0
      %2960 = vmatpush1.bf16.msra.mxu0 0
      %2961 = vmatprep.subr.bf16.mxu0 0
      %2962 = vmatpush1.bf16.msra.mxu0 0
      %2963 = vmatprep.subr.bf16.mxu0 0
      %2964 = vmatpush1.bf16.msra.mxu0 0
      %2965 = vmatprep.subr.bf16.mxu0 0
      %2966 = vmatpush1.bf16.msra.mxu0 0
      %2967 = vmatprep.mubr.bf16.mxu0 0
      %2968 = vmatmul.mubr.bf16.gmra.mrb[0].mxu0 %v2856
      %v2969 = vpop.f32.mrb[0].mxu0
      %v2970 = vadd.f32 %v2885, %v2969
      %v2971 = vpop.f32.mrb[0].mxu0
      %v2972 = vpop.f32.mrb[0].mxu0
      %v2973 = vadd.f32 %v2885, %v2972
      %v2974 = vpop.f32.mrb[0].mxu0
      %2975 = vmatprep.mubr.bf16.mxu0 0
      %2976 = vmatmul.mubr.bf16.gmra.mrb[0].mxu0 %v2857
      %v2977 = vpop.f32.mrb[0].mxu0
      %v2978 = vadd.f32 %v2885, %v2977
      %v2979 = vpop.f32.mrb[0].mxu0
      %v2980 = vpop.f32.mrb[0].mxu0
      %v2981 = vadd.f32 %v2885, %v2980
      %v2982 = vpop.f32.mrb[0].mxu0
      %2983 = vmatprep.mubr.bf16.mxu0 0
      %2984 = vmatmul.mubr.bf16.gmra.mrb[0].mxu0 %v2858
      %v2985 = vpop.f32.mrb[0].mxu0
      %v2986 = vadd.f32 %v2885, %v2985
      %v2987 = vpop.f32.mrb[0].mxu0
      %v2988 = vpop.f32.mrb[0].mxu0
      %v2989 = vadd.f32 %v2885, %v2988
      %v2990 = vpop.f32.mrb[0].mxu0
      %2991 = vmatprep.mubr.bf16.mxu0 0
      %2992 = vmatmul.mubr.bf16.gmra.mrb[0].mxu0 %v2859
      %v2993 = vpop.f32.mrb[0].mxu0
      %v2994 = vadd.f32 %v2885, %v2993
      %v2995 = vpop.f32.mrb[0].mxu0
      %v2996 = vpop.f32.mrb[0].mxu0
      %v2997 = vadd.f32 %v2885, %v2996
      %v2998 = vpop.f32.mrb[0].mxu0
      %2999 = vmatprep.mubr.bf16.mxu0 0
      %3000 = vmatmul.mubr.bf16.gmra.mrb[0].mxu0 %v2860
      %v3001 = vpop.f32.mrb[0].mxu0
      %v3002 = vadd.f32 %v2885, %v3001
      %v3003 = vpop.f32.mrb[0].mxu0
      %v3004 = vpop.f32.mrb[0].mxu0
      %v3005 = vadd.f32 %v2885, %v3004
      %v3006 = vpop.f32.mrb[0].mxu0
      %3007 = vmatprep.mubr.bf16.mxu0 0
      %3008 = vmatmul.mubr.bf16.gmra.mrb[0].mxu0 %v2861
      %v3009 = vpop.f32.mrb[0].mxu0
      %v3010 = vadd.f32 %v2885, %v3009
      %v3011 = vpop.f32.mrb[0].mxu0
      %v3012 = vpop.f32.mrb[0].mxu0
      %v3013 = vadd.f32 %v2885, %v3012
      %v3014 = vpop.f32.mrb[0].mxu0
      %3015 = vmatprep.mubr.bf16.mxu0 0
      %3016 = vmatmul.mubr.bf16.gmra.mrb[0].mxu0 %v2862
      %v3017 = vpop.f32.mrb[0].mxu0
      %v3018 = vadd.f32 %v2885, %v3017
      %v3019 = vpop.f32.mrb[0].mxu0
      %v3020 = vpop.f32.mrb[0].mxu0
      %v3021 = vadd.f32 %v2885, %v3020
      %v3022 = vpop.f32.mrb[0].mxu0
      %3023 = vmatprep.mubr.bf16.mxu0 0
      %3024 = vmatmul.mubr.bf16.gmra.mrb[0].mxu0 %v2863
      %v3025 = vpop.f32.mrb[0].mxu0
      %v3026 = vadd.f32 %v2885, %v3025
      %v3027 = vpop.f32.mrb[0].mxu0
      %v3028 = vpop.f32.mrb[0].mxu0
      %v3029 = vadd.f32 %v2885, %v3028
      %v3030 = vpop.f32.mrb[0].mxu0
      %3031 = vdwg.mxu0
      %v3032 = vxor.u32 %v2970, 2147483648
      %v3033 = vxor.u32 %v2973, 2147483648
      %v3034 = vxor.u32 %v2978, 2147483648
      %v3035 = vxor.u32 %v2981, 2147483648
      %v3036 = vxor.u32 %v2986, 2147483648
      %v3037 = vxor.u32 %v2989, 2147483648
      %v3038 = vxor.u32 %v2994, 2147483648
      %v3039 = vxor.u32 %v2997, 2147483648
      %v3040 = vxor.u32 %v3002, 2147483648
      %v3041 = vxor.u32 %v3005, 2147483648
      %v3042 = vxor.u32 %v3010, 2147483648
      %v3043 = vxor.u32 %v3013, 2147483648
      %v3044 = vxor.u32 %v3018, 2147483648
      %v3045 = vxor.u32 %v3021, 2147483648
      %v3046 = vxor.u32 %v3026, 2147483648
      %v3047 = vxor.u32 %v3029, 2147483648
      %v3048 = vmul.f32 %v3032, 1.442695
      %v3049 = vpow.pop %v3048
      %v3050 = vmul.f32 %v3033, 1.442695
      %v3051 = vpow.pop %v3050
      %v3052 = vmul.f32 %v3034, 1.442695
      %v3053 = vpow.pop %v3052
      %v3054 = vmul.f32 %v3035, 1.442695
      %v3055 = vpow.pop %v3054
      %v3056 = vmul.f32 %v3036, 1.442695
      %v3057 = vpow.pop %v3056
      %v3058 = vmul.f32 %v3037, 1.442695
      %v3059 = vpow.pop %v3058
      %v3060 = vmul.f32 %v3038, 1.442695
      %v3061 = vpow.pop %v3060
      %v3062 = vmul.f32 %v3039, 1.442695
      %v3063 = vpow.pop %v3062
      %v3064 = vmul.f32 %v3040, 1.442695
      %v3065 = vpow.pop %v3064
      %v3066 = vmul.f32 %v3041, 1.442695
      %v3067 = vpow.pop %v3066
      %v3068 = vmul.f32 %v3042, 1.442695
      %v3069 = vpow.pop %v3068
      %v3070 = vmul.f32 %v3043, 1.442695
      %v3071 = vpow.pop %v3070
      %v3072 = vmul.f32 %v3044, 1.442695
      %v3073 = vpow.pop %v3072
      %v3074 = vmul.f32 %v3045, 1.442695
      %v3075 = vpow.pop %v3074
      %v3076 = vmul.f32 %v3046, 1.442695
      %v3077 = vpow.pop %v3076
      %v3078 = vmul.f32 %v3047, 1.442695
      %v3079 = vpow.pop %v3078
      %v3080 = vadd.f32 %v3049, 1.0
      %v3081 = vadd.f32 %v3051, 1.0
      %v3082 = vadd.f32 %v3053, 1.0
      %v3083 = vadd.f32 %v3055, 1.0
      %v3084 = vadd.f32 %v3057, 1.0
      %v3085 = vadd.f32 %v3059, 1.0
      %v3086 = vadd.f32 %v3061, 1.0
      %v3087 = vadd.f32 %v3063, 1.0
      %v3088 = vadd.f32 %v3065, 1.0
      %v3089 = vadd.f32 %v3067, 1.0
      %v3090 = vadd.f32 %v3069, 1.0
      %v3091 = vadd.f32 %v3071, 1.0
      %v3092 = vadd.f32 %v3073, 1.0
      %v3093 = vadd.f32 %v3075, 1.0
      %v3094 = vadd.f32 %v3077, 1.0
      %v3095 = vadd.f32 %v3079, 1.0
      %v3096 = vrcp.pop %v3080
      %v3097 = vmul.f32 1.0, %v3096
      %v3098 = vrcp.pop %v3081
      %v3099 = vmul.f32 1.0, %v3098
      %v3100 = vrcp.pop %v3082
      %v3101 = vmul.f32 1.0, %v3100
      %v3102 = vrcp.pop %v3083
      %v3103 = vmul.f32 1.0, %v3102
      %v3104 = vrcp.pop %v3084
      %v3105 = vmul.f32 1.0, %v3104
      %v3106 = vrcp.pop %v3085
      %v3107 = vmul.f32 1.0, %v3106
      %v3108 = vrcp.pop %v3086
      %v3109 = vmul.f32 1.0, %v3108
      %v3110 = vrcp.pop %v3087
      %v3111 = vmul.f32 1.0, %v3110
      %v3112 = vrcp.pop %v3088
      %v3113 = vmul.f32 1.0, %v3112
      %v3114 = vrcp.pop %v3089
      %v3115 = vmul.f32 1.0, %v3114
      %v3116 = vrcp.pop %v3090
      %v3117 = vmul.f32 1.0, %v3116
      %v3118 = vrcp.pop %v3091
      %v3119 = vmul.f32 1.0, %v3118
      %v3120 = vrcp.pop %v3092
      %v3121 = vmul.f32 1.0, %v3120
      %v3122 = vrcp.pop %v3093
      %v3123 = vmul.f32 1.0, %v3122
      %v3124 = vrcp.pop %v3094
      %v3125 = vmul.f32 1.0, %v3124
      %v3126 = vrcp.pop %v3095
      %v3127 = vmul.f32 1.0, %v3126
      %3144 = vrot.lane.b32.xlu0 %v2524, 3
      %v3145 = vpop.permute.xlu0 %3144
      %3146 = vrot.lane.b32.xlu0 %v2528, 3
      %v3147 = vpop.permute.xlu0 %3146
      %3148 = vrot.lane.b32.xlu0 %v2534, 3
      %v3149 = vpop.permute.xlu0 %3148
      %3150 = vrot.lane.b32.xlu0 %v2538, 3
      %v3151 = vpop.permute.xlu0 %3150
      %3152 = vrot.lane.b32.xlu0 %v2544, 3
      %v3153 = vpop.permute.xlu0 %3152
      %3154 = vrot.lane.b32.xlu0 %v2548, 3
      %v3155 = vpop.permute.xlu0 %3154
      %3156 = vrot.lane.b32.xlu0 %v2554, 3
      %v3157 = vpop.permute.xlu0 %3156
      %3158 = vrot.lane.b32.xlu0 %v2558, 3
      %v3159 = vpop.permute.xlu0 %3158
      %3160 = vrot.lane.b32.xlu0 %v2564, 3
      %v3161 = vpop.permute.xlu0 %3160
      %3162 = vrot.lane.b32.xlu0 %v2568, 3
      %v3163 = vpop.permute.xlu0 %3162
      %3164 = vrot.lane.b32.xlu0 %v2574, 3
      %v3165 = vpop.permute.xlu0 %3164
      %3166 = vrot.lane.b32.xlu0 %v2578, 3
      %v3167 = vpop.permute.xlu0 %3166
      %3168 = vrot.lane.b32.xlu0 %v2584, 3
      %v3169 = vpop.permute.xlu0 %3168
      %3170 = vrot.lane.b32.xlu0 %v2588, 3
      %v3171 = vpop.permute.xlu0 %3170
      %3172 = vrot.lane.b32.xlu0 %v2594, 3
      %v3173 = vpop.permute.xlu0 %3172
      %3174 = vrot.lane.b32.xlu0 %v2598, 3
      %v3175 = vpop.permute.xlu0 %3174
      %vm3192 = vcmask 23552
      %v3193 = vsel %vm3192, %v3097, %v3145
      %v3194 = vsel %vm3192, %v3099, %v3147
      %v3195 = vsel %vm3192, %v3101, %v3149
      %v3196 = vsel %vm3192, %v3103, %v3151
      %v3197 = vsel %vm3192, %v3105, %v3153
      %v3198 = vsel %vm3192, %v3107, %v3155
      %v3199 = vsel %vm3192, %v3109, %v3157
      %v3200 = vsel %vm3192, %v3111, %v3159
      %v3201 = vsel %vm3192, %v3113, %v3161
      %v3202 = vsel %vm3192, %v3115, %v3163
      %v3203 = vsel %vm3192, %v3117, %v3165
      %v3204 = vsel %vm3192, %v3119, %v3167
      %v3205 = vsel %vm3192, %v3121, %v3169
      %v3206 = vsel %vm3192, %v3123, %v3171
      %v3207 = vsel %vm3192, %v3125, %v3173
      %v3208 = vsel %vm3192, %v3127, %v3175
      %vm3209 = vcmask 31744
      %3210 = vst.msk [vmem:[%s712] sm:$0xff] %vm3209, %v3193
      %3211 = vst.msk [vmem:[%s712 + $0x8] sm:$0xff] %vm3209, %v3194
      %3212 = vst.msk [vmem:[%s712 + $0x10] sm:$0xff] %vm3209, %v3195
      %3213 = vst.msk [vmem:[%s712 + $0x18] sm:$0xff] %vm3209, %v3196
      %3214 = vst.msk [vmem:[%s712 + $0x20] sm:$0xff] %vm3209, %v3197
      %3215 = vst.msk [vmem:[%s712 + $0x28] sm:$0xff] %vm3209, %v3198
      %3216 = vst.msk [vmem:[%s712 + $0x30] sm:$0xff] %vm3209, %v3199
      %3217 = vst.msk [vmem:[%s712 + $0x38] sm:$0xff] %vm3209, %v3200
      %3218 = vst.msk [vmem:[%s712 + $0x40] sm:$0xff] %vm3209, %v3201
      %3219 = vst.msk [vmem:[%s712 + $0x48] sm:$0xff] %vm3209, %v3202
      %3220 = vst.msk [vmem:[%s712 + $0x50] sm:$0xff] %vm3209, %v3203
      %3221 = vst.msk [vmem:[%s712 + $0x58] sm:$0xff] %vm3209, %v3204
      %3222 = vst.msk [vmem:[%s712 + $0x60] sm:$0xff] %vm3209, %v3205
      %3223 = vst.msk [vmem:[%s712 + $0x68] sm:$0xff] %vm3209, %v3206
      %3224 = vst.msk [vmem:[%s712 + $0x70] sm:$0xff] %vm3209, %v3207
      %3225 = vst.msk [vmem:[%s712 + $0x78] sm:$0xff] %vm3209, %v3208
      %s3226 = smul.u32 16, %s34
      %p3227 = scmp.lt.s32.totalorder %s3226, 31
      %s3228 = scalar_select %p3227, %s3226, 31
      %s3229 = smul.addr %s3228, 8
      %s3230 = scalar_lea.vmem %s23, %s3229
      // Predicated region
      $region113: #{nerf_decoder_pallas.1} parent=111 // pred_check
        %p3231 = pneg %p540
      $region114: #{nerf_decoder_pallas.1} parent=111 // pred_check_branch
        %3233 = sbr.rel (%p3231) target = $region116
      $region115: #{nerf_decoder_pallas.1} parent=111 // pred_region
        %s3234 = smul.u32 16, %s34
      $region116: #{nerf_decoder_pallas.1} parent=111 // pred_fallthru
        _
    $region112: #{nerf_decoder_pallas.1} parent=5 // pred_fallthru
      _
    %p3235 = scmp.le.s32.totalorder 2, %s29
    // Predicated region
    $region117: #{nerf_decoder_pallas.1} parent=5 // pred_check
      %p3236 = pneg %p3235
    $region118: #{nerf_decoder_pallas.1} parent=5 // pred_check_branch
      %3238 = sbr.rel (%p3236) target = $region120
    $region119: #{nerf_decoder_pallas.1} parent=5 // pred_region
      %s3239 = ssub.s32 %s29, 2
      // Predicated region
      $region121: #{nerf_decoder_pallas.1} parent=119 // pred_check
        %p3240 = pneg %p546
      $region122: #{nerf_decoder_pallas.1} parent=119 // pred_check_branch
        %3242 = sbr.rel (%p3240) target = $region124
      $region123: #{nerf_decoder_pallas.1} parent=119 // pred_region
        %s3243 = smul.u32 16, %s35
        %p3244 = scmp.lt.s32.totalorder %s3243, 31
        %s3245 = scalar_select %p3244, %s3243, 31
        %s3246 = smul.addr %s3245, 8
        %s3247 = scalar_lea.vmem %s23, %s3246
      $region124: #{nerf_decoder_pallas.1} parent=119 // pred_fallthru
        _
    $region120: #{nerf_decoder_pallas.1} parent=5 // pred_fallthru
      _
  $region6: #{nerf_decoder_pallas.1} parent=0 // loop_footer
    %s33 = sadd.s32 1, %s29
  $region7: #{nerf_decoder_pallas.1} parent=0 // loop_footer_branch
    %28 = sbr.rel target = $region3
  $region8: #{nerf_decoder_pallas.1} parent=0 // loop_exit
    _

</llo_original>
